<compile_context>
chip_gen: v7x
topology: tpu7x:2x2x1
jax: 0.10.0
libtpu: 0.0.40
codegen_flags: <defaults>
</compile_context>

<pallas_src>
import functools

import jax
import jax.numpy as jnp
from jax.experimental import pallas as pl
from jax.experimental.pallas import tpu as pltpu

# ----------------------------------------------------------------------------
# Model constants (synthetic stand-ins for the missing globals).
# ----------------------------------------------------------------------------
N_MELS = 80          # spectrogram channels
COND_CH = 4          # condition channels
ENC_CHANNELS = [16, 32]
MID_CHANNEL = 32
DEC_CHANNELS = [8, 8]
BOTTOM_CHANNEL = 16
NOTES_NUM = 52
TI_DIM = 2 * sum(DEC_CHANNELS)          # 32

DTYPE = jnp.float32
W_DTYPE = jnp.bfloat16                  # MXU-operand / HBM-slab dtype
LANES = 128                             # lane-dense channel padding


# ----------------------------------------------------------------------------
# Fused encoder kernel: enc1..dec2 + fused bottom/heads matmul + pool partials.
# ----------------------------------------------------------------------------
def _encoder_kernel(x_ref,
                    w1_ref, b1_ref, w2_ref, b2_ref,
                    wbh_ref, bbh_ref,
                    wd1_ref, bd1_ref, wd2_ref, bd2_ref,
                    heads_ref, pool_ref,
                    *, tm, seq_len, b_pad):
    f32 = jnp.float32
    bf16 = jnp.bfloat16

    x = x_ref[...]                                           # bf16 (tm, 128)
    h1 = jnp.maximum(jnp.dot(x, w1_ref[...], preferred_element_type=f32)
                     + b1_ref[...], 0.0)
    h2 = jnp.maximum(jnp.dot(h1.astype(bf16), w2_ref[...],
                             preferred_element_type=f32) + b2_ref[...], 0.0)

    # fused bottom + heads: single (tm,128)@(128,256) matmul, split at lane 128.
    bh = (jnp.dot(h2.astype(bf16), wbh_ref[...], preferred_element_type=f32)
          + bbh_ref[...])                                    # (tm, 256) f32
    bot = jnp.maximum(bh[:, :LANES], 0.0)
    heads_ref[...] = bh[:, LANES:].astype(heads_ref.dtype)   # [note|f0|en] bf16

    d1 = jnp.maximum(jnp.dot(bot.astype(bf16), wd1_ref[...],
                             preferred_element_type=f32) + bd1_ref[...], 0.0)
    d2 = jnp.maximum(jnp.dot(d1.astype(bf16), wd2_ref[...],
                             preferred_element_type=f32) + bd2_ref[...], 0.0)

    # Per-batch partial sums of decoder features over this row tile (rows are
    # batch-major: batch = global_row // seq_len) via a one-hot MXU matmul so
    # the grid axis stays "parallel".  Kept in f32 so ti does not drift.
    row0 = pl.program_id(0) * tm
    r_ids = row0 + jax.lax.broadcasted_iota(jnp.int32, (b_pad, tm), 1)
    b_lo = jax.lax.broadcasted_iota(jnp.int32, (b_pad, tm), 0) * seq_len
    boh = ((r_ids >= b_lo) & (r_ids < b_lo + seq_len)).astype(f32)   # (b_pad, tm)
    pool_ref[:, :LANES] = jnp.dot(boh, d1, preferred_element_type=f32)
    pool_ref[:, LANES:] = jnp.dot(boh, d2, preferred_element_type=f32)


def fused_encoder(pp, x_rows, seq_len, tm, b_pad):
    m_pad = x_rows.shape[0]
    n_tiles = m_pad // tm
    kernel = functools.partial(_encoder_kernel, tm=tm, seq_len=seq_len, b_pad=b_pad)
    row = lambda i: (i, 0)
    const = lambda i: (0, 0)
    return pl.pallas_call(
        kernel,
        out_shape=(
            jax.ShapeDtypeStruct((m_pad, LANES), W_DTYPE),                  # heads slab
            jax.ShapeDtypeStruct((n_tiles * b_pad, 2 * LANES), jnp.float32),  # pool partials
        ),
        grid_spec=pltpu.PrefetchScalarGridSpec(
            num_scalar_prefetch=0,
            grid=(n_tiles,),
            in_specs=[
                pl.BlockSpec((tm, LANES), row),             # x slab (bf16)
                pl.BlockSpec((LANES, LANES), const),        # enc1_w
                pl.BlockSpec((1, LANES), const),            # enc1_b
                pl.BlockSpec((LANES, LANES), const),        # enc2_w
                pl.BlockSpec((1, LANES), const),            # enc2_b
                pl.BlockSpec((LANES, 2 * LANES), const),    # bottom|heads fused w
                pl.BlockSpec((1, 2 * LANES), const),        # bottom|heads fused b
                pl.BlockSpec((LANES, LANES), const),        # dec1_w
                pl.BlockSpec((1, LANES), const),            # dec1_b
                pl.BlockSpec((LANES, LANES), const),        # dec2_w
                pl.BlockSpec((1, LANES), const),            # dec2_b
            ],
            out_specs=(
                pl.BlockSpec((tm, LANES), row),
                pl.BlockSpec((b_pad, 2 * LANES), row),
            ),
        ),
        compiler_params=pltpu.CompilerParams(
            dimension_semantics=("parallel",),
            vmem_limit_bytes=32 * 1024 * 1024),
    )(x_rows,
      pp["enc1_w"], pp["enc1_b"], pp["enc2_w"], pp["enc2_b"],
      pp["bh_w"], pp["bh_b"],
      pp["dec1_w"], pp["dec1_b"], pp["dec2_w"], pp["dec2_b"])


# ----------------------------------------------------------------------------
# Fused synthesizer kernel: syn1 ([note|f0] slab, ti projected once) + syn2.
# ----------------------------------------------------------------------------
def _synth_kernel(nf_ref, tiproj_ref, w1_ref, w2_ref, b2_ref, out_ref,
                  *, tm, seq_len, b_pad):
    f32 = jnp.float32
    bf16 = jnp.bfloat16

    # per-row timbre contribution: pick ti_proj[batch] (includes syn1 bias) via
    # a tiny one-hot matmul, kept in f32.
    row0 = pl.program_id(0) * tm
    r_ids = row0 + jax.lax.broadcasted_iota(jnp.int32, (tm, b_pad), 0)
    b_lo = jax.lax.broadcasted_iota(jnp.int32, (tm, b_pad), 1) * seq_len
    boh = ((r_ids >= b_lo) & (r_ids < b_lo + seq_len)).astype(f32)   # (tm, b_pad)
    ti_rows = jnp.dot(boh, tiproj_ref[...], preferred_element_type=f32)

    h = jnp.dot(nf_ref[...], w1_ref[...], preferred_element_type=f32)  # bf16 ops
    h = jnp.maximum(h + ti_rows, 0.0)
    out = (jnp.dot(h.astype(bf16), w2_ref[...], preferred_element_type=f32)
           + b2_ref[...])
    out_ref[...] = out.astype(out_ref.dtype)


def fused_synthesizer(pp, ti_proj_pad, nf_rows, seq_len, tm, b_pad):
    m_pad = nf_rows.shape[0]
    n_tiles = m_pad // tm
    kernel = functools.partial(_synth_kernel, tm=tm, seq_len=seq_len, b_pad=b_pad)
    row = lambda i: (i, 0)
    const = lambda i: (0, 0)
    return pl.pallas_call(
        kernel,
        out_shape=jax.ShapeDtypeStruct((m_pad, LANES), W_DTYPE),
        grid_spec=pltpu.PrefetchScalarGridSpec(
            num_scalar_prefetch=0,
            grid=(n_tiles,),
            in_specs=[
                pl.BlockSpec((tm, LANES), row),             # [note|f0] slab (bf16)
                pl.BlockSpec((b_pad, LANES), const),        # ti @ W_ti + b1 (f32)
                pl.BlockSpec((LANES, LANES), const),        # syn1 fused note|f0 w
                pl.BlockSpec((LANES, LANES), const),        # syn2_w
                pl.BlockSpec((1, LANES), const),            # syn2_b
            ],
            out_specs=pl.BlockSpec((tm, LANES), row),
        ),
        compiler_params=pltpu.CompilerParams(
            dimension_semantics=("parallel",),
            vmem_limit_bytes=32 * 1024 * 1024),
    )(nf_rows, ti_proj_pad, pp["syn1_w_nf"], pp["syn2_w"], pp["syn2_b"])


# ----------------------------------------------------------------------------
# Layout helpers (API boundary only).
# ----------------------------------------------------------------------------
def nct_to_rows(x):
    """(B, C, T) -> (B*T, C)"""
    B, C, T = x.shape
    return jnp.transpose(x, (0, 2, 1)).reshape(B * T, C)


def rows_to_nct(x, B, T):
    """(B*T, C) -> (B, C, T)"""
    C = x.shape[1]
    return jnp.transpose(x.reshape(B, T, C), (0, 2, 1))


def _pick_tile(m):
    """Pad rows to a multiple of 128.  Prefer an EVEN tile count >= 2 (v7x dual
    TensorCore balance); cap the tile at 1024 rows (v7x 64 MiB VMEM budget)."""
    m_pad = ((m + 127) // 128) * 128
    if m_pad <= 128:
        return m_pad, m_pad
    for n in range(2, m_pad // 8 + 1, 2):          # even tile counts first
        tm = m_pad // n
        if m_pad % n == 0 and tm <= 1024 and tm % 8 == 0:
            return m_pad, tm
    for n in range(3, m_pad // 8 + 1):              # fall back to any count
        tm = m_pad // n
        if m_pad % n == 0 and tm <= 1024 and tm % 8 == 0:
            return m_pad, tm
    return m_pad, 128


# ----------------------------------------------------------------------------
# Deterministic parameters (real shapes) + lane-dense padded pack for kernels.
# ----------------------------------------------------------------------------
def _dense(key, k_in, k_out):
    kw, kb = jax.random.split(key)
    w = jax.random.normal(kw, (k_in, k_out), DTYPE) * (1.0 / jnp.sqrt(k_in))
    b = jax.random.normal(kb, (1, k_out), DTYPE) * 0.01
    return w, b


def init_params(seed=0):
    keys = jax.random.split(jax.random.PRNGKey(seed), 10)
    p = {}
    in_ch = N_MELS + COND_CH
    p["enc1"] = _dense(keys[0], in_ch, ENC_CHANNELS[0])
    p["enc2"] = _dense(keys[1], ENC_CHANNELS[0], ENC_CHANNELS[1])
    p["bottom"] = _dense(keys[2], ENC_CHANNELS[1], BOTTOM_CHANNEL)
    p["dec1"] = _dense(keys[3], BOTTOM_CHANNEL, 2 * DEC_CHANNELS[0])
    p["dec2"] = _dense(keys[4], 2 * DEC_CHANNELS[0], 2 * DEC_CHANNELS[1])
    p["note_head"] = _dense(keys[5], ENC_CHANNELS[1], NOTES_NUM)
    p["f0_head"] = _dense(keys[6], ENC_CHANNELS[1], 1)
    p["en_head"] = _dense(keys[7], ENC_CHANNELS[1], 1)
    syn_in = NOTES_NUM + 1 + TI_DIM
    p["syn1"] = _dense(keys[8], syn_in, MID_CHANNEL)
    p["syn2"] = _dense(keys[9], MID_CHANNEL, N_MELS)
    return p


def _pad2(w, k_pad, n_pad, dtype=None):
    k, n = w.shape
    out_dtype = w.dtype if dtype is None else dtype
    return jnp.zeros((k_pad, n_pad), out_dtype).at[:k, :n].set(w.astype(out_dtype))


def pack_params(p):
    """Zero-pad weights to lane-dense blocks; bf16 matmul weights, f32 biases.
    Fuses enc1's spec/cond rows, bottom+heads columns, and syn1's note|f0 rows."""
    pp = {}
    w1, b1 = p["enc1"]
    pp["enc1_w"] = _pad2(w1, LANES, LANES, W_DTYPE)      # rows 0:84 = [spec|cond]
    pp["enc1_b"] = _pad2(b1, 1, LANES)
    w2, b2 = p["enc2"]
    pp["enc2_w"] = _pad2(w2, LANES, LANES, W_DTYPE)
    pp["enc2_b"] = _pad2(b2, 1, LANES)

    wb, bb = p["bottom"]
    wn, bn = p["note_head"]
    wf, bf_ = p["f0_head"]
    we, be = p["en_head"]
    wh = jnp.concatenate([wn, wf, we], axis=1)           # (32, 54): [note|f0|en]
    bh = jnp.concatenate([bn, bf_, be], axis=1)
    pp["bh_w"] = jnp.concatenate(
        [_pad2(wb, LANES, LANES, W_DTYPE), _pad2(wh, LANES, LANES, W_DTYPE)], axis=1)
    pp["bh_b"] = jnp.concatenate([_pad2(bb, 1, LANES), _pad2(bh, 1, LANES)], axis=1)

    for name in ("dec1", "dec2"):
        w, b = p[name]
        pp[name + "_w"] = _pad2(w, LANES, LANES, W_DTYPE)
        pp[name + "_b"] = _pad2(b, 1, LANES)

    ws1, bs1 = p["syn1"]
    pp["syn1_w_nf"] = _pad2(ws1[:NOTES_NUM + 1], LANES, LANES, W_DTYPE)  # [note|f0]
    pp["syn1_w_ti"] = ws1[NOTES_NUM + 1:]                # (TI_DIM, MID) f32, wrapper
    pp["syn1_b"] = bs1                                   # (1, MID) f32, wrapper
    ws2, bs2 = p["syn2"]
    pp["syn2_w"] = _pad2(ws2, LANES, LANES, W_DTYPE)
    pp["syn2_b"] = _pad2(bs2, 1, LANES)
    return pp


# ----------------------------------------------------------------------------
# RepSynthesizer forward.
# ----------------------------------------------------------------------------
def rep_synthesizer_forward(pp, spec, condition, note=None, f0=None,
                            mode="est_gt"):
    B, _, T = spec.shape
    M = B * T
    m_pad, tm = _pick_tile(M)
    n_tiles = m_pad // tm
    b_pad = max(8, ((B + 7) // 8) * 8)          # no silent batch cap

    in_ch = N_MELS + COND_CH
    x_rows = nct_to_rows(jnp.concatenate([spec, condition], axis=1)).astype(W_DTYPE)
    x_rows = jnp.pad(x_rows, ((0, m_pad - M), (0, LANES - in_ch)))

    heads_rows, pool_part = fused_encoder(pp, x_rows, T, tm, b_pad)
    heads_rows = heads_rows[:M]
    est_note_rows = heads_rows[:, :NOTES_NUM]
    est_f0_rows = heads_rows[:, NOTES_NUM:NOTES_NUM + 1]
    est_en_rows = heads_rows[:, NOTES_NUM + 1:NOTES_NUM + 2]

    pool = pool_part.reshape(n_tiles, b_pad, 2 * LANES).sum(0)
    pool1 = pool[:B, :2 * DEC_CHANNELS[0]]
    pool2 = pool[:B, LANES:LANES + 2 * DEC_CHANNELS[1]]
    ti = (jnp.concatenate([pool1, pool2], axis=1) / T).astype(DTYPE)   # (B, TI_DIM)
    reps = [ti[:, :2 * DEC_CHANNELS[0]], ti]       # encode_reps() stand-in

    to_nct = lambda r: rows_to_nct(r.astype(DTYPE), B, T)
    if mode == "ti":
        return (ti, reps, to_nct(est_note_rows), to_nct(est_f0_rows),
                to_nct(est_en_rows))

    if mode == "est":
        idx = jnp.argmax(est_note_rows, axis=1)
        note_rows = jax.nn.one_hot(idx, NOTES_NUM, dtype=DTYPE)
        f0_rows = est_f0_rows.astype(DTYPE)
    else:
        note_rows = nct_to_rows(note)
        f0_rows = nct_to_rows(f0)

    # Constant-over-time part of syn1 (ti @ W_ti + b1): tiny (B, MID) f32 matmul.
    ti_proj = ti @ pp["syn1_w_ti"] + pp["syn1_b"]
    ti_proj_pad = jnp.zeros((b_pad, LANES), jnp.float32).at[
        :B, :MID_CHANNEL].set(ti_proj)

    nf_rows = jnp.concatenate([note_rows, f0_rows], axis=1).astype(W_DTYPE)
    nf_rows = jnp.pad(nf_rows, ((0, m_pad - M), (0, LANES - (NOTES_NUM + 1))))

    out_rows = fused_synthesizer(pp, ti_proj_pad, nf_rows, T, tm, b_pad)
    out_spec = rows_to_nct(out_rows[:M, :N_MELS].astype(DTYPE), B, T)
    est_en = to_nct(est_en_rows)
    if mode == "est_ti":
        return (out_spec, ti, reps, to_nct(est_note_rows), to_nct(est_f0_rows),
                est_en)
    return out_spec, est_en


# ----------------------------------------------------------------------------
# Pure-JAX reference (same math incl. bf16 matmul operands) for sanity check.
# ----------------------------------------------------------------------------
def reference_forward(p, spec, condition, note, f0):
    B, _, T = spec.shape
    bf16 = jnp.bfloat16
    mm = lambda a, w: jnp.dot(a.astype(bf16), w.astype(bf16),
                              preferred_element_type=jnp.float32)
    relu = lambda v: jnp.maximum(v, 0.0)
    xr = nct_to_rows(jnp.concatenate([spec, condition], axis=1))
    h1 = relu(mm(xr, p["enc1"][0]) + p["enc1"][1])
    h2 = relu(mm(h1, p["enc2"][0]) + p["enc2"][1])
    bot = relu(mm(h2, p["bottom"][0]) + p["bottom"][1])
    est_en = mm(h2, p["en_head"][0]) + p["en_head"][1]
    d1 = relu(mm(bot, p["dec1"][0]) + p["dec1"][1])
    d2 = relu(mm(d1, p["dec2"][0]) + p["dec2"][1])
    ti = jnp.concatenate([d1, d2], axis=1).reshape(B, T, TI_DIM).mean(axis=1)
    ws1, bs1 = p["syn1"]
    nf = jnp.concatenate([nct_to_rows(note), nct_to_rows(f0)], axis=1)
    ti_proj = ti @ ws1[NOTES_NUM + 1:] + bs1
    h = relu(mm(nf, ws1[:NOTES_NUM + 1]) + jnp.repeat(ti_proj, T, axis=0))
    out = mm(h, p["syn2"][0]) + p["syn2"][1]
    return rows_to_nct(out, B, T), rows_to_nct(est_en, B, T)


# ----------------------------------------------------------------------------
# Demo
# ----------------------------------------------------------------------------
if __name__ == "__main__":
    B, T = 2, 128
    key = jax.random.PRNGKey(0)
    k_spec, k_cond, k_note, k_f0 = jax.random.split(key, 4)

    spec = jax.random.normal(k_spec, (B, N_MELS, T), DTYPE)
    condition = jax.random.normal(k_cond, (B, COND_CH, T), DTYPE)
    note_idx = jax.random.randint(k_note, (B, T), 0, NOTES_NUM)
    note = jnp.transpose(jax.nn.one_hot(note_idx, NOTES_NUM, dtype=DTYPE), (0, 2, 1))
    f0 = jax.nn.softplus(jax.random.normal(k_f0, (B, 1, T), DTYPE))

    params = init_params(seed=0)
    pp = pack_params(params)

    fwd = jax.jit(functools.partial(rep_synthesizer_forward, mode="est_gt"))
    out_spec, est_en = fwd(pp, spec, condition, note, f0)
    jax.block_until_ready((out_spec, est_en))

    assert out_spec.shape == (B, N_MELS, T), out_spec.shape
    assert est_en.shape == (B, 1, T), est_en.shape
    assert bool(jnp.all(jnp.isfinite(out_spec)))

    ref_spec, ref_en = reference_forward(params, spec, condition, note, f0)
    assert jnp.allclose(out_spec, ref_spec, rtol=5e-2, atol=5e-2)
    assert jnp.allclose(est_en, ref_en, rtol=5e-2, atol=5e-2)

    print("KERNEL_OK")
</pallas_src>

<mosaic_0001>
module attributes {stable_mosaic.version = 11 : i64} {
  func.func @_encoder_kernel(%arg0: i32, %arg1: memref<128x128xbf16, #tpu.memory_space<vmem>>, %arg2: memref<128x128xbf16, #tpu.memory_space<vmem>>, %arg3: memref<1x128xf32, #tpu.memory_space<vmem>>, %arg4: memref<128x128xbf16, #tpu.memory_space<vmem>>, %arg5: memref<1x128xf32, #tpu.memory_space<vmem>>, %arg6: memref<128x256xbf16, #tpu.memory_space<vmem>>, %arg7: memref<1x256xf32, #tpu.memory_space<vmem>>, %arg8: memref<128x128xbf16, #tpu.memory_space<vmem>>, %arg9: memref<1x128xf32, #tpu.memory_space<vmem>>, %arg10: memref<128x128xbf16, #tpu.memory_space<vmem>>, %arg11: memref<1x128xf32, #tpu.memory_space<vmem>>, %arg12: memref<128x128xbf16, #tpu.memory_space<vmem>>, %arg13: memref<8x256xf32, #tpu.memory_space<vmem>>) attributes {dimension_semantics = [#tpu.dimension_semantics<parallel>], iteration_bounds = array<i64: 2>, scalar_prefetch = 0 : i64, scratch_operands = 0 : i64, tpu.core_type = #tpu.core_type<tc>, window_params = [{transform_indices = @transform_0, window_bounds = array<i64: 128, 128>}, {pipeline_mode = #tpu.pipeline_mode<synchronous>, transform_indices = @transform_1, window_bounds = array<i64: 128, 128>}, {pipeline_mode = #tpu.pipeline_mode<synchronous>, transform_indices = @transform_2, window_bounds = array<i64: 1, 128>}, {pipeline_mode = #tpu.pipeline_mode<synchronous>, transform_indices = @transform_3, window_bounds = array<i64: 128, 128>}, {pipeline_mode = #tpu.pipeline_mode<synchronous>, transform_indices = @transform_4, window_bounds = array<i64: 1, 128>}, {pipeline_mode = #tpu.pipeline_mode<synchronous>, transform_indices = @transform_5, window_bounds = array<i64: 128, 256>}, {pipeline_mode = #tpu.pipeline_mode<synchronous>, transform_indices = @transform_6, window_bounds = array<i64: 1, 256>}, {pipeline_mode = #tpu.pipeline_mode<synchronous>, transform_indices = @transform_7, window_bounds = array<i64: 128, 128>}, {pipeline_mode = #tpu.pipeline_mode<synchronous>, transform_indices = @transform_8, window_bounds = array<i64: 1, 128>}, {pipeline_mode = #tpu.pipeline_mode<synchronous>, transform_indices = @transform_9, window_bounds = array<i64: 128, 128>}, {pipeline_mode = #tpu.pipeline_mode<synchronous>, transform_indices = @transform_10, window_bounds = array<i64: 1, 128>}, {transform_indices = @transform_11, window_bounds = array<i64: 128, 128>}, {transform_indices = @transform_12, window_bounds = array<i64: 8, 256>}]} {
    %c0 = arith.constant 0 : index
    %c0_0 = arith.constant 0 : index
    %0 = vector.load %arg1[%c0, %c0_0] : memref<128x128xbf16, #tpu.memory_space<vmem>>, vector<128x128xbf16>
    %c0_1 = arith.constant 0 : index
    %c0_2 = arith.constant 0 : index
    %1 = vector.load %arg2[%c0_1, %c0_2] : memref<128x128xbf16, #tpu.memory_space<vmem>>, vector<128x128xbf16>
    %cst = arith.constant dense<0.000000e+00> : vector<128x128xf32>
    %2 = tpu.matmul %0, %1, %cst {dimension_numbers = #tpu.dot_dimension_numbers<[1], [0], [0], [1], [0, 0, 1, 1], [], []>} : vector<128x128xbf16>, vector<128x128xbf16>, vector<128x128xf32> -> vector<128x128xf32>
    %c0_3 = arith.constant 0 : index
    %c0_4 = arith.constant 0 : index
    %3 = vector.load %arg3[%c0_3, %c0_4] : memref<1x128xf32, #tpu.memory_space<vmem>>, vector<1x128xf32>
    %4 = vector.broadcast %3 : vector<1x128xf32> to vector<128x128xf32>
    %5 = arith.addf %2, %4 : vector<128x128xf32>
    %cst_5 = arith.constant 0.000000e+00 : f32
    %6 = vector.broadcast %cst_5 : f32 to vector<128x128xf32>
    %7 = arith.maximumf %5, %6 : vector<128x128xf32>
    %8 = arith.truncf %7 : vector<128x128xf32> to vector<128x128xbf16>
    %c0_6 = arith.constant 0 : index
    %c0_7 = arith.constant 0 : index
    %9 = vector.load %arg4[%c0_6, %c0_7] : memref<128x128xbf16, #tpu.memory_space<vmem>>, vector<128x128xbf16>
    %cst_8 = arith.constant dense<0.000000e+00> : vector<128x128xf32>
    %10 = tpu.matmul %8, %9, %cst_8 {dimension_numbers = #tpu.dot_dimension_numbers<[1], [0], [0], [1], [0, 0, 1, 1], [], []>} : vector<128x128xbf16>, vector<128x128xbf16>, vector<128x128xf32> -> vector<128x128xf32>
    %c0_9 = arith.constant 0 : index
    %c0_10 = arith.constant 0 : index
    %11 = vector.load %arg5[%c0_9, %c0_10] : memref<1x128xf32, #tpu.memory_space<vmem>>, vector<1x128xf32>
    %12 = vector.broadcast %11 : vector<1x128xf32> to vector<128x128xf32>
    %13 = arith.addf %10, %12 : vector<128x128xf32>
    %cst_11 = arith.constant 0.000000e+00 : f32
    %14 = vector.broadcast %cst_11 : f32 to vector<128x128xf32>
    %15 = arith.maximumf %13, %14 : vector<128x128xf32>
    %16 = arith.truncf %15 : vector<128x128xf32> to vector<128x128xbf16>
    %c0_12 = arith.constant 0 : index
    %c0_13 = arith.constant 0 : index
    %17 = vector.load %arg6[%c0_12, %c0_13] : memref<128x256xbf16, #tpu.memory_space<vmem>>, vector<128x256xbf16>
    %cst_14 = arith.constant dense<0.000000e+00> : vector<128x256xf32>
    %18 = tpu.matmul %16, %17, %cst_14 {dimension_numbers = #tpu.dot_dimension_numbers<[1], [0], [0], [1], [0, 0, 1, 1], [], []>} : vector<128x128xbf16>, vector<128x256xbf16>, vector<128x256xf32> -> vector<128x256xf32>
    %c0_15 = arith.constant 0 : index
    %c0_16 = arith.constant 0 : index
    %19 = vector.load %arg7[%c0_15, %c0_16] : memref<1x256xf32, #tpu.memory_space<vmem>>, vector<1x256xf32>
    %20 = vector.broadcast %19 : vector<1x256xf32> to vector<128x256xf32>
    %21 = arith.addf %18, %20 : vector<128x256xf32>
    %22 = vector.extract_strided_slice %21 {offsets = [0, 0], sizes = [128, 128], strides = [1, 1]} : vector<128x256xf32> to vector<128x128xf32>
    %cst_17 = arith.constant 0.000000e+00 : f32
    %23 = vector.broadcast %cst_17 : f32 to vector<128x128xf32>
    %24 = arith.maximumf %22, %23 : vector<128x128xf32>
    %25 = vector.extract_strided_slice %21 {offsets = [0, 128], sizes = [128, 128], strides = [1, 1]} : vector<128x256xf32> to vector<128x128xf32>
    %26 = arith.truncf %25 : vector<128x128xf32> to vector<128x128xbf16>
    %c0_18 = arith.constant 0 : index
    %c0_19 = arith.constant 0 : index
    %27 = vector.load %arg12[%c0_18, %c0_19] : memref<128x128xbf16, #tpu.memory_space<vmem>>, vector<128x128xbf16>
    tpu.vector_store %arg12[%c0_18, %c0_19], %26 {strides = array<i32>} : memref<128x128xbf16, #tpu.memory_space<vmem>>, vector<128x128xbf16>,
    %28 = arith.truncf %24 : vector<128x128xf32> to vector<128x128xbf16>
    %c0_20 = arith.constant 0 : index
    %c0_21 = arith.constant 0 : index
    %29 = vector.load %arg8[%c0_20, %c0_21] : memref<128x128xbf16, #tpu.memory_space<vmem>>, vector<128x128xbf16>
    %cst_22 = arith.constant dense<0.000000e+00> : vector<128x128xf32>
    %30 = tpu.matmul %28, %29, %cst_22 {dimension_numbers = #tpu.dot_dimension_numbers<[1], [0], [0], [1], [0, 0, 1, 1], [], []>} : vector<128x128xbf16>, vector<128x128xbf16>, vector<128x128xf32> -> vector<128x128xf32>
    %c0_23 = arith.constant 0 : index
    %c0_24 = arith.constant 0 : index
    %31 = vector.load %arg9[%c0_23, %c0_24] : memref<1x128xf32, #tpu.memory_space<vmem>>, vector<1x128xf32>
    %32 = vector.broadcast %31 : vector<1x128xf32> to vector<128x128xf32>
    %33 = arith.addf %30, %32 : vector<128x128xf32>
    %cst_25 = arith.constant 0.000000e+00 : f32
    %34 = vector.broadcast %cst_25 : f32 to vector<128x128xf32>
    %35 = arith.maximumf %33, %34 : vector<128x128xf32>
    %36 = arith.truncf %35 : vector<128x128xf32> to vector<128x128xbf16>
    %c0_26 = arith.constant 0 : index
    %c0_27 = arith.constant 0 : index
    %37 = vector.load %arg10[%c0_26, %c0_27] : memref<128x128xbf16, #tpu.memory_space<vmem>>, vector<128x128xbf16>
    %cst_28 = arith.constant dense<0.000000e+00> : vector<128x128xf32>
    %38 = tpu.matmul %36, %37, %cst_28 {dimension_numbers = #tpu.dot_dimension_numbers<[1], [0], [0], [1], [0, 0, 1, 1], [], []>} : vector<128x128xbf16>, vector<128x128xbf16>, vector<128x128xf32> -> vector<128x128xf32>
    %c0_29 = arith.constant 0 : index
    %c0_30 = arith.constant 0 : index
    %39 = vector.load %arg11[%c0_29, %c0_30] : memref<1x128xf32, #tpu.memory_space<vmem>>, vector<1x128xf32>
    %40 = vector.broadcast %39 : vector<1x128xf32> to vector<128x128xf32>
    %41 = arith.addf %38, %40 : vector<128x128xf32>
    %cst_31 = arith.constant 0.000000e+00 : f32
    %42 = vector.broadcast %cst_31 : f32 to vector<128x128xf32>
    %43 = arith.maximumf %41, %42 : vector<128x128xf32>
    %c128_i32 = arith.constant 128 : i32
    %44 = arith.muli %arg0, %c128_i32 : i32
    %45 = tpu.iota {dimensions = array<i32: 1>} : vector<8x128xi32>
    %46 = vector.broadcast %44 : i32 to vector<8x128xi32>
    %47 = arith.addi %46, %45 : vector<8x128xi32>
    %48 = tpu.iota {dimensions = array<i32: 0>} : vector<8x128xi32>
    %c128_i32_32 = arith.constant 128 : i32
    %49 = vector.broadcast %c128_i32_32 : i32 to vector<8x128xi32>
    %50 = arith.muli %48, %49 : vector<8x128xi32>
    %51 = arith.cmpi sge, %47, %50 : vector<8x128xi32>
    %c128_i32_33 = arith.constant 128 : i32
    %52 = vector.broadcast %c128_i32_33 : i32 to vector<8x128xi32>
    %53 = arith.addi %50, %52 : vector<8x128xi32>
    %54 = arith.cmpi slt, %47, %53 : vector<8x128xi32>
    %55 = arith.andi %51, %54 : vector<8x128xi1>
    %56 = arith.extui %55 : vector<8x128xi1> to vector<8x128xi32>
    %57 = arith.sitofp %56 : vector<8x128xi32> to vector<8x128xf32>
    %cst_34 = arith.constant dense<0.000000e+00> : vector<8x128xf32>
    %58 = tpu.matmul %57, %35, %cst_34 {dimension_numbers = #tpu.dot_dimension_numbers<[1], [0], [0], [1], [0, 0, 1, 1], [], []>} : vector<8x128xf32>, vector<128x128xf32>, vector<8x128xf32> -> vector<8x128xf32>
    %c0_35 = arith.constant 0 : index
    %c0_36 = arith.constant 0 : index
    %59 = vector.load %arg13[%c0_35, %c0_36] : memref<8x256xf32, #tpu.memory_space<vmem>>, vector<8x128xf32>
    tpu.vector_store %arg13[%c0_35, %c0_36], %58 {strides = array<i32>} : memref<8x256xf32, #tpu.memory_space<vmem>>, vector<8x128xf32>,
    %cst_37 = arith.constant dense<0.000000e+00> : vector<8x128xf32>
    %60 = tpu.matmul %57, %43, %cst_37 {dimension_numbers = #tpu.dot_dimension_numbers<[1], [0], [0], [1], [0, 0, 1, 1], [], []>} : vector<8x128xf32>, vector<128x128xf32>, vector<8x128xf32> -> vector<8x128xf32>
    %c0_38 = arith.constant 0 : index
    %c128 = arith.constant 128 : index
    %61 = vector.load %arg13[%c0_38, %c128] : memref<8x256xf32, #tpu.memory_space<vmem>>, vector<8x128xf32>
    tpu.vector_store %arg13[%c0_38, %c128], %60 {strides = array<i32>} : memref<8x256xf32, #tpu.memory_space<vmem>>, vector<8x128xf32>,
    return
  }
  func.func @transform_0(%arg0: i32) -> (i32, i32) {
    %c0_i32 = arith.constant 0 : i32
    %c0_i32_0 = arith.constant 0 : i32
    return %arg0, %c0_i32 : i32, i32
  }
  func.func @transform_1(%arg0: i32) -> (i32, i32) {
    %c0_i32 = arith.constant 0 : i32
    %c0_i32_0 = arith.constant 0 : i32
    %c0_i32_1 = arith.constant 0 : i32
    return %c0_i32, %c0_i32_0 : i32, i32
  }
  func.func @transform_2(%arg0: i32) -> (i32, i32) {
    %c0_i32 = arith.constant 0 : i32
    %c0_i32_0 = arith.constant 0 : i32
    %c0_i32_1 = arith.constant 0 : i32
    return %c0_i32, %c0_i32_0 : i32, i32
  }
  func.func @transform_3(%arg0: i32) -> (i32, i32) {
    %c0_i32 = arith.constant 0 : i32
    %c0_i32_0 = arith.constant 0 : i32
    %c0_i32_1 = arith.constant 0 : i32
    return %c0_i32, %c0_i32_0 : i32, i32
  }
  func.func @transform_4(%arg0: i32) -> (i32, i32) {
    %c0_i32 = arith.constant 0 : i32
    %c0_i32_0 = arith.constant 0 : i32
    %c0_i32_1 = arith.constant 0 : i32
    return %c0_i32, %c0_i32_0 : i32, i32
  }
  func.func @transform_5(%arg0: i32) -> (i32, i32) {
    %c0_i32 = arith.constant 0 : i32
    %c0_i32_0 = arith.constant 0 : i32
    %c0_i32_1 = arith.constant 0 : i32
    return %c0_i32, %c0_i32_0 : i32, i32
  }
  func.func @transform_6(%arg0: i32) -> (i32, i32) {
    %c0_i32 = arith.constant 0 : i32
    %c0_i32_0 = arith.constant 0 : i32
    %c0_i32_1 = arith.constant 0 : i32
    return %c0_i32, %c0_i32_0 : i32, i32
  }
  func.func @transform_7(%arg0: i32) -> (i32, i32) {
    %c0_i32 = arith.constant 0 : i32
    %c0_i32_0 = arith.constant 0 : i32
    %c0_i32_1 = arith.constant 0 : i32
    return %c0_i32, %c0_i32_0 : i32, i32
  }
  func.func @transform_8(%arg0: i32) -> (i32, i32) {
    %c0_i32 = arith.constant 0 : i32
    %c0_i32_0 = arith.constant 0 : i32
    %c0_i32_1 = arith.constant 0 : i32
    return %c0_i32, %c0_i32_0 : i32, i32
  }
  func.func @transform_9(%arg0: i32) -> (i32, i32) {
    %c0_i32 = arith.constant 0 : i32
    %c0_i32_0 = arith.constant 0 : i32
    %c0_i32_1 = arith.constant 0 : i32
    return %c0_i32, %c0_i32_0 : i32, i32
  }
  func.func @transform_10(%arg0: i32) -> (i32, i32) {
    %c0_i32 = arith.constant 0 : i32
    %c0_i32_0 = arith.constant 0 : i32
    %c0_i32_1 = arith.constant 0 : i32
    return %c0_i32, %c0_i32_0 : i32, i32
  }
  func.func @transform_11(%arg0: i32) -> (i32, i32) {
    %c0_i32 = arith.constant 0 : i32
    %c0_i32_0 = arith.constant 0 : i32
    return %arg0, %c0_i32 : i32, i32
  }
  func.func @transform_12(%arg0: i32) -> (i32, i32) {
    %c0_i32 = arith.constant 0 : i32
    %c0_i32_0 = arith.constant 0 : i32
    return %arg0, %c0_i32 : i32, i32
  }
}

module attributes {stable_mosaic.version = 11 : i64} {
  func.func @_synth_kernel(%arg0: i32, %arg1: memref<128x128xbf16, #tpu.memory_space<vmem>>, %arg2: memref<8x128xf32, #tpu.memory_space<vmem>>, %arg3: memref<128x128xbf16, #tpu.memory_space<vmem>>, %arg4: memref<128x128xbf16, #tpu.memory_space<vmem>>, %arg5: memref<1x128xf32, #tpu.memory_space<vmem>>, %arg6: memref<128x128xbf16, #tpu.memory_space<vmem>>) attributes {dimension_semantics = [#tpu.dimension_semantics<parallel>], iteration_bounds = array<i64: 2>, scalar_prefetch = 0 : i64, scratch_operands = 0 : i64, tpu.core_type = #tpu.core_type<tc>, window_params = [{transform_indices = @transform_0, window_bounds = array<i64: 128, 128>}, {pipeline_mode = #tpu.pipeline_mode<synchronous>, transform_indices = @transform_1, window_bounds = array<i64: 8, 128>}, {pipeline_mode = #tpu.pipeline_mode<synchronous>, transform_indices = @transform_2, window_bounds = array<i64: 128, 128>}, {pipeline_mode = #tpu.pipeline_mode<synchronous>, transform_indices = @transform_3, window_bounds = array<i64: 128, 128>}, {pipeline_mode = #tpu.pipeline_mode<synchronous>, transform_indices = @transform_4, window_bounds = array<i64: 1, 128>}, {transform_indices = @transform_5, window_bounds = array<i64: 128, 128>}]} {
    %c128_i32 = arith.constant 128 : i32
    %0 = arith.muli %arg0, %c128_i32 : i32
    %1 = tpu.iota {dimensions = array<i32: 0>} : vector<128x8xi32>
    %2 = vector.broadcast %0 : i32 to vector<128x8xi32>
    %3 = arith.addi %2, %1 : vector<128x8xi32>
    %4 = tpu.iota {dimensions = array<i32: 1>} : vector<128x8xi32>
    %c128_i32_0 = arith.constant 128 : i32
    %5 = vector.broadcast %c128_i32_0 : i32 to vector<128x8xi32>
    %6 = arith.muli %4, %5 : vector<128x8xi32>
    %7 = arith.cmpi sge, %3, %6 : vector<128x8xi32>
    %c128_i32_1 = arith.constant 128 : i32
    %8 = vector.broadcast %c128_i32_1 : i32 to vector<128x8xi32>
    %9 = arith.addi %6, %8 : vector<128x8xi32>
    %10 = arith.cmpi slt, %3, %9 : vector<128x8xi32>
    %11 = arith.andi %7, %10 : vector<128x8xi1>
    %12 = arith.extui %11 : vector<128x8xi1> to vector<128x8xi32>
    %13 = arith.sitofp %12 : vector<128x8xi32> to vector<128x8xf32>
    %c0 = arith.constant 0 : index
    %c0_2 = arith.constant 0 : index
    %14 = vector.load %arg2[%c0, %c0_2] : memref<8x128xf32, #tpu.memory_space<vmem>>, vector<8x128xf32>
    %cst = arith.constant dense<0.000000e+00> : vector<128x128xf32>
    %15 = tpu.matmul %13, %14, %cst {dimension_numbers = #tpu.dot_dimension_numbers<[1], [0], [0], [1], [0, 0, 1, 1], [], []>} : vector<128x8xf32>, vector<8x128xf32>, vector<128x128xf32> -> vector<128x128xf32>
    %c0_3 = arith.constant 0 : index
    %c0_4 = arith.constant 0 : index
    %16 = vector.load %arg1[%c0_3, %c0_4] : memref<128x128xbf16, #tpu.memory_space<vmem>>, vector<128x128xbf16>
    %c0_5 = arith.constant 0 : index
    %c0_6 = arith.constant 0 : index
    %17 = vector.load %arg3[%c0_5, %c0_6] : memref<128x128xbf16, #tpu.memory_space<vmem>>, vector<128x128xbf16>
    %cst_7 = arith.constant dense<0.000000e+00> : vector<128x128xf32>
    %18 = tpu.matmul %16, %17, %cst_7 {dimension_numbers = #tpu.dot_dimension_numbers<[1], [0], [0], [1], [0, 0, 1, 1], [], []>} : vector<128x128xbf16>, vector<128x128xbf16>, vector<128x128xf32> -> vector<128x128xf32>
    %19 = arith.addf %18, %15 : vector<128x128xf32>
    %cst_8 = arith.constant 0.000000e+00 : f32
    %20 = vector.broadcast %cst_8 : f32 to vector<128x128xf32>
    %21 = arith.maximumf %19, %20 : vector<128x128xf32>
    %22 = arith.truncf %21 : vector<128x128xf32> to vector<128x128xbf16>
    %c0_9 = arith.constant 0 : index
    %c0_10 = arith.constant 0 : index
    %23 = vector.load %arg4[%c0_9, %c0_10] : memref<128x128xbf16, #tpu.memory_space<vmem>>, vector<128x128xbf16>
    %cst_11 = arith.constant dense<0.000000e+00> : vector<128x128xf32>
    %24 = tpu.matmul %22, %23, %cst_11 {dimension_numbers = #tpu.dot_dimension_numbers<[1], [0], [0], [1], [0, 0, 1, 1], [], []>} : vector<128x128xbf16>, vector<128x128xbf16>, vector<128x128xf32> -> vector<128x128xf32>
    %c0_12 = arith.constant 0 : index
    %c0_13 = arith.constant 0 : index
    %25 = vector.load %arg5[%c0_12, %c0_13] : memref<1x128xf32, #tpu.memory_space<vmem>>, vector<1x128xf32>
    %26 = vector.broadcast %25 : vector<1x128xf32> to vector<128x128xf32>
    %27 = arith.addf %24, %26 : vector<128x128xf32>
    %28 = arith.truncf %27 : vector<128x128xf32> to vector<128x128xbf16>
    %c0_14 = arith.constant 0 : index
    %c0_15 = arith.constant 0 : index
    %29 = vector.load %arg6[%c0_14, %c0_15] : memref<128x128xbf16, #tpu.memory_space<vmem>>, vector<128x128xbf16>
    tpu.vector_store %arg6[%c0_14, %c0_15], %28 {strides = array<i32>} : memref<128x128xbf16, #tpu.memory_space<vmem>>, vector<128x128xbf16>,
    return
  }
  func.func @transform_0(%arg0: i32) -> (i32, i32) {
    %c0_i32 = arith.constant 0 : i32
    %c0_i32_0 = arith.constant 0 : i32
    return %arg0, %c0_i32 : i32, i32
  }
  func.func @transform_1(%arg0: i32) -> (i32, i32) {
    %c0_i32 = arith.constant 0 : i32
    %c0_i32_0 = arith.constant 0 : i32
    %c0_i32_1 = arith.constant 0 : i32
    return %c0_i32, %c0_i32_0 : i32, i32
  }
  func.func @transform_2(%arg0: i32) -> (i32, i32) {
    %c0_i32 = arith.constant 0 : i32
    %c0_i32_0 = arith.constant 0 : i32
    %c0_i32_1 = arith.constant 0 : i32
    return %c0_i32, %c0_i32_0 : i32, i32
  }
  func.func @transform_3(%arg0: i32) -> (i32, i32) {
    %c0_i32 = arith.constant 0 : i32
    %c0_i32_0 = arith.constant 0 : i32
    %c0_i32_1 = arith.constant 0 : i32
    return %c0_i32, %c0_i32_0 : i32, i32
  }
  func.func @transform_4(%arg0: i32) -> (i32, i32) {
    %c0_i32 = arith.constant 0 : i32
    %c0_i32_0 = arith.constant 0 : i32
    %c0_i32_1 = arith.constant 0 : i32
    return %c0_i32, %c0_i32_0 : i32, i32
  }
  func.func @transform_5(%arg0: i32) -> (i32, i32) {
    %c0_i32 = arith.constant 0 : i32
    %c0_i32_0 = arith.constant 0 : i32
    return %arg0, %c0_i32 : i32, i32
  }
}

</mosaic_0001>

<llo_original>
// kernel: rep_synthesizer_forward.2
$region0: #{rep_synthesizer_forward.2}
  #allocation0 [shape = 'u32[]', space=smem, size = 0x4, offset = 0x4, fixed_abs, tag = 'smem constant byte address 0x4 - core index']
  #allocation1 [shape = 'u32[144,128]{1,0:T(1,128)}', space=vmem, size = 0x12000, scoped, tag = 'internal scratch']
  %s0 = inlined_call_operand.vmem [shape: bf16[256,128], index: 0, kind: input, shape index: {}]
  %s1 = inlined_call_operand.vmem [shape: bf16[128,128], index: 1, kind: input, shape index: {}]
  %s2 = inlined_call_operand.vmem [shape: f32[1,128], index: 2, kind: input, shape index: {}]
  %s3 = inlined_call_operand.vmem [shape: bf16[128,128], index: 3, kind: input, shape index: {}]
  %s4 = inlined_call_operand.vmem [shape: f32[1,128], index: 4, kind: input, shape index: {}]
  %s5 = inlined_call_operand.vmem [shape: bf16[128,256], index: 5, kind: input, shape index: {}]
  %s6 = inlined_call_operand.vmem [shape: f32[1,256], index: 6, kind: input, shape index: {}]
  %s7 = inlined_call_operand.vmem [shape: bf16[128,128], index: 7, kind: input, shape index: {}]
  %s8 = inlined_call_operand.vmem [shape: f32[1,128], index: 8, kind: input, shape index: {}]
  %s9 = inlined_call_operand.vmem [shape: bf16[128,128], index: 9, kind: input, shape index: {}]
  %s10 = inlined_call_operand.vmem [shape: f32[1,128], index: 10, kind: input, shape index: {}]
  %s11 = inlined_call_operand.vmem [shape: bf16[256,128], index: 11, kind: output, shape index: {0}]
  %s12 = inlined_call_operand.vmem [shape: f32[16,256], index: 12, kind: output, shape index: {1}]
  %13 = xla_tuple %s11, %s12
  %s14 = sld [smem:[#allocation0]]
  $region85: #{rep_synthesizer_forward.2} parent=0
    _
  %s16 = ssub.s32 1, %s14
  %s17 = scalar_select 0, %s16, %s14
  loop: start=0, step=1, limit=4
  $region2: #{rep_synthesizer_forward.2} parent=0 // loop_pre_header
    _
  $region3: #{rep_synthesizer_forward.2} parent=0 // loop_header
    %s19 = sphi 0, %s23
    %p20 = scmp.ge.s32.totalorder %s19, 4
    %s29 = sphi 0, %s31
    %s32 = sphi 0, %s29
    %s33 = sphi 0, %s32
    %s49 = sphi 0, %s33
    %s53 = sphi 0, %s53
    %s55 = sphi 0, %s53
    %s56 = sphi 0, %s55
    %s70 = sphi 0, %s56
    %s74 = sphi 0, %s74
    %s76 = sphi 0, %s74
    %s77 = sphi 0, %s76
    %s91 = sphi 0, %s77
    %s95 = sphi 0, %s95
    %s97 = sphi 0, %s95
    %s98 = sphi 0, %s97
    %s112 = sphi 0, %s98
    %s116 = sphi 0, %s116
    %s118 = sphi 0, %s116
    %s119 = sphi 0, %s118
    %s133 = sphi 0, %s119
    %s137 = sphi 0, %s137
    %s139 = sphi 0, %s137
    %s140 = sphi 0, %s139
    %s154 = sphi 0, %s140
    %s158 = sphi 0, %s158
    %s160 = sphi 0, %s158
    %s161 = sphi 0, %s160
    %s175 = sphi 0, %s161
    %s179 = sphi 0, %s179
    %s181 = sphi 0, %s179
    %s182 = sphi 0, %s181
    %s196 = sphi 0, %s182
    %s200 = sphi 0, %s200
    %s202 = sphi 0, %s200
    %s203 = sphi 0, %s202
    %s217 = sphi 0, %s203
    %s221 = sphi 0, %s221
    %s223 = sphi 0, %s221
    %s224 = sphi 0, %s223
    %s238 = sphi 0, %s224
    %s242 = sphi 0, %s242
    %s244 = sphi 0, %s242
    %s245 = sphi 0, %s244
    %s259 = sphi 0, %s245
    %s265 = sphi 0, %s267
    %s268 = sphi 0, %s265
    %s269 = sphi 0, %s268
    %s285 = sphi 0, %s269
    %s291 = sphi 0, %s293
    %s294 = sphi 0, %s291
    %s295 = sphi 0, %s294
    %s311 = sphi 0, %s295
  $region4: #{rep_synthesizer_forward.2} parent=0 // loop_header_branch
    %22 = sbr.rel (%p20) target = $region8
  $region5: #{rep_synthesizer_forward.2} parent=0 // loop_body
    %s24 = ssub.s32 %s19, 1
    %s25 = ssub.s32 %s19, 2
    %s26 = sadd.s32 %s19, 1
    %s27 = ssub.s32 %s19, %s26
    %p28 = scmp.eq.s32.totalorder %s27, 0
    %s30 = sadd.s32 %s29, 1
    %s31 = scalar_select %p28, %s29, %s30
    %p34 = pneg %p28
    %p35 = scmp.eq.s32.totalorder %s19, 1
    %p36 = por %p34, %p35
    %p37 = scmp.ne.s32.totalorder %s29, %s32
    %p38 = scmp.eq.s32.totalorder %s19, 0
    %p39 = por %p37, %p38
    %p40 = scmp.ne.s32.totalorder %s29, %s32
    %p41 = scmp.eq.s32.totalorder %s24, 1
    %p42 = por %p40, %p41
    %p43 = scmp.ne.s32.totalorder %s32, %s33
    %p44 = scmp.eq.s32.totalorder %s24, 0
    %p45 = por %p43, %p44
    %p46 = scmp.ne.s32.totalorder %s32, %s33
    %p47 = scmp.eq.s32.totalorder %s25, 1
    %p48 = por %p46, %p47
    %p50 = scmp.ne.s32.totalorder %s33, %s49
    %p51 = scmp.eq.s32.totalorder %s25, 0
    %p52 = por %p50, %p51
    %s54 = sadd.s32 %s53, 1
    %p57 = scmp.eq.s32.totalorder %s19, 1
    %p58 = scmp.ne.s32.totalorder %s53, %s55
    %p59 = scmp.eq.s32.totalorder %s19, 0
    %p60 = por %p58, %p59
    %p61 = scmp.ne.s32.totalorder %s53, %s55
    %p62 = scmp.eq.s32.totalorder %s24, 1
    %p63 = por %p61, %p62
    %p64 = scmp.ne.s32.totalorder %s55, %s56
    %p65 = scmp.eq.s32.totalorder %s24, 0
    %p66 = por %p64, %p65
    %p67 = scmp.ne.s32.totalorder %s55, %s56
    %p68 = scmp.eq.s32.totalorder %s25, 1
    %p69 = por %p67, %p68
    %p71 = scmp.ne.s32.totalorder %s56, %s70
    %p72 = scmp.eq.s32.totalorder %s25, 0
    %p73 = por %p71, %p72
    %s75 = sadd.s32 %s74, 1
    %p78 = scmp.eq.s32.totalorder %s19, 1
    %p79 = scmp.ne.s32.totalorder %s74, %s76
    %p80 = scmp.eq.s32.totalorder %s19, 0
    %p81 = por %p79, %p80
    %p82 = scmp.ne.s32.totalorder %s74, %s76
    %p83 = scmp.eq.s32.totalorder %s24, 1
    %p84 = por %p82, %p83
    %p85 = scmp.ne.s32.totalorder %s76, %s77
    %p86 = scmp.eq.s32.totalorder %s24, 0
    %p87 = por %p85, %p86
    %p88 = scmp.ne.s32.totalorder %s76, %s77
    %p89 = scmp.eq.s32.totalorder %s25, 1
    %p90 = por %p88, %p89
    %p92 = scmp.ne.s32.totalorder %s77, %s91
    %p93 = scmp.eq.s32.totalorder %s25, 0
    %p94 = por %p92, %p93
    %s96 = sadd.s32 %s95, 1
    %p99 = scmp.eq.s32.totalorder %s19, 1
    %p100 = scmp.ne.s32.totalorder %s95, %s97
    %p101 = scmp.eq.s32.totalorder %s19, 0
    %p102 = por %p100, %p101
    %p103 = scmp.ne.s32.totalorder %s95, %s97
    %p104 = scmp.eq.s32.totalorder %s24, 1
    %p105 = por %p103, %p104
    %p106 = scmp.ne.s32.totalorder %s97, %s98
    %p107 = scmp.eq.s32.totalorder %s24, 0
    %p108 = por %p106, %p107
    %p109 = scmp.ne.s32.totalorder %s97, %s98
    %p110 = scmp.eq.s32.totalorder %s25, 1
    %p111 = por %p109, %p110
    %p113 = scmp.ne.s32.totalorder %s98, %s112
    %p114 = scmp.eq.s32.totalorder %s25, 0
    %p115 = por %p113, %p114
    %s117 = sadd.s32 %s116, 1
    %p120 = scmp.eq.s32.totalorder %s19, 1
    %p121 = scmp.ne.s32.totalorder %s116, %s118
    %p122 = scmp.eq.s32.totalorder %s19, 0
    %p123 = por %p121, %p122
    %p124 = scmp.ne.s32.totalorder %s116, %s118
    %p125 = scmp.eq.s32.totalorder %s24, 1
    %p126 = por %p124, %p125
    %p127 = scmp.ne.s32.totalorder %s118, %s119
    %p128 = scmp.eq.s32.totalorder %s24, 0
    %p129 = por %p127, %p128
    %p130 = scmp.ne.s32.totalorder %s118, %s119
    %p131 = scmp.eq.s32.totalorder %s25, 1
    %p132 = por %p130, %p131
    %p134 = scmp.ne.s32.totalorder %s119, %s133
    %p135 = scmp.eq.s32.totalorder %s25, 0
    %p136 = por %p134, %p135
    %s138 = sadd.s32 %s137, 1
    %p141 = scmp.eq.s32.totalorder %s19, 1
    %p142 = scmp.ne.s32.totalorder %s137, %s139
    %p143 = scmp.eq.s32.totalorder %s19, 0
    %p144 = por %p142, %p143
    %p145 = scmp.ne.s32.totalorder %s137, %s139
    %p146 = scmp.eq.s32.totalorder %s24, 1
    %p147 = por %p145, %p146
    %p148 = scmp.ne.s32.totalorder %s139, %s140
    %p149 = scmp.eq.s32.totalorder %s24, 0
    %p150 = por %p148, %p149
    %p151 = scmp.ne.s32.totalorder %s139, %s140
    %p152 = scmp.eq.s32.totalorder %s25, 1
    %p153 = por %p151, %p152
    %p155 = scmp.ne.s32.totalorder %s140, %s154
    %p156 = scmp.eq.s32.totalorder %s25, 0
    %p157 = por %p155, %p156
    %s159 = sadd.s32 %s158, 1
    %p162 = scmp.eq.s32.totalorder %s19, 1
    %p163 = scmp.ne.s32.totalorder %s158, %s160
    %p164 = scmp.eq.s32.totalorder %s19, 0
    %p165 = por %p163, %p164
    %p166 = scmp.ne.s32.totalorder %s158, %s160
    %p167 = scmp.eq.s32.totalorder %s24, 1
    %p168 = por %p166, %p167
    %p169 = scmp.ne.s32.totalorder %s160, %s161
    %p170 = scmp.eq.s32.totalorder %s24, 0
    %p171 = por %p169, %p170
    %p172 = scmp.ne.s32.totalorder %s160, %s161
    %p173 = scmp.eq.s32.totalorder %s25, 1
    %p174 = por %p172, %p173
    %p176 = scmp.ne.s32.totalorder %s161, %s175
    %p177 = scmp.eq.s32.totalorder %s25, 0
    %p178 = por %p176, %p177
    %s180 = sadd.s32 %s179, 1
    %p183 = scmp.eq.s32.totalorder %s19, 1
    %p184 = scmp.ne.s32.totalorder %s179, %s181
    %p185 = scmp.eq.s32.totalorder %s19, 0
    %p186 = por %p184, %p185
    %p187 = scmp.ne.s32.totalorder %s179, %s181
    %p188 = scmp.eq.s32.totalorder %s24, 1
    %p189 = por %p187, %p188
    %p190 = scmp.ne.s32.totalorder %s181, %s182
    %p191 = scmp.eq.s32.totalorder %s24, 0
    %p192 = por %p190, %p191
    %p193 = scmp.ne.s32.totalorder %s181, %s182
    %p194 = scmp.eq.s32.totalorder %s25, 1
    %p195 = por %p193, %p194
    %p197 = scmp.ne.s32.totalorder %s182, %s196
    %p198 = scmp.eq.s32.totalorder %s25, 0
    %p199 = por %p197, %p198
    %s201 = sadd.s32 %s200, 1
    %p204 = scmp.eq.s32.totalorder %s19, 1
    %p205 = scmp.ne.s32.totalorder %s200, %s202
    %p206 = scmp.eq.s32.totalorder %s19, 0
    %p207 = por %p205, %p206
    %p208 = scmp.ne.s32.totalorder %s200, %s202
    %p209 = scmp.eq.s32.totalorder %s24, 1
    %p210 = por %p208, %p209
    %p211 = scmp.ne.s32.totalorder %s202, %s203
    %p212 = scmp.eq.s32.totalorder %s24, 0
    %p213 = por %p211, %p212
    %p214 = scmp.ne.s32.totalorder %s202, %s203
    %p215 = scmp.eq.s32.totalorder %s25, 1
    %p216 = por %p214, %p215
    %p218 = scmp.ne.s32.totalorder %s203, %s217
    %p219 = scmp.eq.s32.totalorder %s25, 0
    %p220 = por %p218, %p219
    %s222 = sadd.s32 %s221, 1
    %p225 = scmp.eq.s32.totalorder %s19, 1
    %p226 = scmp.ne.s32.totalorder %s221, %s223
    %p227 = scmp.eq.s32.totalorder %s19, 0
    %p228 = por %p226, %p227
    %p229 = scmp.ne.s32.totalorder %s221, %s223
    %p230 = scmp.eq.s32.totalorder %s24, 1
    %p231 = por %p229, %p230
    %p232 = scmp.ne.s32.totalorder %s223, %s224
    %p233 = scmp.eq.s32.totalorder %s24, 0
    %p234 = por %p232, %p233
    %p235 = scmp.ne.s32.totalorder %s223, %s224
    %p236 = scmp.eq.s32.totalorder %s25, 1
    %p237 = por %p235, %p236
    %p239 = scmp.ne.s32.totalorder %s224, %s238
    %p240 = scmp.eq.s32.totalorder %s25, 0
    %p241 = por %p239, %p240
    %s243 = sadd.s32 %s242, 1
    %p246 = scmp.eq.s32.totalorder %s19, 1
    %p247 = scmp.ne.s32.totalorder %s242, %s244
    %p248 = scmp.eq.s32.totalorder %s19, 0
    %p249 = por %p247, %p248
    %p250 = scmp.ne.s32.totalorder %s242, %s244
    %p251 = scmp.eq.s32.totalorder %s24, 1
    %p252 = por %p250, %p251
    %p253 = scmp.ne.s32.totalorder %s244, %s245
    %p254 = scmp.eq.s32.totalorder %s24, 0
    %p255 = por %p253, %p254
    %p256 = scmp.ne.s32.totalorder %s244, %s245
    %p257 = scmp.eq.s32.totalorder %s25, 1
    %p258 = por %p256, %p257
    %p260 = scmp.ne.s32.totalorder %s245, %s259
    %p261 = scmp.eq.s32.totalorder %s25, 0
    %p262 = por %p260, %p261
    %s263 = ssub.s32 %s19, %s26
    %p264 = scmp.eq.s32.totalorder %s263, 0
    %s266 = sadd.s32 %s265, 1
    %s267 = scalar_select %p264, %s265, %s266
    %p270 = pneg %p264
    %p271 = scmp.eq.s32.totalorder %s19, 1
    %p272 = por %p270, %p271
    %p273 = scmp.ne.s32.totalorder %s265, %s268
    %p274 = scmp.eq.s32.totalorder %s19, 0
    %p275 = por %p273, %p274
    %p276 = scmp.ne.s32.totalorder %s265, %s268
    %p277 = scmp.eq.s32.totalorder %s24, 1
    %p278 = por %p276, %p277
    %p279 = scmp.ne.s32.totalorder %s268, %s269
    %p280 = scmp.eq.s32.totalorder %s24, 0
    %p281 = por %p279, %p280
    %p282 = scmp.ne.s32.totalorder %s268, %s269
    %p283 = scmp.eq.s32.totalorder %s25, 1
    %p284 = por %p282, %p283
    %p286 = scmp.ne.s32.totalorder %s269, %s285
    %p287 = scmp.eq.s32.totalorder %s25, 0
    %p288 = por %p286, %p287
    %s289 = ssub.s32 %s19, %s26
    %p290 = scmp.eq.s32.totalorder %s289, 0
    %s292 = sadd.s32 %s291, 1
    %s293 = scalar_select %p290, %s291, %s292
    %p296 = pneg %p290
    %p297 = scmp.eq.s32.totalorder %s19, 1
    %p298 = por %p296, %p297
    %p299 = scmp.ne.s32.totalorder %s291, %s294
    %p300 = scmp.eq.s32.totalorder %s19, 0
    %p301 = por %p299, %p300
    %p302 = scmp.ne.s32.totalorder %s291, %s294
    %p303 = scmp.eq.s32.totalorder %s24, 1
    %p304 = por %p302, %p303
    %p305 = scmp.ne.s32.totalorder %s294, %s295
    %p306 = scmp.eq.s32.totalorder %s24, 0
    %p307 = por %p305, %p306
    %p308 = scmp.ne.s32.totalorder %s294, %s295
    %p309 = scmp.eq.s32.totalorder %s25, 1
    %p310 = por %p308, %p309
    %p312 = scmp.ne.s32.totalorder %s295, %s311
    %p313 = scmp.eq.s32.totalorder %s25, 0
    %p314 = por %p312, %p313
    %p315 = scmp.le.s32.totalorder 1, %s19
    %p316 = scmp.lt.s32.totalorder %s19, 3
    %p317 = pnand %p315, %p316
    %p318 = pneg %p317
    // Predicated region
    $region9: #{rep_synthesizer_forward.2} parent=5 // pred_check
      _
    $region10: #{rep_synthesizer_forward.2} parent=5 // pred_check_branch
      %320 = sbr.rel (%p317) target = $region12
    $region11: #{rep_synthesizer_forward.2} parent=5 // pred_region
      %s321 = ssub.s32 %s19, 1
      // Predicated region
      $region13: #{rep_synthesizer_forward.2} parent=11 // pred_check
        %p322 = pneg %p66
      $region14: #{rep_synthesizer_forward.2} parent=11 // pred_check_branch
        %324 = sbr.rel (%p322) target = $region16
      $region15: #{rep_synthesizer_forward.2} parent=11 // pred_region
        _
      $region16: #{rep_synthesizer_forward.2} parent=11 // pred_fallthru
        _
      // Predicated region
      $region17: #{rep_synthesizer_forward.2} parent=11 // pred_check
        %p325 = pneg %p87
      $region18: #{rep_synthesizer_forward.2} parent=11 // pred_check_branch
        %327 = sbr.rel (%p325) target = $region20
      $region19: #{rep_synthesizer_forward.2} parent=11 // pred_region
        _
      $region20: #{rep_synthesizer_forward.2} parent=11 // pred_fallthru
        _
      // Predicated region
      $region21: #{rep_synthesizer_forward.2} parent=11 // pred_check
        %p328 = pneg %p108
      $region22: #{rep_synthesizer_forward.2} parent=11 // pred_check_branch
        %330 = sbr.rel (%p328) target = $region24
      $region23: #{rep_synthesizer_forward.2} parent=11 // pred_region
        _
      $region24: #{rep_synthesizer_forward.2} parent=11 // pred_fallthru
        _
      // Predicated region
      $region25: #{rep_synthesizer_forward.2} parent=11 // pred_check
        %p331 = pneg %p129
      $region26: #{rep_synthesizer_forward.2} parent=11 // pred_check_branch
        %333 = sbr.rel (%p331) target = $region28
      $region27: #{rep_synthesizer_forward.2} parent=11 // pred_region
        _
      $region28: #{rep_synthesizer_forward.2} parent=11 // pred_fallthru
        _
      // Predicated region
      $region29: #{rep_synthesizer_forward.2} parent=11 // pred_check
        %p334 = pneg %p150
      $region30: #{rep_synthesizer_forward.2} parent=11 // pred_check_branch
        %336 = sbr.rel (%p334) target = $region32
      $region31: #{rep_synthesizer_forward.2} parent=11 // pred_region
        _
      $region32: #{rep_synthesizer_forward.2} parent=11 // pred_fallthru
        _
      // Predicated region
      $region33: #{rep_synthesizer_forward.2} parent=11 // pred_check
        %p337 = pneg %p171
      $region34: #{rep_synthesizer_forward.2} parent=11 // pred_check_branch
        %339 = sbr.rel (%p337) target = $region36
      $region35: #{rep_synthesizer_forward.2} parent=11 // pred_region
        _
      $region36: #{rep_synthesizer_forward.2} parent=11 // pred_fallthru
        _
      // Predicated region
      $region37: #{rep_synthesizer_forward.2} parent=11 // pred_check
        %p340 = pneg %p192
      $region38: #{rep_synthesizer_forward.2} parent=11 // pred_check_branch
        %342 = sbr.rel (%p340) target = $region40
      $region39: #{rep_synthesizer_forward.2} parent=11 // pred_region
        _
      $region40: #{rep_synthesizer_forward.2} parent=11 // pred_fallthru
        _
      // Predicated region
      $region41: #{rep_synthesizer_forward.2} parent=11 // pred_check
        %p343 = pneg %p213
      $region42: #{rep_synthesizer_forward.2} parent=11 // pred_check_branch
        %345 = sbr.rel (%p343) target = $region44
      $region43: #{rep_synthesizer_forward.2} parent=11 // pred_region
        _
      $region44: #{rep_synthesizer_forward.2} parent=11 // pred_fallthru
        _
      // Predicated region
      $region45: #{rep_synthesizer_forward.2} parent=11 // pred_check
        %p346 = pneg %p234
      $region46: #{rep_synthesizer_forward.2} parent=11 // pred_check_branch
        %348 = sbr.rel (%p346) target = $region48
      $region47: #{rep_synthesizer_forward.2} parent=11 // pred_region
        _
      $region48: #{rep_synthesizer_forward.2} parent=11 // pred_fallthru
        _
      // Predicated region
      $region49: #{rep_synthesizer_forward.2} parent=11 // pred_check
        %p349 = pneg %p255
      $region50: #{rep_synthesizer_forward.2} parent=11 // pred_check_branch
        %351 = sbr.rel (%p349) target = $region52
      $region51: #{rep_synthesizer_forward.2} parent=11 // pred_region
        _
      $region52: #{rep_synthesizer_forward.2} parent=11 // pred_fallthru
        _
    $region12: #{rep_synthesizer_forward.2} parent=5 // pred_fallthru
      _
    %p352 = scmp.lt.s32.totalorder %s19, 2
    // Predicated region
    $region53: #{rep_synthesizer_forward.2} parent=5 // pred_check
      %p353 = pneg %p352
    $region54: #{rep_synthesizer_forward.2} parent=5 // pred_check_branch
      %355 = sbr.rel (%p353) target = $region56
    $region55: #{rep_synthesizer_forward.2} parent=5 // pred_region
      // Predicated region
      $region57: #{rep_synthesizer_forward.2} parent=55 // pred_check
        %p356 = pneg %p39
      $region58: #{rep_synthesizer_forward.2} parent=55 // pred_check_branch
        %358 = sbr.rel (%p356) target = $region60
      $region59: #{rep_synthesizer_forward.2} parent=55 // pred_region
        %s359 = smul.u32 16, %s19
        %p360 = scmp.lt.s32.totalorder %s359, 31
        %s361 = scalar_select %p360, %s359, 31
        %s362 = smul.addr %s361, 4
        %s363 = scalar_lea.vmem %s0, %s362
        %s364 = smul.u32 16, %s19
      $region60: #{rep_synthesizer_forward.2} parent=55 // pred_fallthru
        _
    $region56: #{rep_synthesizer_forward.2} parent=5 // pred_fallthru
      _
    %p365 = scmp.le.s32.totalorder 1, %s19
    %p366 = scmp.lt.s32.totalorder %s19, 3
    %p367 = pnand %p365, %p366
    %p368 = pneg %p367
    // Predicated region
    $region61: #{rep_synthesizer_forward.2} parent=5 // pred_check
      _
    $region62: #{rep_synthesizer_forward.2} parent=5 // pred_check_branch
      %370 = sbr.rel (%p367) target = $region64
    $region63: #{rep_synthesizer_forward.2} parent=5 // pred_region
      %s371 = ssub.s32 %s19, 1
      %s372 = smul.u32 16, %s24
      %p373 = scmp.lt.s32.totalorder %s372, 31
      %s374 = scalar_select %p373, %s372, 31
      %s375 = smul.addr %s374, 4
      %s376 = scalar_lea.vmem %s0, %s375
      %p377 = pneg %p45
      %p378 = pneg %p42
      %p379 = pneg %p66
      %p380 = pneg %p63
      %p381 = pneg %p87
      %p382 = pneg %p84
      %p383 = pneg %p108
      %p384 = pneg %p105
      %p385 = pneg %p129
      %p386 = pneg %p126
      %p387 = pneg %p150
      %p388 = pneg %p147
      %p389 = pneg %p171
      %p390 = pneg %p168
      %p391 = pneg %p192
      %p392 = pneg %p189
      %p393 = pneg %p213
      %p394 = pneg %p210
      %p395 = pneg %p234
      %p396 = pneg %p231
      %p397 = pneg %p255
      %p398 = pneg %p252
      %p399 = pneg %p281
      %p400 = pneg %p278
      %s401 = smul.u32 16, %s24
      %p402 = scmp.lt.s32.totalorder %s401, 31
      %s403 = scalar_select %p402, %s401, 31
      %s404 = smul.addr %s403, 4
      %s405 = scalar_lea.vmem %s11, %s404
      %p406 = pneg %p307
      %p407 = pneg %p304
      %p408 = scmp.lt.s32.totalorder %s24, 1
      %s409 = scalar_select %p408, %s24, 1
      %s410 = smul.addr %s409, 2
      %s411 = smul.addr %s410, 8
      %s412 = scalar_lea.vmem %s12, %s411
      %s413 = smul.u32 16, %s24
      %p414 = scmp.lt.s32.totalorder %s413, 31
      %s415 = scalar_select %p414, %s413, 31
      %s416 = smul.addr %s415, 4
      %s417 = scalar_lea.vmem %s0, %s416
      %s418 = smul.u32 16, %s24
      %s419 = smul.u32 16, %s24
      %p420 = scmp.lt.s32.totalorder %s419, 31
      %s421 = scalar_select %p420, %s419, 31
      %s422 = smul.addr %s421, 4
      %s423 = scalar_lea.vmem %s11, %s422
      %s424 = smul.u32 16, %s24
      %p425 = scmp.lt.s32.totalorder %s24, 1
      %s426 = scalar_select %p425, %s24, 1
      %s427 = smul.addr %s426, 2
      %s428 = smul.addr %s427, 8
      %s429 = scalar_lea.vmem %s12, %s428
      %v431 = vld [vmem:[%s417] sm:$0xf]
      %v432 = vld [vmem:[%s417 + $0x4] sm:$0xf]
      %v433 = vld [vmem:[%s417 + $0x8] sm:$0xf]
      %v434 = vld [vmem:[%s417 + $0xc] sm:$0xf]
      %v435 = vld [vmem:[%s417 + $0x10] sm:$0xf]
      %v436 = vld [vmem:[%s417 + $0x14] sm:$0xf]
      %v437 = vld [vmem:[%s417 + $0x18] sm:$0xf]
      %v438 = vld [vmem:[%s417 + $0x1c] sm:$0xf]
      %v439 = vld [vmem:[%s417 + $0x20] sm:$0xf]
      %v440 = vld [vmem:[%s417 + $0x24] sm:$0xf]
      %v441 = vld [vmem:[%s417 + $0x28] sm:$0xf]
      %v442 = vld [vmem:[%s417 + $0x2c] sm:$0xf]
      %v443 = vld [vmem:[%s417 + $0x30] sm:$0xf]
      %v444 = vld [vmem:[%s417 + $0x34] sm:$0xf]
      %v445 = vld [vmem:[%s417 + $0x38] sm:$0xf]
      %v446 = vld [vmem:[%s417 + $0x3c] sm:$0xf]
      %v447 = vld [vmem:[%s1] sm:$0xf]
      %v448 = vld [vmem:[%s1 + $0x4] sm:$0xf]
      %v449 = vld [vmem:[%s1 + $0x8] sm:$0xf]
      %v450 = vld [vmem:[%s1 + $0xc] sm:$0xf]
      %v451 = vld [vmem:[%s1 + $0x10] sm:$0xf]
      %v452 = vld [vmem:[%s1 + $0x14] sm:$0xf]
      %v453 = vld [vmem:[%s1 + $0x18] sm:$0xf]
      %v454 = vld [vmem:[%s1 + $0x1c] sm:$0xf]
      %v455 = vld [vmem:[%s1 + $0x20] sm:$0xf]
      %v456 = vld [vmem:[%s1 + $0x24] sm:$0xf]
      %v457 = vld [vmem:[%s1 + $0x28] sm:$0xf]
      %v458 = vld [vmem:[%s1 + $0x2c] sm:$0xf]
      %v459 = vld [vmem:[%s1 + $0x30] sm:$0xf]
      %v460 = vld [vmem:[%s1 + $0x34] sm:$0xf]
      %v461 = vld [vmem:[%s1 + $0x38] sm:$0xf]
      %v462 = vld [vmem:[%s1 + $0x3c] sm:$0xf]
      %v463 = vld [vmem:[%s2] sm:$0x1]
      %v465 = vlaneseq
      %v466 = vshrl.u32 %v465, 7
      %v467 = vsub.s32 0, %v466
      %v468 = vrot.slane %v463, %v467
      %v486 = vunpack.c.l.b16 %v431
      %v487 = vunpack.c.l.b16 %v432
      %v488 = vunpack.c.l.b16 %v433
      %v489 = vunpack.c.l.b16 %v434
      %v490 = vunpack.c.l.b16 %v435
      %v491 = vunpack.c.l.b16 %v436
      %v492 = vunpack.c.l.b16 %v437
      %v493 = vunpack.c.l.b16 %v438
      %v494 = vunpack.c.l.b16 %v439
      %v495 = vunpack.c.l.b16 %v440
      %v496 = vunpack.c.l.b16 %v441
      %v497 = vunpack.c.l.b16 %v442
      %v498 = vunpack.c.l.b16 %v443
      %v499 = vunpack.c.l.b16 %v444
      %v500 = vunpack.c.l.b16 %v445
      %v501 = vunpack.c.l.b16 %v446
      %v502 = vpack.c.b16 %v487, %v486
      %v503 = vpack.c.b16 %v489, %v488
      %v504 = vpack.c.b16 %v491, %v490
      %v505 = vpack.c.b16 %v493, %v492
      %v506 = vpack.c.b16 %v495, %v494
      %v507 = vpack.c.b16 %v497, %v496
      %v508 = vpack.c.b16 %v499, %v498
      %v509 = vpack.c.b16 %v501, %v500
      %v534 = vunpack.c.l.b16 %v447
      %v535 = vunpack.c.l.b16 %v448
      %v536 = vunpack.c.l.b16 %v449
      %v537 = vunpack.c.l.b16 %v450
      %v538 = vunpack.c.l.b16 %v451
      %v539 = vunpack.c.l.b16 %v452
      %v540 = vunpack.c.l.b16 %v453
      %v541 = vunpack.c.l.b16 %v454
      %v542 = vunpack.c.l.b16 %v455
      %v543 = vunpack.c.l.b16 %v456
      %v544 = vunpack.c.l.b16 %v457
      %v545 = vunpack.c.l.b16 %v458
      %v546 = vunpack.c.l.b16 %v459
      %v547 = vunpack.c.l.b16 %v460
      %v548 = vunpack.c.l.b16 %v461
      %v549 = vunpack.c.l.b16 %v462
      %v550 = vpack.c.b16 %v535, %v534
      %v551 = vpack.c.b16 %v537, %v536
      %v552 = vpack.c.b16 %v539, %v538
      %v553 = vpack.c.b16 %v541, %v540
      %v554 = vpack.c.b16 %v543, %v542
      %v555 = vpack.c.b16 %v545, %v544
      %v556 = vpack.c.b16 %v547, %v546
      %v557 = vpack.c.b16 %v549, %v548
      %566 = vmatprep.subr.bf16.mxu0 0
      %567 = vmatpush1.bf16.msra.mxu0 %v550
      %568 = vmatprep.subr.bf16.mxu0 0
      %569 = vmatpush1.bf16.msra.mxu0 %v551
      %570 = vmatprep.subr.bf16.mxu0 0
      %571 = vmatpush1.bf16.msra.mxu0 %v552
      %572 = vmatprep.subr.bf16.mxu0 0
      %573 = vmatpush1.bf16.msra.mxu0 %v553
      %574 = vmatprep.subr.bf16.mxu0 0
      %575 = vmatpush1.bf16.msra.mxu0 %v554
      %576 = vmatprep.subr.bf16.mxu0 0
      %577 = vmatpush1.bf16.msra.mxu0 %v555
      %578 = vmatprep.subr.bf16.mxu0 0
      %579 = vmatpush1.bf16.msra.mxu0 %v556
      %580 = vmatprep.subr.bf16.mxu0 0
      %581 = vmatpush1.bf16.msra.mxu0 %v557
      %582 = vmatprep.subr.bf16.mxu0 0
      %583 = vmatpush1.bf16.msra.mxu0 0
      %584 = vmatprep.subr.bf16.mxu0 0
      %585 = vmatpush1.bf16.msra.mxu0 0
      %586 = vmatprep.subr.bf16.mxu0 0
      %587 = vmatpush1.bf16.msra.mxu0 0
      %588 = vmatprep.subr.bf16.mxu0 0
      %589 = vmatpush1.bf16.msra.mxu0 0
      %590 = vmatprep.subr.bf16.mxu0 0
      %591 = vmatpush1.bf16.msra.mxu0 0
      %592 = vmatprep.subr.bf16.mxu0 0
      %593 = vmatpush1.bf16.msra.mxu0 0
      %594 = vmatprep.subr.bf16.mxu0 0
      %595 = vmatpush1.bf16.msra.mxu0 0
      %596 = vmatprep.subr.bf16.mxu0 0
      %597 = vmatpush1.bf16.msra.mxu0 0
      %598 = vmatprep.mubr.bf16.mxu0 0
      %599 = vmatmul.mubr.bf16.gmra.mrb[0].mxu0 %v502
      %v600 = vpop.f32.mrb[0].mxu0
      %v601 = vadd.f32 %v468, %v600
      %v602 = vpop.f32.mrb[0].mxu0
      %v603 = vpop.f32.mrb[0].mxu0
      %v604 = vadd.f32 %v468, %v603
      %v605 = vpop.f32.mrb[0].mxu0
      %606 = vmatprep.mubr.bf16.mxu0 0
      %607 = vmatmul.mubr.bf16.gmra.mrb[0].mxu0 %v503
      %v608 = vpop.f32.mrb[0].mxu0
      %v609 = vadd.f32 %v468, %v608
      %v610 = vpop.f32.mrb[0].mxu0
      %v611 = vpop.f32.mrb[0].mxu0
      %v612 = vadd.f32 %v468, %v611
      %v613 = vpop.f32.mrb[0].mxu0
      %614 = vmatprep.mubr.bf16.mxu0 0
      %615 = vmatmul.mubr.bf16.gmra.mrb[0].mxu0 %v504
      %v616 = vpop.f32.mrb[0].mxu0
      %v617 = vadd.f32 %v468, %v616
      %v618 = vpop.f32.mrb[0].mxu0
      %v619 = vpop.f32.mrb[0].mxu0
      %v620 = vadd.f32 %v468, %v619
      %v621 = vpop.f32.mrb[0].mxu0
      %622 = vmatprep.mubr.bf16.mxu0 0
      %623 = vmatmul.mubr.bf16.gmra.mrb[0].mxu0 %v505
      %v624 = vpop.f32.mrb[0].mxu0
      %v625 = vadd.f32 %v468, %v624
      %v626 = vpop.f32.mrb[0].mxu0
      %v627 = vpop.f32.mrb[0].mxu0
      %v628 = vadd.f32 %v468, %v627
      %v629 = vpop.f32.mrb[0].mxu0
      %630 = vmatprep.mubr.bf16.mxu0 0
      %631 = vmatmul.mubr.bf16.gmra.mrb[0].mxu0 %v506
      %v632 = vpop.f32.mrb[0].mxu0
      %v633 = vadd.f32 %v468, %v632
      %v634 = vpop.f32.mrb[0].mxu0
      %v635 = vpop.f32.mrb[0].mxu0
      %v636 = vadd.f32 %v468, %v635
      %v637 = vpop.f32.mrb[0].mxu0
      %638 = vmatprep.mubr.bf16.mxu0 0
      %639 = vmatmul.mubr.bf16.gmra.mrb[0].mxu0 %v507
      %v640 = vpop.f32.mrb[0].mxu0
      %v641 = vadd.f32 %v468, %v640
      %v642 = vpop.f32.mrb[0].mxu0
      %v643 = vpop.f32.mrb[0].mxu0
      %v644 = vadd.f32 %v468, %v643
      %v645 = vpop.f32.mrb[0].mxu0
      %646 = vmatprep.mubr.bf16.mxu0 0
      %647 = vmatmul.mubr.bf16.gmra.mrb[0].mxu0 %v508
      %v648 = vpop.f32.mrb[0].mxu0
      %v649 = vadd.f32 %v468, %v648
      %v650 = vpop.f32.mrb[0].mxu0
      %v651 = vpop.f32.mrb[0].mxu0
      %v652 = vadd.f32 %v468, %v651
      %v653 = vpop.f32.mrb[0].mxu0
      %654 = vmatprep.mubr.bf16.mxu0 0
      %655 = vmatmul.mubr.bf16.gmra.mrb[0].mxu0 %v509
      %v656 = vpop.f32.mrb[0].mxu0
      %v657 = vadd.f32 %v468, %v656
      %v658 = vpop.f32.mrb[0].mxu0
      %v659 = vpop.f32.mrb[0].mxu0
      %v660 = vadd.f32 %v468, %v659
      %v661 = vpop.f32.mrb[0].mxu0
      %662 = vdwg.mxu0
      %v663 = vmax.f32 %v601, 0.0
      %v664 = vmax.f32 %v604, 0.0
      %v665 = vmax.f32 %v609, 0.0
      %v666 = vmax.f32 %v612, 0.0
      %v667 = vmax.f32 %v617, 0.0
      %v668 = vmax.f32 %v620, 0.0
      %v669 = vmax.f32 %v625, 0.0
      %v670 = vmax.f32 %v628, 0.0
      %v671 = vmax.f32 %v633, 0.0
      %v672 = vmax.f32 %v636, 0.0
      %v673 = vmax.f32 %v641, 0.0
      %v674 = vmax.f32 %v644, 0.0
      %v675 = vmax.f32 %v649, 0.0
      %v676 = vmax.f32 %v652, 0.0
      %v677 = vmax.f32 %v657, 0.0
      %v678 = vmax.f32 %v660, 0.0
      %v679 = vpack.c.bf16 %v664, %v663
      %v680 = vpack.c.bf16 %v666, %v665
      %v681 = vpack.c.bf16 %v668, %v667
      %v682 = vpack.c.bf16 %v670, %v669
      %v683 = vpack.c.bf16 %v672, %v671
      %v684 = vpack.c.bf16 %v674, %v673
      %v685 = vpack.c.bf16 %v676, %v675
      %v686 = vpack.c.bf16 %v678, %v677
      %v687 = vld [vmem:[%s3] sm:$0xf]
      %v688 = vld [vmem:[%s3 + $0x4] sm:$0xf]
      %v689 = vld [vmem:[%s3 + $0x8] sm:$0xf]
      %v690 = vld [vmem:[%s3 + $0xc] sm:$0xf]
      %v691 = vld [vmem:[%s3 + $0x10] sm:$0xf]
      %v692 = vld [vmem:[%s3 + $0x14] sm:$0xf]
      %v693 = vld [vmem:[%s3 + $0x18] sm:$0xf]
      %v694 = vld [vmem:[%s3 + $0x1c] sm:$0xf]
      %v695 = vld [vmem:[%s3 + $0x20] sm:$0xf]
      %v696 = vld [vmem:[%s3 + $0x24] sm:$0xf]
      %v697 = vld [vmem:[%s3 + $0x28] sm:$0xf]
      %v698 = vld [vmem:[%s3 + $0x2c] sm:$0xf]
      %v699 = vld [vmem:[%s3 + $0x30] sm:$0xf]
      %v700 = vld [vmem:[%s3 + $0x34] sm:$0xf]
      %v701 = vld [vmem:[%s3 + $0x38] sm:$0xf]
      %v702 = vld [vmem:[%s3 + $0x3c] sm:$0xf]
      %v703 = vld [vmem:[%s4] sm:$0x1]
      %v705 = vlaneseq
      %v706 = vshrl.u32 %v705, 7
      %v707 = vsub.s32 0, %v706
      %v708 = vrot.slane %v703, %v707
      %v726 = vunpack.c.l.b16 %v687
      %v727 = vunpack.c.l.b16 %v688
      %v728 = vunpack.c.l.b16 %v689
      %v729 = vunpack.c.l.b16 %v690
      %v730 = vunpack.c.l.b16 %v691
      %v731 = vunpack.c.l.b16 %v692
      %v732 = vunpack.c.l.b16 %v693
      %v733 = vunpack.c.l.b16 %v694
      %v734 = vunpack.c.l.b16 %v695
      %v735 = vunpack.c.l.b16 %v696
      %v736 = vunpack.c.l.b16 %v697
      %v737 = vunpack.c.l.b16 %v698
      %v738 = vunpack.c.l.b16 %v699
      %v739 = vunpack.c.l.b16 %v700
      %v740 = vunpack.c.l.b16 %v701
      %v741 = vunpack.c.l.b16 %v702
      %v742 = vpack.c.b16 %v727, %v726
      %v743 = vpack.c.b16 %v729, %v728
      %v744 = vpack.c.b16 %v731, %v730
      %v745 = vpack.c.b16 %v733, %v732
      %v746 = vpack.c.b16 %v735, %v734
      %v747 = vpack.c.b16 %v737, %v736
      %v748 = vpack.c.b16 %v739, %v738
      %v749 = vpack.c.b16 %v741, %v740
      %758 = vmatprep.subr.bf16.mxu0 0
      %759 = vmatpush1.bf16.msra.mxu0 %v742
      %760 = vmatprep.subr.bf16.mxu0 0
      %761 = vmatpush1.bf16.msra.mxu0 %v743
      %762 = vmatprep.subr.bf16.mxu0 0
      %763 = vmatpush1.bf16.msra.mxu0 %v744
      %764 = vmatprep.subr.bf16.mxu0 0
      %765 = vmatpush1.bf16.msra.mxu0 %v745
      %766 = vmatprep.subr.bf16.mxu0 0
      %767 = vmatpush1.bf16.msra.mxu0 %v746
      %768 = vmatprep.subr.bf16.mxu0 0
      %769 = vmatpush1.bf16.msra.mxu0 %v747
      %770 = vmatprep.subr.bf16.mxu0 0
      %771 = vmatpush1.bf16.msra.mxu0 %v748
      %772 = vmatprep.subr.bf16.mxu0 0
      %773 = vmatpush1.bf16.msra.mxu0 %v749
      %774 = vmatprep.subr.bf16.mxu0 0
      %775 = vmatpush1.bf16.msra.mxu0 0
      %776 = vmatprep.subr.bf16.mxu0 0
      %777 = vmatpush1.bf16.msra.mxu0 0
      %778 = vmatprep.subr.bf16.mxu0 0
      %779 = vmatpush1.bf16.msra.mxu0 0
      %780 = vmatprep.subr.bf16.mxu0 0
      %781 = vmatpush1.bf16.msra.mxu0 0
      %782 = vmatprep.subr.bf16.mxu0 0
      %783 = vmatpush1.bf16.msra.mxu0 0
      %784 = vmatprep.subr.bf16.mxu0 0
      %785 = vmatpush1.bf16.msra.mxu0 0
      %786 = vmatprep.subr.bf16.mxu0 0
      %787 = vmatpush1.bf16.msra.mxu0 0
      %788 = vmatprep.subr.bf16.mxu0 0
      %789 = vmatpush1.bf16.msra.mxu0 0
      %790 = vmatprep.mubr.bf16.mxu0 0
      %791 = vmatmul.mubr.bf16.gmra.mrb[0].mxu0 %v679
      %v792 = vpop.f32.mrb[0].mxu0
      %v793 = vadd.f32 %v708, %v792
      %v794 = vpop.f32.mrb[0].mxu0
      %v795 = vpop.f32.mrb[0].mxu0
      %v796 = vadd.f32 %v708, %v795
      %v797 = vpop.f32.mrb[0].mxu0
      %798 = vmatprep.mubr.bf16.mxu0 0
      %799 = vmatmul.mubr.bf16.gmra.mrb[0].mxu0 %v680
      %v800 = vpop.f32.mrb[0].mxu0
      %v801 = vadd.f32 %v708, %v800
      %v802 = vpop.f32.mrb[0].mxu0
      %v803 = vpop.f32.mrb[0].mxu0
      %v804 = vadd.f32 %v708, %v803
      %v805 = vpop.f32.mrb[0].mxu0
      %806 = vmatprep.mubr.bf16.mxu0 0
      %807 = vmatmul.mubr.bf16.gmra.mrb[0].mxu0 %v681
      %v808 = vpop.f32.mrb[0].mxu0
      %v809 = vadd.f32 %v708, %v808
      %v810 = vpop.f32.mrb[0].mxu0
      %v811 = vpop.f32.mrb[0].mxu0
      %v812 = vadd.f32 %v708, %v811
      %v813 = vpop.f32.mrb[0].mxu0
      %814 = vmatprep.mubr.bf16.mxu0 0
      %815 = vmatmul.mubr.bf16.gmra.mrb[0].mxu0 %v682
      %v816 = vpop.f32.mrb[0].mxu0
      %v817 = vadd.f32 %v708, %v816
      %v818 = vpop.f32.mrb[0].mxu0
      %v819 = vpop.f32.mrb[0].mxu0
      %v820 = vadd.f32 %v708, %v819
      %v821 = vpop.f32.mrb[0].mxu0
      %822 = vmatprep.mubr.bf16.mxu0 0
      %823 = vmatmul.mubr.bf16.gmra.mrb[0].mxu0 %v683
      %v824 = vpop.f32.mrb[0].mxu0
      %v825 = vadd.f32 %v708, %v824
      %v826 = vpop.f32.mrb[0].mxu0
      %v827 = vpop.f32.mrb[0].mxu0
      %v828 = vadd.f32 %v708, %v827
      %v829 = vpop.f32.mrb[0].mxu0
      %830 = vmatprep.mubr.bf16.mxu0 0
      %831 = vmatmul.mubr.bf16.gmra.mrb[0].mxu0 %v684
      %v832 = vpop.f32.mrb[0].mxu0
      %v833 = vadd.f32 %v708, %v832
      %v834 = vpop.f32.mrb[0].mxu0
      %v835 = vpop.f32.mrb[0].mxu0
      %v836 = vadd.f32 %v708, %v835
      %v837 = vpop.f32.mrb[0].mxu0
      %838 = vmatprep.mubr.bf16.mxu0 0
      %839 = vmatmul.mubr.bf16.gmra.mrb[0].mxu0 %v685
      %v840 = vpop.f32.mrb[0].mxu0
      %v841 = vadd.f32 %v708, %v840
      %v842 = vpop.f32.mrb[0].mxu0
      %v843 = vpop.f32.mrb[0].mxu0
      %v844 = vadd.f32 %v708, %v843
      %v845 = vpop.f32.mrb[0].mxu0
      %846 = vmatprep.mubr.bf16.mxu0 0
      %847 = vmatmul.mubr.bf16.gmra.mrb[0].mxu0 %v686
      %v848 = vpop.f32.mrb[0].mxu0
      %v849 = vadd.f32 %v708, %v848
      %v850 = vpop.f32.mrb[0].mxu0
      %v851 = vpop.f32.mrb[0].mxu0
      %v852 = vadd.f32 %v708, %v851
      %v853 = vpop.f32.mrb[0].mxu0
      %854 = vdwg.mxu0
      %v855 = vmax.f32 %v793, 0.0
      %v856 = vmax.f32 %v796, 0.0
      %v857 = vmax.f32 %v801, 0.0
      %v858 = vmax.f32 %v804, 0.0
      %v859 = vmax.f32 %v809, 0.0
      %v860 = vmax.f32 %v812, 0.0
      %v861 = vmax.f32 %v817, 0.0
      %v862 = vmax.f32 %v820, 0.0
      %v863 = vmax.f32 %v825, 0.0
      %v864 = vmax.f32 %v828, 0.0
      %v865 = vmax.f32 %v833, 0.0
      %v866 = vmax.f32 %v836, 0.0
      %v867 = vmax.f32 %v841, 0.0
      %v868 = vmax.f32 %v844, 0.0
      %v869 = vmax.f32 %v849, 0.0
      %v870 = vmax.f32 %v852, 0.0
      %v871 = vpack.c.bf16 %v856, %v855
      %v872 = vpack.c.bf16 %v858, %v857
      %v873 = vpack.c.bf16 %v860, %v859
      %v874 = vpack.c.bf16 %v862, %v861
      %v875 = vpack.c.bf16 %v864, %v863
      %v876 = vpack.c.bf16 %v866, %v865
      %v877 = vpack.c.bf16 %v868, %v867
      %v878 = vpack.c.bf16 %v870, %v869
      %v879 = vld [vmem:[%s5] sm:$0xff]
      %v880 = vld [vmem:[%s5 + $0x8] sm:$0xff]
      %v881 = vld [vmem:[%s5 + $0x10] sm:$0xff]
      %v882 = vld [vmem:[%s5 + $0x18] sm:$0xff]
      %v883 = vld [vmem:[%s5 + $0x20] sm:$0xff]
      %v884 = vld [vmem:[%s5 + $0x28] sm:$0xff]
      %v885 = vld [vmem:[%s5 + $0x30] sm:$0xff]
      %v886 = vld [vmem:[%s5 + $0x38] sm:$0xff]
      %v887 = vld [vmem:[%s5 + $0x40] sm:$0xff]
      %v888 = vld [vmem:[%s5 + $0x48] sm:$0xff]
      %v889 = vld [vmem:[%s5 + $0x50] sm:$0xff]
      %v890 = vld [vmem:[%s5 + $0x58] sm:$0xff]
      %v891 = vld [vmem:[%s5 + $0x60] sm:$0xff]
      %v892 = vld [vmem:[%s5 + $0x68] sm:$0xff]
      %v893 = vld [vmem:[%s5 + $0x70] sm:$0xff]
      %v894 = vld [vmem:[%s5 + $0x78] sm:$0xff]
      %v895 = vld [vmem:[%s6] sm:$0x3]
      %v897 = vlaneseq
      %v898 = vshrl.u32 %v897, 7
      %v899 = vsub.s32 0, %v898
      %v900 = vrot.slane %v895, %v899
      %v901 = vlaneseq
      %v902 = vshrl.u32 %v901, 7
      %v903 = vsub.s32 1, %v902
      %v904 = vrot.slane %v895, %v903
      %v923 = vunpack.c.l.b16 %v879
      %v924 = vunpack.c.h.b16 %v879
      %v925 = vunpack.c.l.b16 %v880
      %v926 = vunpack.c.h.b16 %v880
      %v927 = vunpack.c.l.b16 %v881
      %v928 = vunpack.c.h.b16 %v881
      %v929 = vunpack.c.l.b16 %v882
      %v930 = vunpack.c.h.b16 %v882
      %v931 = vunpack.c.l.b16 %v883
      %v932 = vunpack.c.h.b16 %v883
      %v933 = vunpack.c.l.b16 %v884
      %v934 = vunpack.c.h.b16 %v884
      %v935 = vunpack.c.l.b16 %v885
      %v936 = vunpack.c.h.b16 %v885
      %v937 = vunpack.c.l.b16 %v886
      %v938 = vunpack.c.h.b16 %v886
      %v939 = vunpack.c.l.b16 %v887
      %v940 = vunpack.c.h.b16 %v887
      %v941 = vunpack.c.l.b16 %v888
      %v942 = vunpack.c.h.b16 %v888
      %v943 = vunpack.c.l.b16 %v889
      %v944 = vunpack.c.h.b16 %v889
      %v945 = vunpack.c.l.b16 %v890
      %v946 = vunpack.c.h.b16 %v890
      %v947 = vunpack.c.l.b16 %v891
      %v948 = vunpack.c.h.b16 %v891
      %v949 = vunpack.c.l.b16 %v892
      %v950 = vunpack.c.h.b16 %v892
      %v951 = vunpack.c.l.b16 %v893
      %v952 = vunpack.c.h.b16 %v893
      %v953 = vunpack.c.l.b16 %v894
      %v954 = vunpack.c.h.b16 %v894
      %v955 = vpack.c.b16 %v925, %v923
      %v956 = vpack.c.b16 %v926, %v924
      %v957 = vpack.c.b16 %v929, %v927
      %v958 = vpack.c.b16 %v930, %v928
      %v959 = vpack.c.b16 %v933, %v931
      %v960 = vpack.c.b16 %v934, %v932
      %v961 = vpack.c.b16 %v937, %v935
      %v962 = vpack.c.b16 %v938, %v936
      %v963 = vpack.c.b16 %v941, %v939
      %v964 = vpack.c.b16 %v942, %v940
      %v965 = vpack.c.b16 %v945, %v943
      %v966 = vpack.c.b16 %v946, %v944
      %v967 = vpack.c.b16 %v949, %v947
      %v968 = vpack.c.b16 %v950, %v948
      %v969 = vpack.c.b16 %v953, %v951
      %v970 = vpack.c.b16 %v954, %v952
      %987 = vmatprep.subr.bf16.mxu0 %v956
      %988 = vmatpush1.bf16.msra.mxu0 %v955
      %989 = vmatprep.subr.bf16.mxu0 %v958
      %990 = vmatpush1.bf16.msra.mxu0 %v957
      %991 = vmatprep.subr.bf16.mxu0 %v960
      %992 = vmatpush1.bf16.msra.mxu0 %v959
      %993 = vmatprep.subr.bf16.mxu0 %v962
      %994 = vmatpush1.bf16.msra.mxu0 %v961
      %995 = vmatprep.subr.bf16.mxu0 %v964
      %996 = vmatpush1.bf16.msra.mxu0 %v963
      %997 = vmatprep.subr.bf16.mxu0 %v966
      %998 = vmatpush1.bf16.msra.mxu0 %v965
      %999 = vmatprep.subr.bf16.mxu0 %v968
      %1000 = vmatpush1.bf16.msra.mxu0 %v967
      %1001 = vmatprep.subr.bf16.mxu0 %v970
      %1002 = vmatpush1.bf16.msra.mxu0 %v969
      %1003 = vmatprep.subr.bf16.mxu0 0
      %1004 = vmatpush1.bf16.msra.mxu0 0
      %1005 = vmatprep.subr.bf16.mxu0 0
      %1006 = vmatpush1.bf16.msra.mxu0 0
      %1007 = vmatprep.subr.bf16.mxu0 0
      %1008 = vmatpush1.bf16.msra.mxu0 0
      %1009 = vmatprep.subr.bf16.mxu0 0
      %1010 = vmatpush1.bf16.msra.mxu0 0
      %1011 = vmatprep.subr.bf16.mxu0 0
      %1012 = vmatpush1.bf16.msra.mxu0 0
      %1013 = vmatprep.subr.bf16.mxu0 0
      %1014 = vmatpush1.bf16.msra.mxu0 0
      %1015 = vmatprep.subr.bf16.mxu0 0
      %1016 = vmatpush1.bf16.msra.mxu0 0
      %1017 = vmatprep.subr.bf16.mxu0 0
      %1018 = vmatpush1.bf16.msra.mxu0 0
      %1019 = vmatprep.mubr.bf16.mxu0 0
      %1020 = vmatmul.mubr.bf16.gmra.mrb[0].mxu0 %v871
      %v1021 = vpop.f32.mrb[0].mxu0
      %v1022 = vadd.f32 %v900, %v1021
      %v1023 = vpop.f32.mrb[0].mxu0
      %v1024 = vadd.f32 %v904, %v1023
      %v1025 = vpop.f32.mrb[0].mxu0
      %v1026 = vadd.f32 %v900, %v1025
      %v1027 = vpop.f32.mrb[0].mxu0
      %v1028 = vadd.f32 %v904, %v1027
      %1029 = vmatprep.mubr.bf16.mxu0 0
      %1030 = vmatmul.mubr.bf16.gmra.mrb[0].mxu0 %v872
      %v1031 = vpop.f32.mrb[0].mxu0
      %v1032 = vadd.f32 %v900, %v1031
      %v1033 = vpop.f32.mrb[0].mxu0
      %v1034 = vadd.f32 %v904, %v1033
      %v1035 = vpop.f32.mrb[0].mxu0
      %v1036 = vadd.f32 %v900, %v1035
      %v1037 = vpop.f32.mrb[0].mxu0
      %v1038 = vadd.f32 %v904, %v1037
      %1039 = vmatprep.mubr.bf16.mxu0 0
      %1040 = vmatmul.mubr.bf16.gmra.mrb[0].mxu0 %v873
      %v1041 = vpop.f32.mrb[0].mxu0
      %v1042 = vadd.f32 %v900, %v1041
      %v1043 = vpop.f32.mrb[0].mxu0
      %v1044 = vadd.f32 %v904, %v1043
      %v1045 = vpop.f32.mrb[0].mxu0
      %v1046 = vadd.f32 %v900, %v1045
      %v1047 = vpop.f32.mrb[0].mxu0
      %v1048 = vadd.f32 %v904, %v1047
      %1049 = vmatprep.mubr.bf16.mxu0 0
      %1050 = vmatmul.mubr.bf16.gmra.mrb[0].mxu0 %v874
      %v1051 = vpop.f32.mrb[0].mxu0
      %v1052 = vadd.f32 %v900, %v1051
      %v1053 = vpop.f32.mrb[0].mxu0
      %v1054 = vadd.f32 %v904, %v1053
      %v1055 = vpop.f32.mrb[0].mxu0
      %v1056 = vadd.f32 %v900, %v1055
      %v1057 = vpop.f32.mrb[0].mxu0
      %v1058 = vadd.f32 %v904, %v1057
      %1059 = vmatprep.mubr.bf16.mxu0 0
      %1060 = vmatmul.mubr.bf16.gmra.mrb[0].mxu0 %v875
      %v1061 = vpop.f32.mrb[0].mxu0
      %v1062 = vadd.f32 %v900, %v1061
      %v1063 = vpop.f32.mrb[0].mxu0
      %v1064 = vadd.f32 %v904, %v1063
      %v1065 = vpop.f32.mrb[0].mxu0
      %v1066 = vadd.f32 %v900, %v1065
      %v1067 = vpop.f32.mrb[0].mxu0
      %v1068 = vadd.f32 %v904, %v1067
      %1069 = vmatprep.mubr.bf16.mxu0 0
      %1070 = vmatmul.mubr.bf16.gmra.mrb[0].mxu0 %v876
      %v1071 = vpop.f32.mrb[0].mxu0
      %v1072 = vadd.f32 %v900, %v1071
      %v1073 = vpop.f32.mrb[0].mxu0
      %v1074 = vadd.f32 %v904, %v1073
      %v1075 = vpop.f32.mrb[0].mxu0
      %v1076 = vadd.f32 %v900, %v1075
      %v1077 = vpop.f32.mrb[0].mxu0
      %v1078 = vadd.f32 %v904, %v1077
      %1079 = vmatprep.mubr.bf16.mxu0 0
      %1080 = vmatmul.mubr.bf16.gmra.mrb[0].mxu0 %v877
      %v1081 = vpop.f32.mrb[0].mxu0
      %v1082 = vadd.f32 %v900, %v1081
      %v1083 = vpop.f32.mrb[0].mxu0
      %v1084 = vadd.f32 %v904, %v1083
      %v1085 = vpop.f32.mrb[0].mxu0
      %v1086 = vadd.f32 %v900, %v1085
      %v1087 = vpop.f32.mrb[0].mxu0
      %v1088 = vadd.f32 %v904, %v1087
      %1089 = vmatprep.mubr.bf16.mxu0 0
      %1090 = vmatmul.mubr.bf16.gmra.mrb[0].mxu0 %v878
      %v1091 = vpop.f32.mrb[0].mxu0
      %v1092 = vadd.f32 %v900, %v1091
      %v1093 = vpop.f32.mrb[0].mxu0
      %v1094 = vadd.f32 %v904, %v1093
      %v1095 = vpop.f32.mrb[0].mxu0
      %v1096 = vadd.f32 %v900, %v1095
      %v1097 = vpop.f32.mrb[0].mxu0
      %v1098 = vadd.f32 %v904, %v1097
      %1099 = vdwg.mxu0
      %v1100 = vmax.f32 %v1022, 0.0
      %v1101 = vmax.f32 %v1026, 0.0
      %v1102 = vmax.f32 %v1032, 0.0
      %v1103 = vmax.f32 %v1036, 0.0
      %v1104 = vmax.f32 %v1042, 0.0
      %v1105 = vmax.f32 %v1046, 0.0
      %v1106 = vmax.f32 %v1052, 0.0
      %v1107 = vmax.f32 %v1056, 0.0
      %v1108 = vmax.f32 %v1062, 0.0
      %v1109 = vmax.f32 %v1066, 0.0
      %v1110 = vmax.f32 %v1072, 0.0
      %v1111 = vmax.f32 %v1076, 0.0
      %v1112 = vmax.f32 %v1082, 0.0
      %v1113 = vmax.f32 %v1086, 0.0
      %v1114 = vmax.f32 %v1092, 0.0
      %v1115 = vmax.f32 %v1096, 0.0
      %v1116 = vpack.c.bf16 %v1028, %v1024
      %v1117 = vpack.c.bf16 %v1038, %v1034
      %v1118 = vpack.c.bf16 %v1048, %v1044
      %v1119 = vpack.c.bf16 %v1058, %v1054
      %v1120 = vpack.c.bf16 %v1068, %v1064
      %v1121 = vpack.c.bf16 %v1078, %v1074
      %v1122 = vpack.c.bf16 %v1088, %v1084
      %v1123 = vpack.c.bf16 %v1098, %v1094
      %v1132 = vunpack.c.l.b16 %v1116
      %v1133 = vunpack.c.h.b16 %v1116
      %v1134 = vunpack.c.l.b16 %v1117
      %v1135 = vunpack.c.h.b16 %v1117
      %v1136 = vunpack.c.l.b16 %v1118
      %v1137 = vunpack.c.h.b16 %v1118
      %v1138 = vunpack.c.l.b16 %v1119
      %v1139 = vunpack.c.h.b16 %v1119
      %v1140 = vunpack.c.l.b16 %v1120
      %v1141 = vunpack.c.h.b16 %v1120
      %v1142 = vunpack.c.l.b16 %v1121
      %v1143 = vunpack.c.h.b16 %v1121
      %v1144 = vunpack.c.l.b16 %v1122
      %v1145 = vunpack.c.h.b16 %v1122
      %v1146 = vunpack.c.l.b16 %v1123
      %v1147 = vunpack.c.h.b16 %v1123
      %v1148 = vpack.c.b16 %v1132, %v1132
      %v1149 = vpack.c.b16 %v1133, %v1133
      %v1150 = vpack.c.b16 %v1134, %v1134
      %v1151 = vpack.c.b16 %v1135, %v1135
      %v1152 = vpack.c.b16 %v1136, %v1136
      %v1153 = vpack.c.b16 %v1137, %v1137
      %v1154 = vpack.c.b16 %v1138, %v1138
      %v1155 = vpack.c.b16 %v1139, %v1139
      %v1156 = vpack.c.b16 %v1140, %v1140
      %v1157 = vpack.c.b16 %v1141, %v1141
      %v1158 = vpack.c.b16 %v1142, %v1142
      %v1159 = vpack.c.b16 %v1143, %v1143
      %v1160 = vpack.c.b16 %v1144, %v1144
      %v1161 = vpack.c.b16 %v1145, %v1145
      %v1162 = vpack.c.b16 %v1146, %v1146
      %v1163 = vpack.c.b16 %v1147, %v1147
      %1180 = vst [vmem:[%s423] sm:$0xf] %v1148
      %1181 = vst [vmem:[%s423 + $0x4] sm:$0xf] %v1149
      %1182 = vst [vmem:[%s423 + $0x8] sm:$0xf] %v1150
      %1183 = vst [vmem:[%s423 + $0xc] sm:$0xf] %v1151
      %1184 = vst [vmem:[%s423 + $0x10] sm:$0xf] %v1152
      %1185 = vst [vmem:[%s423 + $0x14] sm:$0xf] %v1153
      %1186 = vst [vmem:[%s423 + $0x18] sm:$0xf] %v1154
      %1187 = vst [vmem:[%s423 + $0x1c] sm:$0xf] %v1155
      %1188 = vst [vmem:[%s423 + $0x20] sm:$0xf] %v1156
      %1189 = vst [vmem:[%s423 + $0x24] sm:$0xf] %v1157
      %1190 = vst [vmem:[%s423 + $0x28] sm:$0xf] %v1158
      %1191 = vst [vmem:[%s423 + $0x2c] sm:$0xf] %v1159
      %1192 = vst [vmem:[%s423 + $0x30] sm:$0xf] %v1160
      %1193 = vst [vmem:[%s423 + $0x34] sm:$0xf] %v1161
      %1194 = vst [vmem:[%s423 + $0x38] sm:$0xf] %v1162
      %1195 = vst [vmem:[%s423 + $0x3c] sm:$0xf] %v1163
      %v1196 = vpack.c.bf16 %v1101, %v1100
      %v1197 = vpack.c.bf16 %v1103, %v1102
      %v1198 = vpack.c.bf16 %v1105, %v1104
      %v1199 = vpack.c.bf16 %v1107, %v1106
      %v1200 = vpack.c.bf16 %v1109, %v1108
      %v1201 = vpack.c.bf16 %v1111, %v1110
      %v1202 = vpack.c.bf16 %v1113, %v1112
      %v1203 = vpack.c.bf16 %v1115, %v1114
      %v1204 = vld [vmem:[%s7] sm:$0xf]
      %v1205 = vld [vmem:[%s7 + $0x4] sm:$0xf]
      %v1206 = vld [vmem:[%s7 + $0x8] sm:$0xf]
      %v1207 = vld [vmem:[%s7 + $0xc] sm:$0xf]
      %v1208 = vld [vmem:[%s7 + $0x10] sm:$0xf]
      %v1209 = vld [vmem:[%s7 + $0x14] sm:$0xf]
      %v1210 = vld [vmem:[%s7 + $0x18] sm:$0xf]
      %v1211 = vld [vmem:[%s7 + $0x1c] sm:$0xf]
      %v1212 = vld [vmem:[%s7 + $0x20] sm:$0xf]
      %v1213 = vld [vmem:[%s7 + $0x24] sm:$0xf]
      %v1214 = vld [vmem:[%s7 + $0x28] sm:$0xf]
      %v1215 = vld [vmem:[%s7 + $0x2c] sm:$0xf]
      %v1216 = vld [vmem:[%s7 + $0x30] sm:$0xf]
      %v1217 = vld [vmem:[%s7 + $0x34] sm:$0xf]
      %v1218 = vld [vmem:[%s7 + $0x38] sm:$0xf]
      %v1219 = vld [vmem:[%s7 + $0x3c] sm:$0xf]
      %v1220 = vld [vmem:[%s8] sm:$0x1]
      %v1222 = vlaneseq
      %v1223 = vshrl.u32 %v1222, 7
      %v1224 = vsub.s32 0, %v1223
      %v1225 = vrot.slane %v1220, %v1224
      %v1243 = vunpack.c.l.b16 %v1204
      %v1244 = vunpack.c.l.b16 %v1205
      %v1245 = vunpack.c.l.b16 %v1206
      %v1246 = vunpack.c.l.b16 %v1207
      %v1247 = vunpack.c.l.b16 %v1208
      %v1248 = vunpack.c.l.b16 %v1209
      %v1249 = vunpack.c.l.b16 %v1210
      %v1250 = vunpack.c.l.b16 %v1211
      %v1251 = vunpack.c.l.b16 %v1212
      %v1252 = vunpack.c.l.b16 %v1213
      %v1253 = vunpack.c.l.b16 %v1214
      %v1254 = vunpack.c.l.b16 %v1215
      %v1255 = vunpack.c.l.b16 %v1216
      %v1256 = vunpack.c.l.b16 %v1217
      %v1257 = vunpack.c.l.b16 %v1218
      %v1258 = vunpack.c.l.b16 %v1219
      %v1259 = vpack.c.b16 %v1244, %v1243
      %v1260 = vpack.c.b16 %v1246, %v1245
      %v1261 = vpack.c.b16 %v1248, %v1247
      %v1262 = vpack.c.b16 %v1250, %v1249
      %v1263 = vpack.c.b16 %v1252, %v1251
      %v1264 = vpack.c.b16 %v1254, %v1253
      %v1265 = vpack.c.b16 %v1256, %v1255
      %v1266 = vpack.c.b16 %v1258, %v1257
      %1275 = vmatprep.subr.bf16.mxu0 0
      %1276 = vmatpush1.bf16.msra.mxu0 %v1259
      %1277 = vmatprep.subr.bf16.mxu0 0
      %1278 = vmatpush1.bf16.msra.mxu0 %v1260
      %1279 = vmatprep.subr.bf16.mxu0 0
      %1280 = vmatpush1.bf16.msra.mxu0 %v1261
      %1281 = vmatprep.subr.bf16.mxu0 0
      %1282 = vmatpush1.bf16.msra.mxu0 %v1262
      %1283 = vmatprep.subr.bf16.mxu0 0
      %1284 = vmatpush1.bf16.msra.mxu0 %v1263
      %1285 = vmatprep.subr.bf16.mxu0 0
      %1286 = vmatpush1.bf16.msra.mxu0 %v1264
      %1287 = vmatprep.subr.bf16.mxu0 0
      %1288 = vmatpush1.bf16.msra.mxu0 %v1265
      %1289 = vmatprep.subr.bf16.mxu0 0
      %1290 = vmatpush1.bf16.msra.mxu0 %v1266
      %1291 = vmatprep.subr.bf16.mxu0 0
      %1292 = vmatpush1.bf16.msra.mxu0 0
      %1293 = vmatprep.subr.bf16.mxu0 0
      %1294 = vmatpush1.bf16.msra.mxu0 0
      %1295 = vmatprep.subr.bf16.mxu0 0
      %1296 = vmatpush1.bf16.msra.mxu0 0
      %1297 = vmatprep.subr.bf16.mxu0 0
      %1298 = vmatpush1.bf16.msra.mxu0 0
      %1299 = vmatprep.subr.bf16.mxu0 0
      %1300 = vmatpush1.bf16.msra.mxu0 0
      %1301 = vmatprep.subr.bf16.mxu0 0
      %1302 = vmatpush1.bf16.msra.mxu0 0
      %1303 = vmatprep.subr.bf16.mxu0 0
      %1304 = vmatpush1.bf16.msra.mxu0 0
      %1305 = vmatprep.subr.bf16.mxu0 0
      %1306 = vmatpush1.bf16.msra.mxu0 0
      %1307 = vmatprep.mubr.bf16.mxu0 0
      %1308 = vmatmul.mubr.bf16.gmra.mrb[0].mxu0 %v1196
      %v1309 = vpop.f32.mrb[0].mxu0
      %v1310 = vadd.f32 %v1225, %v1309
      %v1311 = vpop.f32.mrb[0].mxu0
      %v1312 = vpop.f32.mrb[0].mxu0
      %v1313 = vadd.f32 %v1225, %v1312
      %v1314 = vpop.f32.mrb[0].mxu0
      %1315 = vmatprep.mubr.bf16.mxu0 0
      %1316 = vmatmul.mubr.bf16.gmra.mrb[0].mxu0 %v1197
      %v1317 = vpop.f32.mrb[0].mxu0
      %v1318 = vadd.f32 %v1225, %v1317
      %v1319 = vpop.f32.mrb[0].mxu0
      %v1320 = vpop.f32.mrb[0].mxu0
      %v1321 = vadd.f32 %v1225, %v1320
      %v1322 = vpop.f32.mrb[0].mxu0
      %1323 = vmatprep.mubr.bf16.mxu0 0
      %1324 = vmatmul.mubr.bf16.gmra.mrb[0].mxu0 %v1198
      %v1325 = vpop.f32.mrb[0].mxu0
      %v1326 = vadd.f32 %v1225, %v1325
      %v1327 = vpop.f32.mrb[0].mxu0
      %v1328 = vpop.f32.mrb[0].mxu0
      %v1329 = vadd.f32 %v1225, %v1328
      %v1330 = vpop.f32.mrb[0].mxu0
      %1331 = vmatprep.mubr.bf16.mxu0 0
      %1332 = vmatmul.mubr.bf16.gmra.mrb[0].mxu0 %v1199
      %v1333 = vpop.f32.mrb[0].mxu0
      %v1334 = vadd.f32 %v1225, %v1333
      %v1335 = vpop.f32.mrb[0].mxu0
      %v1336 = vpop.f32.mrb[0].mxu0
      %v1337 = vadd.f32 %v1225, %v1336
      %v1338 = vpop.f32.mrb[0].mxu0
      %1339 = vmatprep.mubr.bf16.mxu0 0
      %1340 = vmatmul.mubr.bf16.gmra.mrb[0].mxu0 %v1200
      %v1341 = vpop.f32.mrb[0].mxu0
      %v1342 = vadd.f32 %v1225, %v1341
      %v1343 = vpop.f32.mrb[0].mxu0
      %v1344 = vpop.f32.mrb[0].mxu0
      %v1345 = vadd.f32 %v1225, %v1344
      %v1346 = vpop.f32.mrb[0].mxu0
      %1347 = vmatprep.mubr.bf16.mxu0 0
      %1348 = vmatmul.mubr.bf16.gmra.mrb[0].mxu0 %v1201
      %v1349 = vpop.f32.mrb[0].mxu0
      %v1350 = vadd.f32 %v1225, %v1349
      %v1351 = vpop.f32.mrb[0].mxu0
      %v1352 = vpop.f32.mrb[0].mxu0
      %v1353 = vadd.f32 %v1225, %v1352
      %v1354 = vpop.f32.mrb[0].mxu0
      %1355 = vmatprep.mubr.bf16.mxu0 0
      %1356 = vmatmul.mubr.bf16.gmra.mrb[0].mxu0 %v1202
      %v1357 = vpop.f32.mrb[0].mxu0
      %v1358 = vadd.f32 %v1225, %v1357
      %v1359 = vpop.f32.mrb[0].mxu0
      %v1360 = vpop.f32.mrb[0].mxu0
      %v1361 = vadd.f32 %v1225, %v1360
      %v1362 = vpop.f32.mrb[0].mxu0
      %1363 = vmatprep.mubr.bf16.mxu0 0
      %1364 = vmatmul.mubr.bf16.gmra.mrb[0].mxu0 %v1203
      %v1365 = vpop.f32.mrb[0].mxu0
      %v1366 = vadd.f32 %v1225, %v1365
      %v1367 = vpop.f32.mrb[0].mxu0
      %v1368 = vpop.f32.mrb[0].mxu0
      %v1369 = vadd.f32 %v1225, %v1368
      %v1370 = vpop.f32.mrb[0].mxu0
      %1371 = vdwg.mxu0
      %v1372 = vmax.f32 %v1310, 0.0
      %v1373 = vmax.f32 %v1313, 0.0
      %v1374 = vmax.f32 %v1318, 0.0
      %v1375 = vmax.f32 %v1321, 0.0
      %v1376 = vmax.f32 %v1326, 0.0
      %v1377 = vmax.f32 %v1329, 0.0
      %v1378 = vmax.f32 %v1334, 0.0
      %v1379 = vmax.f32 %v1337, 0.0
      %v1380 = vmax.f32 %v1342, 0.0
      %v1381 = vmax.f32 %v1345, 0.0
      %v1382 = vmax.f32 %v1350, 0.0
      %v1383 = vmax.f32 %v1353, 0.0
      %v1384 = vmax.f32 %v1358, 0.0
      %v1385 = vmax.f32 %v1361, 0.0
      %v1386 = vmax.f32 %v1366, 0.0
      %v1387 = vmax.f32 %v1369, 0.0
      %v1388 = vpack.c.bf16 %v1373, %v1372
      %v1389 = vpack.c.bf16 %v1375, %v1374
      %v1390 = vpack.c.bf16 %v1377, %v1376
      %v1391 = vpack.c.bf16 %v1379, %v1378
      %v1392 = vpack.c.bf16 %v1381, %v1380
      %v1393 = vpack.c.bf16 %v1383, %v1382
      %v1394 = vpack.c.bf16 %v1385, %v1384
      %v1395 = vpack.c.bf16 %v1387, %v1386
      %v1396 = vld [vmem:[%s9] sm:$0xf]
      %v1397 = vld [vmem:[%s9 + $0x4] sm:$0xf]
      %v1398 = vld [vmem:[%s9 + $0x8] sm:$0xf]
      %v1399 = vld [vmem:[%s9 + $0xc] sm:$0xf]
      %v1400 = vld [vmem:[%s9 + $0x10] sm:$0xf]
      %v1401 = vld [vmem:[%s9 + $0x14] sm:$0xf]
      %v1402 = vld [vmem:[%s9 + $0x18] sm:$0xf]
      %v1403 = vld [vmem:[%s9 + $0x1c] sm:$0xf]
      %v1404 = vld [vmem:[%s9 + $0x20] sm:$0xf]
      %v1405 = vld [vmem:[%s9 + $0x24] sm:$0xf]
      %v1406 = vld [vmem:[%s9 + $0x28] sm:$0xf]
      %v1407 = vld [vmem:[%s9 + $0x2c] sm:$0xf]
      %v1408 = vld [vmem:[%s9 + $0x30] sm:$0xf]
      %v1409 = vld [vmem:[%s9 + $0x34] sm:$0xf]
      %v1410 = vld [vmem:[%s9 + $0x38] sm:$0xf]
      %v1411 = vld [vmem:[%s9 + $0x3c] sm:$0xf]
      %v1412 = vld [vmem:[%s10] sm:$0x1]
      %v1414 = vlaneseq
      %v1415 = vshrl.u32 %v1414, 7
      %v1416 = vsub.s32 0, %v1415
      %v1417 = vrot.slane %v1412, %v1416
      %v1435 = vunpack.c.l.b16 %v1396
      %v1436 = vunpack.c.l.b16 %v1397
      %v1437 = vunpack.c.l.b16 %v1398
      %v1438 = vunpack.c.l.b16 %v1399
      %v1439 = vunpack.c.l.b16 %v1400
      %v1440 = vunpack.c.l.b16 %v1401
      %v1441 = vunpack.c.l.b16 %v1402
      %v1442 = vunpack.c.l.b16 %v1403
      %v1443 = vunpack.c.l.b16 %v1404
      %v1444 = vunpack.c.l.b16 %v1405
      %v1445 = vunpack.c.l.b16 %v1406
      %v1446 = vunpack.c.l.b16 %v1407
      %v1447 = vunpack.c.l.b16 %v1408
      %v1448 = vunpack.c.l.b16 %v1409
      %v1449 = vunpack.c.l.b16 %v1410
      %v1450 = vunpack.c.l.b16 %v1411
      %v1451 = vpack.c.b16 %v1436, %v1435
      %v1452 = vpack.c.b16 %v1438, %v1437
      %v1453 = vpack.c.b16 %v1440, %v1439
      %v1454 = vpack.c.b16 %v1442, %v1441
      %v1455 = vpack.c.b16 %v1444, %v1443
      %v1456 = vpack.c.b16 %v1446, %v1445
      %v1457 = vpack.c.b16 %v1448, %v1447
      %v1458 = vpack.c.b16 %v1450, %v1449
      %1467 = vmatprep.subr.bf16.mxu0 0
      %1468 = vmatpush1.bf16.msra.mxu0 %v1451
      %1469 = vmatprep.subr.bf16.mxu0 0
      %1470 = vmatpush1.bf16.msra.mxu0 %v1452
      %1471 = vmatprep.subr.bf16.mxu0 0
      %1472 = vmatpush1.bf16.msra.mxu0 %v1453
      %1473 = vmatprep.subr.bf16.mxu0 0
      %1474 = vmatpush1.bf16.msra.mxu0 %v1454
      %1475 = vmatprep.subr.bf16.mxu0 0
      %1476 = vmatpush1.bf16.msra.mxu0 %v1455
      %1477 = vmatprep.subr.bf16.mxu0 0
      %1478 = vmatpush1.bf16.msra.mxu0 %v1456
      %1479 = vmatprep.subr.bf16.mxu0 0
      %1480 = vmatpush1.bf16.msra.mxu0 %v1457
      %1481 = vmatprep.subr.bf16.mxu0 0
      %1482 = vmatpush1.bf16.msra.mxu0 %v1458
      %1483 = vmatprep.subr.bf16.mxu0 0
      %1484 = vmatpush1.bf16.msra.mxu0 0
      %1485 = vmatprep.subr.bf16.mxu0 0
      %1486 = vmatpush1.bf16.msra.mxu0 0
      %1487 = vmatprep.subr.bf16.mxu0 0
      %1488 = vmatpush1.bf16.msra.mxu0 0
      %1489 = vmatprep.subr.bf16.mxu0 0
      %1490 = vmatpush1.bf16.msra.mxu0 0
      %1491 = vmatprep.subr.bf16.mxu0 0
      %1492 = vmatpush1.bf16.msra.mxu0 0
      %1493 = vmatprep.subr.bf16.mxu0 0
      %1494 = vmatpush1.bf16.msra.mxu0 0
      %1495 = vmatprep.subr.bf16.mxu0 0
      %1496 = vmatpush1.bf16.msra.mxu0 0
      %1497 = vmatprep.subr.bf16.mxu0 0
      %1498 = vmatpush1.bf16.msra.mxu0 0
      %1499 = vmatprep.mubr.bf16.mxu0 0
      %1500 = vmatmul.mubr.bf16.gmra.mrb[0].mxu0 %v1388
      %v1501 = vpop.f32.mrb[0].mxu0
      %v1502 = vadd.f32 %v1417, %v1501
      %v1503 = vpop.f32.mrb[0].mxu0
      %v1504 = vpop.f32.mrb[0].mxu0
      %v1505 = vadd.f32 %v1417, %v1504
      %v1506 = vpop.f32.mrb[0].mxu0
      %1507 = vmatprep.mubr.bf16.mxu0 0
      %1508 = vmatmul.mubr.bf16.gmra.mrb[0].mxu0 %v1389
      %v1509 = vpop.f32.mrb[0].mxu0
      %v1510 = vadd.f32 %v1417, %v1509
      %v1511 = vpop.f32.mrb[0].mxu0
      %v1512 = vpop.f32.mrb[0].mxu0
      %v1513 = vadd.f32 %v1417, %v1512
      %v1514 = vpop.f32.mrb[0].mxu0
      %1515 = vmatprep.mubr.bf16.mxu0 0
      %1516 = vmatmul.mubr.bf16.gmra.mrb[0].mxu0 %v1390
      %v1517 = vpop.f32.mrb[0].mxu0
      %v1518 = vadd.f32 %v1417, %v1517
      %v1519 = vpop.f32.mrb[0].mxu0
      %v1520 = vpop.f32.mrb[0].mxu0
      %v1521 = vadd.f32 %v1417, %v1520
      %v1522 = vpop.f32.mrb[0].mxu0
      %1523 = vmatprep.mubr.bf16.mxu0 0
      %1524 = vmatmul.mubr.bf16.gmra.mrb[0].mxu0 %v1391
      %v1525 = vpop.f32.mrb[0].mxu0
      %v1526 = vadd.f32 %v1417, %v1525
      %v1527 = vpop.f32.mrb[0].mxu0
      %v1528 = vpop.f32.mrb[0].mxu0
      %v1529 = vadd.f32 %v1417, %v1528
      %v1530 = vpop.f32.mrb[0].mxu0
      %1531 = vmatprep.mubr.bf16.mxu0 0
      %1532 = vmatmul.mubr.bf16.gmra.mrb[0].mxu0 %v1392
      %v1533 = vpop.f32.mrb[0].mxu0
      %v1534 = vadd.f32 %v1417, %v1533
      %v1535 = vpop.f32.mrb[0].mxu0
      %v1536 = vpop.f32.mrb[0].mxu0
      %v1537 = vadd.f32 %v1417, %v1536
      %v1538 = vpop.f32.mrb[0].mxu0
      %1539 = vmatprep.mubr.bf16.mxu0 0
      %1540 = vmatmul.mubr.bf16.gmra.mrb[0].mxu0 %v1393
      %v1541 = vpop.f32.mrb[0].mxu0
      %v1542 = vadd.f32 %v1417, %v1541
      %v1543 = vpop.f32.mrb[0].mxu0
      %v1544 = vpop.f32.mrb[0].mxu0
      %v1545 = vadd.f32 %v1417, %v1544
      %v1546 = vpop.f32.mrb[0].mxu0
      %1547 = vmatprep.mubr.bf16.mxu0 0
      %1548 = vmatmul.mubr.bf16.gmra.mrb[0].mxu0 %v1394
      %v1549 = vpop.f32.mrb[0].mxu0
      %v1550 = vadd.f32 %v1417, %v1549
      %v1551 = vpop.f32.mrb[0].mxu0
      %v1552 = vpop.f32.mrb[0].mxu0
      %v1553 = vadd.f32 %v1417, %v1552
      %v1554 = vpop.f32.mrb[0].mxu0
      %1555 = vmatprep.mubr.bf16.mxu0 0
      %1556 = vmatmul.mubr.bf16.gmra.mrb[0].mxu0 %v1395
      %v1557 = vpop.f32.mrb[0].mxu0
      %v1558 = vadd.f32 %v1417, %v1557
      %v1559 = vpop.f32.mrb[0].mxu0
      %v1560 = vpop.f32.mrb[0].mxu0
      %v1561 = vadd.f32 %v1417, %v1560
      %v1562 = vpop.f32.mrb[0].mxu0
      %1563 = vdwg.mxu0
      %v1564 = vmax.f32 %v1502, 0.0
      %v1565 = vmax.f32 %v1505, 0.0
      %v1566 = vmax.f32 %v1510, 0.0
      %v1567 = vmax.f32 %v1513, 0.0
      %v1568 = vmax.f32 %v1518, 0.0
      %v1569 = vmax.f32 %v1521, 0.0
      %v1570 = vmax.f32 %v1526, 0.0
      %v1571 = vmax.f32 %v1529, 0.0
      %v1572 = vmax.f32 %v1534, 0.0
      %v1573 = vmax.f32 %v1537, 0.0
      %v1574 = vmax.f32 %v1542, 0.0
      %v1575 = vmax.f32 %v1545, 0.0
      %v1576 = vmax.f32 %v1550, 0.0
      %v1577 = vmax.f32 %v1553, 0.0
      %v1578 = vmax.f32 %v1558, 0.0
      %v1579 = vmax.f32 %v1561, 0.0
      %s1580 = smul.u32 %s24, 128
      %v1581 = vlaneseq
      %v1582 = vand.u32 %v1581, 127
      %v1583 = vstv %s1580
      %v1584 = vadd.s32 %v1583, %v1582
      %v1585 = vlaneseq
      %v1586 = vshrl.u32 %v1585, 7
      %v1587 = vmul.u32 %v1586, 128
      %vm1588 = vcmp.ge.s32.totalorder %v1584, %v1587
      %v1589 = vadd.s32 %v1587, 128
      %vm1590 = vcmp.lt.s32.totalorder %v1584, %v1589
      %vm1591 = vmand %vm1588, %vm1590
      %v1592 = vsel %vm1591, 1, 0
      %v1593 = vcvt.s32.f32 %v1592
      %1594 = vmatprep.subr.mxu0 0.0
      %1595 = vmatpush1.msra.mxu0 %v1372
      %1596 = vmatprep.subr.mxu0 0.0
      %1597 = vmatpush1.msra.mxu0 %v1373
      %1598 = vmatprep.subr.mxu0 0.0
      %1599 = vmatpush1.msra.mxu0 %v1374
      %1600 = vmatprep.subr.mxu0 0.0
      %1601 = vmatpush1.msra.mxu0 %v1375
      %1602 = vmatprep.subr.mxu0 0.0
      %1603 = vmatpush1.msra.mxu0 %v1376
      %1604 = vmatprep.subr.mxu0 0.0
      %1605 = vmatpush1.msra.mxu0 %v1377
      %1606 = vmatprep.subr.mxu0 0.0
      %1607 = vmatpush1.msra.mxu0 %v1378
      %1608 = vmatprep.subr.mxu0 0.0
      %1609 = vmatpush1.msra.mxu0 %v1379
      %1610 = vmatprep.subr.mxu0 0.0
      %1611 = vmatpush1.msra.mxu0 %v1380
      %1612 = vmatprep.subr.mxu0 0.0
      %1613 = vmatpush1.msra.mxu0 %v1381
      %1614 = vmatprep.subr.mxu0 0.0
      %1615 = vmatpush1.msra.mxu0 %v1382
      %1616 = vmatprep.subr.mxu0 0.0
      %1617 = vmatpush1.msra.mxu0 %v1383
      %1618 = vmatprep.subr.mxu0 0.0
      %1619 = vmatpush1.msra.mxu0 %v1384
      %1620 = vmatprep.subr.mxu0 0.0
      %1621 = vmatpush1.msra.mxu0 %v1385
      %1622 = vmatprep.subr.mxu0 0.0
      %1623 = vmatpush1.msra.mxu0 %v1386
      %1624 = vmatprep.subr.mxu0 0.0
      %1625 = vmatpush1.msra.mxu0 %v1387
      %1626 = vmatprep.subr.mxu0 0.0
      %1627 = vmatpush1.msra.mxu0 0.0
      %1628 = vmatprep.subr.mxu0 0.0
      %1629 = vmatpush1.msra.mxu0 0.0
      %1630 = vmatprep.subr.mxu0 0.0
      %1631 = vmatpush1.msra.mxu0 0.0
      %1632 = vmatprep.subr.mxu0 0.0
      %1633 = vmatpush1.msra.mxu0 0.0
      %1634 = vmatprep.subr.mxu0 0.0
      %1635 = vmatpush1.msra.mxu0 0.0
      %1636 = vmatprep.subr.mxu0 0.0
      %1637 = vmatpush1.msra.mxu0 0.0
      %1638 = vmatprep.subr.mxu0 0.0
      %1639 = vmatpush1.msra.mxu0 0.0
      %1640 = vmatprep.subr.mxu0 0.0
      %1641 = vmatpush1.msra.mxu0 0.0
      %1642 = vmatprep.subr.mxu0 0.0
      %1643 = vmatpush1.msra.mxu0 0.0
      %1644 = vmatprep.subr.mxu0 0.0
      %1645 = vmatpush1.msra.mxu0 0.0
      %1646 = vmatprep.subr.mxu0 0.0
      %1647 = vmatpush1.msra.mxu0 0.0
      %1648 = vmatprep.subr.mxu0 0.0
      %1649 = vmatpush1.msra.mxu0 0.0
      %1650 = vmatprep.subr.mxu0 0.0
      %1651 = vmatpush1.msra.mxu0 0.0
      %1652 = vmatprep.subr.mxu0 0.0
      %1653 = vmatpush1.msra.mxu0 0.0
      %1654 = vmatprep.subr.mxu0 0.0
      %1655 = vmatpush1.msra.mxu0 0.0
      %1656 = vmatprep.subr.mxu0 0.0
      %1657 = vmatpush1.msra.mxu0 0.0
      %1658 = vmatprep.mubr.f32.mxu0 0.0
      %1659 = vmatmul.mubr.f32.gmra.mrb[0].mxu0 %v1593
      %v1660 = vpop.f32.mrb[0].mxu0
      %v1661 = vadd.f32 0.0, %v1660
      %v1662 = vpop.f32.mrb[0].mxu0
      %1663 = vdwg.mxu0
      %1664 = vst [vmem:[%s429] sm:$0xff] %v1661
      %1665 = vmatprep.subr.mxu0 0.0
      %1666 = vmatpush1.msra.mxu0 %v1564
      %1667 = vmatprep.subr.mxu0 0.0
      %1668 = vmatpush1.msra.mxu0 %v1565
      %1669 = vmatprep.subr.mxu0 0.0
      %1670 = vmatpush1.msra.mxu0 %v1566
      %1671 = vmatprep.subr.mxu0 0.0
      %1672 = vmatpush1.msra.mxu0 %v1567
      %1673 = vmatprep.subr.mxu0 0.0
      %1674 = vmatpush1.msra.mxu0 %v1568
      %1675 = vmatprep.subr.mxu0 0.0
      %1676 = vmatpush1.msra.mxu0 %v1569
      %1677 = vmatprep.subr.mxu0 0.0
      %1678 = vmatpush1.msra.mxu0 %v1570
      %1679 = vmatprep.subr.mxu0 0.0
      %1680 = vmatpush1.msra.mxu0 %v1571
      %1681 = vmatprep.subr.mxu0 0.0
      %1682 = vmatpush1.msra.mxu0 %v1572
      %1683 = vmatprep.subr.mxu0 0.0
      %1684 = vmatpush1.msra.mxu0 %v1573
      %1685 = vmatprep.subr.mxu0 0.0
      %1686 = vmatpush1.msra.mxu0 %v1574
      %1687 = vmatprep.subr.mxu0 0.0
      %1688 = vmatpush1.msra.mxu0 %v1575
      %1689 = vmatprep.subr.mxu0 0.0
      %1690 = vmatpush1.msra.mxu0 %v1576
      %1691 = vmatprep.subr.mxu0 0.0
      %1692 = vmatpush1.msra.mxu0 %v1577
      %1693 = vmatprep.subr.mxu0 0.0
      %1694 = vmatpush1.msra.mxu0 %v1578
      %1695 = vmatprep.subr.mxu0 0.0
      %1696 = vmatpush1.msra.mxu0 %v1579
      %1697 = vmatprep.subr.mxu0 0.0
      %1698 = vmatpush1.msra.mxu0 0.0
      %1699 = vmatprep.subr.mxu0 0.0
      %1700 = vmatpush1.msra.mxu0 0.0
      %1701 = vmatprep.subr.mxu0 0.0
      %1702 = vmatpush1.msra.mxu0 0.0
      %1703 = vmatprep.subr.mxu0 0.0
      %1704 = vmatpush1.msra.mxu0 0.0
      %1705 = vmatprep.subr.mxu0 0.0
      %1706 = vmatpush1.msra.mxu0 0.0
      %1707 = vmatprep.subr.mxu0 0.0
      %1708 = vmatpush1.msra.mxu0 0.0
      %1709 = vmatprep.subr.mxu0 0.0
      %1710 = vmatpush1.msra.mxu0 0.0
      %1711 = vmatprep.subr.mxu0 0.0
      %1712 = vmatpush1.msra.mxu0 0.0
      %1713 = vmatprep.subr.mxu0 0.0
      %1714 = vmatpush1.msra.mxu0 0.0
      %1715 = vmatprep.subr.mxu0 0.0
      %1716 = vmatpush1.msra.mxu0 0.0
      %1717 = vmatprep.subr.mxu0 0.0
      %1718 = vmatpush1.msra.mxu0 0.0
      %1719 = vmatprep.subr.mxu0 0.0
      %1720 = vmatpush1.msra.mxu0 0.0
      %1721 = vmatprep.subr.mxu0 0.0
      %1722 = vmatpush1.msra.mxu0 0.0
      %1723 = vmatprep.subr.mxu0 0.0
      %1724 = vmatpush1.msra.mxu0 0.0
      %1725 = vmatprep.subr.mxu0 0.0
      %1726 = vmatpush1.msra.mxu0 0.0
      %1727 = vmatprep.subr.mxu0 0.0
      %1728 = vmatpush1.msra.mxu0 0.0
      %1729 = vmatprep.mubr.f32.mxu0 0.0
      %1730 = vmatmul.mubr.f32.gmra.mrb[0].mxu0 %v1593
      %v1731 = vpop.f32.mrb[0].mxu0
      %v1732 = vadd.f32 0.0, %v1731
      %v1733 = vpop.f32.mrb[0].mxu0
      %1734 = vdwg.mxu0
      %1735 = vst [vmem:[%s429 + $0x8] sm:$0xff] %v1732
      %s1736 = smul.u32 16, %s24
      %p1737 = scmp.lt.s32.totalorder %s1736, 31
      %s1738 = scalar_select %p1737, %s1736, 31
      %s1739 = smul.addr %s1738, 4
      %s1740 = scalar_lea.vmem %s11, %s1739
      %p1741 = scmp.lt.s32.totalorder %s24, 1
      %s1742 = scalar_select %p1741, %s24, 1
      %s1743 = smul.addr %s1742, 2
      %s1744 = smul.addr %s1743, 8
      %s1745 = scalar_lea.vmem %s12, %s1744
      // Predicated region
      $region65: #{rep_synthesizer_forward.2} parent=63 // pred_check
        %p1746 = pneg %p278
      $region66: #{rep_synthesizer_forward.2} parent=63 // pred_check_branch
        %1748 = sbr.rel (%p1746) target = $region68
      $region67: #{rep_synthesizer_forward.2} parent=63 // pred_region
        %s1749 = smul.u32 16, %s24
      $region68: #{rep_synthesizer_forward.2} parent=63 // pred_fallthru
        _
      // Predicated region
      $region69: #{rep_synthesizer_forward.2} parent=63 // pred_check
        %p1750 = pneg %p304
      $region70: #{rep_synthesizer_forward.2} parent=63 // pred_check_branch
        %1752 = sbr.rel (%p1750) target = $region72
      $region71: #{rep_synthesizer_forward.2} parent=63 // pred_region
        _
      $region72: #{rep_synthesizer_forward.2} parent=63 // pred_fallthru
        _
    $region64: #{rep_synthesizer_forward.2} parent=5 // pred_fallthru
      _
    %p1753 = scmp.le.s32.totalorder 2, %s19
    // Predicated region
    $region73: #{rep_synthesizer_forward.2} parent=5 // pred_check
      %p1754 = pneg %p1753
    $region74: #{rep_synthesizer_forward.2} parent=5 // pred_check_branch
      %1756 = sbr.rel (%p1754) target = $region76
    $region75: #{rep_synthesizer_forward.2} parent=5 // pred_region
      %s1757 = ssub.s32 %s19, 2
      // Predicated region
      $region77: #{rep_synthesizer_forward.2} parent=75 // pred_check
        %p1758 = pneg %p284
      $region78: #{rep_synthesizer_forward.2} parent=75 // pred_check_branch
        %1760 = sbr.rel (%p1758) target = $region80
      $region79: #{rep_synthesizer_forward.2} parent=75 // pred_region
        %s1761 = smul.u32 16, %s25
        %p1762 = scmp.lt.s32.totalorder %s1761, 31
        %s1763 = scalar_select %p1762, %s1761, 31
        %s1764 = smul.addr %s1763, 4
        %s1765 = scalar_lea.vmem %s11, %s1764
      $region80: #{rep_synthesizer_forward.2} parent=75 // pred_fallthru
        _
      // Predicated region
      $region81: #{rep_synthesizer_forward.2} parent=75 // pred_check
        %p1766 = pneg %p310
      $region82: #{rep_synthesizer_forward.2} parent=75 // pred_check_branch
        %1768 = sbr.rel (%p1766) target = $region84
      $region83: #{rep_synthesizer_forward.2} parent=75 // pred_region
        %p1769 = scmp.lt.s32.totalorder %s25, 1
        %s1770 = scalar_select %p1769, %s25, 1
        %s1771 = smul.addr %s1770, 2
        %s1772 = smul.addr %s1771, 8
        %s1773 = scalar_lea.vmem %s12, %s1772
      $region84: #{rep_synthesizer_forward.2} parent=75 // pred_fallthru
        _
    $region76: #{rep_synthesizer_forward.2} parent=5 // pred_fallthru
      _
  $region6: #{rep_synthesizer_forward.2} parent=0 // loop_footer
    %s23 = sadd.s32 1, %s19
  $region7: #{rep_synthesizer_forward.2} parent=0 // loop_footer_branch
    %18 = sbr.rel target = $region3
  $region8: #{rep_synthesizer_forward.2} parent=0 // loop_exit
    _

// kernel: rep_synthesizer_forward.3
$region0: #{rep_synthesizer_forward.3}
  #allocation0 [shape = 'u32[]', space=smem, size = 0x4, offset = 0x4, fixed_abs, tag = 'smem constant byte address 0x4 - core index']
  #allocation1 [shape = 'u32[144,128]{1,0:T(1,128)}', space=vmem, size = 0x12000, scoped, tag = 'internal scratch']
  %s0 = inlined_call_operand.vmem [shape: bf16[256,128], index: 0, kind: input, shape index: {}]
  %s1 = inlined_call_operand.vmem [shape: f32[8,128], index: 1, kind: input, shape index: {}]
  %s2 = inlined_call_operand.vmem [shape: bf16[128,128], index: 2, kind: input, shape index: {}]
  %s3 = inlined_call_operand.vmem [shape: bf16[128,128], index: 3, kind: input, shape index: {}]
  %s4 = inlined_call_operand.vmem [shape: f32[1,128], index: 4, kind: input, shape index: {}]
  %s5 = inlined_call_operand.vmem [shape: bf16[256,128], index: 5, kind: output, shape index: {}]
  %s6 = sld [smem:[#allocation0]]
  $region53: #{rep_synthesizer_forward.3} parent=0
    _
  %s8 = ssub.s32 1, %s6
  %s9 = scalar_select 0, %s8, %s6
  loop: start=0, step=1, limit=4
  $region2: #{rep_synthesizer_forward.3} parent=0 // loop_pre_header
    _
  $region3: #{rep_synthesizer_forward.3} parent=0 // loop_header
    %s11 = sphi 0, %s15
    %p12 = scmp.ge.s32.totalorder %s11, 4
    %s21 = sphi 0, %s23
    %s24 = sphi 0, %s21
    %s25 = sphi 0, %s24
    %s41 = sphi 0, %s25
    %s45 = sphi 0, %s45
    %s47 = sphi 0, %s45
    %s48 = sphi 0, %s47
    %s62 = sphi 0, %s48
    %s66 = sphi 0, %s66
    %s68 = sphi 0, %s66
    %s69 = sphi 0, %s68
    %s83 = sphi 0, %s69
    %s87 = sphi 0, %s87
    %s89 = sphi 0, %s87
    %s90 = sphi 0, %s89
    %s104 = sphi 0, %s90
    %s108 = sphi 0, %s108
    %s110 = sphi 0, %s108
    %s111 = sphi 0, %s110
    %s125 = sphi 0, %s111
    %s131 = sphi 0, %s133
    %s134 = sphi 0, %s131
    %s135 = sphi 0, %s134
    %s151 = sphi 0, %s135
  $region4: #{rep_synthesizer_forward.3} parent=0 // loop_header_branch
    %14 = sbr.rel (%p12) target = $region8
  $region5: #{rep_synthesizer_forward.3} parent=0 // loop_body
    %s16 = ssub.s32 %s11, 1
    %s17 = ssub.s32 %s11, 2
    %s18 = sadd.s32 %s11, 1
    %s19 = ssub.s32 %s11, %s18
    %p20 = scmp.eq.s32.totalorder %s19, 0
    %s22 = sadd.s32 %s21, 1
    %s23 = scalar_select %p20, %s21, %s22
    %p26 = pneg %p20
    %p27 = scmp.eq.s32.totalorder %s11, 1
    %p28 = por %p26, %p27
    %p29 = scmp.ne.s32.totalorder %s21, %s24
    %p30 = scmp.eq.s32.totalorder %s11, 0
    %p31 = por %p29, %p30
    %p32 = scmp.ne.s32.totalorder %s21, %s24
    %p33 = scmp.eq.s32.totalorder %s16, 1
    %p34 = por %p32, %p33
    %p35 = scmp.ne.s32.totalorder %s24, %s25
    %p36 = scmp.eq.s32.totalorder %s16, 0
    %p37 = por %p35, %p36
    %p38 = scmp.ne.s32.totalorder %s24, %s25
    %p39 = scmp.eq.s32.totalorder %s17, 1
    %p40 = por %p38, %p39
    %p42 = scmp.ne.s32.totalorder %s25, %s41
    %p43 = scmp.eq.s32.totalorder %s17, 0
    %p44 = por %p42, %p43
    %s46 = sadd.s32 %s45, 1
    %p49 = scmp.eq.s32.totalorder %s11, 1
    %p50 = scmp.ne.s32.totalorder %s45, %s47
    %p51 = scmp.eq.s32.totalorder %s11, 0
    %p52 = por %p50, %p51
    %p53 = scmp.ne.s32.totalorder %s45, %s47
    %p54 = scmp.eq.s32.totalorder %s16, 1
    %p55 = por %p53, %p54
    %p56 = scmp.ne.s32.totalorder %s47, %s48
    %p57 = scmp.eq.s32.totalorder %s16, 0
    %p58 = por %p56, %p57
    %p59 = scmp.ne.s32.totalorder %s47, %s48
    %p60 = scmp.eq.s32.totalorder %s17, 1
    %p61 = por %p59, %p60
    %p63 = scmp.ne.s32.totalorder %s48, %s62
    %p64 = scmp.eq.s32.totalorder %s17, 0
    %p65 = por %p63, %p64
    %s67 = sadd.s32 %s66, 1
    %p70 = scmp.eq.s32.totalorder %s11, 1
    %p71 = scmp.ne.s32.totalorder %s66, %s68
    %p72 = scmp.eq.s32.totalorder %s11, 0
    %p73 = por %p71, %p72
    %p74 = scmp.ne.s32.totalorder %s66, %s68
    %p75 = scmp.eq.s32.totalorder %s16, 1
    %p76 = por %p74, %p75
    %p77 = scmp.ne.s32.totalorder %s68, %s69
    %p78 = scmp.eq.s32.totalorder %s16, 0
    %p79 = por %p77, %p78
    %p80 = scmp.ne.s32.totalorder %s68, %s69
    %p81 = scmp.eq.s32.totalorder %s17, 1
    %p82 = por %p80, %p81
    %p84 = scmp.ne.s32.totalorder %s69, %s83
    %p85 = scmp.eq.s32.totalorder %s17, 0
    %p86 = por %p84, %p85
    %s88 = sadd.s32 %s87, 1
    %p91 = scmp.eq.s32.totalorder %s11, 1
    %p92 = scmp.ne.s32.totalorder %s87, %s89
    %p93 = scmp.eq.s32.totalorder %s11, 0
    %p94 = por %p92, %p93
    %p95 = scmp.ne.s32.totalorder %s87, %s89
    %p96 = scmp.eq.s32.totalorder %s16, 1
    %p97 = por %p95, %p96
    %p98 = scmp.ne.s32.totalorder %s89, %s90
    %p99 = scmp.eq.s32.totalorder %s16, 0
    %p100 = por %p98, %p99
    %p101 = scmp.ne.s32.totalorder %s89, %s90
    %p102 = scmp.eq.s32.totalorder %s17, 1
    %p103 = por %p101, %p102
    %p105 = scmp.ne.s32.totalorder %s90, %s104
    %p106 = scmp.eq.s32.totalorder %s17, 0
    %p107 = por %p105, %p106
    %s109 = sadd.s32 %s108, 1
    %p112 = scmp.eq.s32.totalorder %s11, 1
    %p113 = scmp.ne.s32.totalorder %s108, %s110
    %p114 = scmp.eq.s32.totalorder %s11, 0
    %p115 = por %p113, %p114
    %p116 = scmp.ne.s32.totalorder %s108, %s110
    %p117 = scmp.eq.s32.totalorder %s16, 1
    %p118 = por %p116, %p117
    %p119 = scmp.ne.s32.totalorder %s110, %s111
    %p120 = scmp.eq.s32.totalorder %s16, 0
    %p121 = por %p119, %p120
    %p122 = scmp.ne.s32.totalorder %s110, %s111
    %p123 = scmp.eq.s32.totalorder %s17, 1
    %p124 = por %p122, %p123
    %p126 = scmp.ne.s32.totalorder %s111, %s125
    %p127 = scmp.eq.s32.totalorder %s17, 0
    %p128 = por %p126, %p127
    %s129 = ssub.s32 %s11, %s18
    %p130 = scmp.eq.s32.totalorder %s129, 0
    %s132 = sadd.s32 %s131, 1
    %s133 = scalar_select %p130, %s131, %s132
    %p136 = pneg %p130
    %p137 = scmp.eq.s32.totalorder %s11, 1
    %p138 = por %p136, %p137
    %p139 = scmp.ne.s32.totalorder %s131, %s134
    %p140 = scmp.eq.s32.totalorder %s11, 0
    %p141 = por %p139, %p140
    %p142 = scmp.ne.s32.totalorder %s131, %s134
    %p143 = scmp.eq.s32.totalorder %s16, 1
    %p144 = por %p142, %p143
    %p145 = scmp.ne.s32.totalorder %s134, %s135
    %p146 = scmp.eq.s32.totalorder %s16, 0
    %p147 = por %p145, %p146
    %p148 = scmp.ne.s32.totalorder %s134, %s135
    %p149 = scmp.eq.s32.totalorder %s17, 1
    %p150 = por %p148, %p149
    %p152 = scmp.ne.s32.totalorder %s135, %s151
    %p153 = scmp.eq.s32.totalorder %s17, 0
    %p154 = por %p152, %p153
    %p155 = scmp.le.s32.totalorder 1, %s11
    %p156 = scmp.lt.s32.totalorder %s11, 3
    %p157 = pnand %p155, %p156
    %p158 = pneg %p157
    // Predicated region
    $region9: #{rep_synthesizer_forward.3} parent=5 // pred_check
      _
    $region10: #{rep_synthesizer_forward.3} parent=5 // pred_check_branch
      %160 = sbr.rel (%p157) target = $region12
    $region11: #{rep_synthesizer_forward.3} parent=5 // pred_region
      %s161 = ssub.s32 %s11, 1
      // Predicated region
      $region13: #{rep_synthesizer_forward.3} parent=11 // pred_check
        %p162 = pneg %p58
      $region14: #{rep_synthesizer_forward.3} parent=11 // pred_check_branch
        %164 = sbr.rel (%p162) target = $region16
      $region15: #{rep_synthesizer_forward.3} parent=11 // pred_region
        _
      $region16: #{rep_synthesizer_forward.3} parent=11 // pred_fallthru
        _
      // Predicated region
      $region17: #{rep_synthesizer_forward.3} parent=11 // pred_check
        %p165 = pneg %p79
      $region18: #{rep_synthesizer_forward.3} parent=11 // pred_check_branch
        %167 = sbr.rel (%p165) target = $region20
      $region19: #{rep_synthesizer_forward.3} parent=11 // pred_region
        _
      $region20: #{rep_synthesizer_forward.3} parent=11 // pred_fallthru
        _
      // Predicated region
      $region21: #{rep_synthesizer_forward.3} parent=11 // pred_check
        %p168 = pneg %p100
      $region22: #{rep_synthesizer_forward.3} parent=11 // pred_check_branch
        %170 = sbr.rel (%p168) target = $region24
      $region23: #{rep_synthesizer_forward.3} parent=11 // pred_region
        _
      $region24: #{rep_synthesizer_forward.3} parent=11 // pred_fallthru
        _
      // Predicated region
      $region25: #{rep_synthesizer_forward.3} parent=11 // pred_check
        %p171 = pneg %p121
      $region26: #{rep_synthesizer_forward.3} parent=11 // pred_check_branch
        %173 = sbr.rel (%p171) target = $region28
      $region27: #{rep_synthesizer_forward.3} parent=11 // pred_region
        _
      $region28: #{rep_synthesizer_forward.3} parent=11 // pred_fallthru
        _
    $region12: #{rep_synthesizer_forward.3} parent=5 // pred_fallthru
      _
    %p174 = scmp.lt.s32.totalorder %s11, 2
    // Predicated region
    $region29: #{rep_synthesizer_forward.3} parent=5 // pred_check
      %p175 = pneg %p174
    $region30: #{rep_synthesizer_forward.3} parent=5 // pred_check_branch
      %177 = sbr.rel (%p175) target = $region32
    $region31: #{rep_synthesizer_forward.3} parent=5 // pred_region
      // Predicated region
      $region33: #{rep_synthesizer_forward.3} parent=31 // pred_check
        %p178 = pneg %p31
      $region34: #{rep_synthesizer_forward.3} parent=31 // pred_check_branch
        %180 = sbr.rel (%p178) target = $region36
      $region35: #{rep_synthesizer_forward.3} parent=31 // pred_region
        %s181 = smul.u32 16, %s11
        %p182 = scmp.lt.s32.totalorder %s181, 31
        %s183 = scalar_select %p182, %s181, 31
        %s184 = smul.addr %s183, 4
        %s185 = scalar_lea.vmem %s0, %s184
        %s186 = smul.u32 16, %s11
      $region36: #{rep_synthesizer_forward.3} parent=31 // pred_fallthru
        _
    $region32: #{rep_synthesizer_forward.3} parent=5 // pred_fallthru
      _
    %p187 = scmp.le.s32.totalorder 1, %s11
    %p188 = scmp.lt.s32.totalorder %s11, 3
    %p189 = pnand %p187, %p188
    %p190 = pneg %p189
    // Predicated region
    $region37: #{rep_synthesizer_forward.3} parent=5 // pred_check
      _
    $region38: #{rep_synthesizer_forward.3} parent=5 // pred_check_branch
      %192 = sbr.rel (%p189) target = $region40
    $region39: #{rep_synthesizer_forward.3} parent=5 // pred_region
      %s193 = ssub.s32 %s11, 1
      %s194 = smul.u32 16, %s16
      %p195 = scmp.lt.s32.totalorder %s194, 31
      %s196 = scalar_select %p195, %s194, 31
      %s197 = smul.addr %s196, 4
      %s198 = scalar_lea.vmem %s0, %s197
      %p199 = pneg %p37
      %p200 = pneg %p34
      %p201 = pneg %p58
      %p202 = pneg %p55
      %p203 = pneg %p79
      %p204 = pneg %p76
      %p205 = pneg %p100
      %p206 = pneg %p97
      %p207 = pneg %p121
      %p208 = pneg %p118
      %p209 = pneg %p147
      %p210 = pneg %p144
      %s211 = smul.u32 16, %s16
      %p212 = scmp.lt.s32.totalorder %s211, 31
      %s213 = scalar_select %p212, %s211, 31
      %s214 = smul.addr %s213, 4
      %s215 = scalar_lea.vmem %s5, %s214
      %s216 = smul.u32 16, %s16
      %p217 = scmp.lt.s32.totalorder %s216, 31
      %s218 = scalar_select %p217, %s216, 31
      %s219 = smul.addr %s218, 4
      %s220 = scalar_lea.vmem %s0, %s219
      %s221 = smul.u32 16, %s16
      %s222 = smul.u32 16, %s16
      %p223 = scmp.lt.s32.totalorder %s222, 31
      %s224 = scalar_select %p223, %s222, 31
      %s225 = smul.addr %s224, 4
      %s226 = scalar_lea.vmem %s5, %s225
      %s227 = smul.u32 16, %s16
      %s229 = smul.u32 %s16, 128
      %v230 = vlaneseq
      %v231 = vshrl.u32 %v230, 7
      %v232 = vadd.s32 %v231, 8
      %v233 = vadd.s32 %v231, 16
      %v234 = vadd.s32 %v231, 24
      %v235 = vadd.s32 %v231, 32
      %v236 = vadd.s32 %v231, 40
      %v237 = vadd.s32 %v231, 48
      %v238 = vadd.s32 %v231, 56
      %v239 = vadd.s32 %v231, 64
      %v240 = vadd.s32 %v231, 72
      %v241 = vadd.s32 %v231, 80
      %v242 = vadd.s32 %v231, 88
      %v243 = vadd.s32 %v231, 96
      %v244 = vadd.s32 %v231, 104
      %v245 = vadd.s32 %v231, 112
      %v246 = vadd.s32 %v231, 120
      %v247 = vstv %s229
      %v248 = vadd.s32 %v247, %v231
      %v249 = vadd.s32 %v247, %v232
      %v250 = vadd.s32 %v247, %v233
      %v251 = vadd.s32 %v247, %v234
      %v252 = vadd.s32 %v247, %v235
      %v253 = vadd.s32 %v247, %v236
      %v254 = vadd.s32 %v247, %v237
      %v255 = vadd.s32 %v247, %v238
      %v256 = vadd.s32 %v247, %v239
      %v257 = vadd.s32 %v247, %v240
      %v258 = vadd.s32 %v247, %v241
      %v259 = vadd.s32 %v247, %v242
      %v260 = vadd.s32 %v247, %v243
      %v261 = vadd.s32 %v247, %v244
      %v262 = vadd.s32 %v247, %v245
      %v263 = vadd.s32 %v247, %v246
      %v264 = vlaneseq
      %v265 = vand.u32 %v264, 127
      %v266 = vmul.u32 %v265, 128
      %vm267 = vcmp.ge.s32.totalorder %v248, %v266
      %vm268 = vcmp.ge.s32.totalorder %v249, %v266
      %vm269 = vcmp.ge.s32.totalorder %v250, %v266
      %vm270 = vcmp.ge.s32.totalorder %v251, %v266
      %vm271 = vcmp.ge.s32.totalorder %v252, %v266
      %vm272 = vcmp.ge.s32.totalorder %v253, %v266
      %vm273 = vcmp.ge.s32.totalorder %v254, %v266
      %vm274 = vcmp.ge.s32.totalorder %v255, %v266
      %vm275 = vcmp.ge.s32.totalorder %v256, %v266
      %vm276 = vcmp.ge.s32.totalorder %v257, %v266
      %vm277 = vcmp.ge.s32.totalorder %v258, %v266
      %vm278 = vcmp.ge.s32.totalorder %v259, %v266
      %vm279 = vcmp.ge.s32.totalorder %v260, %v266
      %vm280 = vcmp.ge.s32.totalorder %v261, %v266
      %vm281 = vcmp.ge.s32.totalorder %v262, %v266
      %vm282 = vcmp.ge.s32.totalorder %v263, %v266
      %v283 = vadd.s32 %v266, 128
      %vm284 = vcmp.lt.s32.totalorder %v248, %v283
      %vm285 = vcmp.lt.s32.totalorder %v249, %v283
      %vm286 = vcmp.lt.s32.totalorder %v250, %v283
      %vm287 = vcmp.lt.s32.totalorder %v251, %v283
      %vm288 = vcmp.lt.s32.totalorder %v252, %v283
      %vm289 = vcmp.lt.s32.totalorder %v253, %v283
      %vm290 = vcmp.lt.s32.totalorder %v254, %v283
      %vm291 = vcmp.lt.s32.totalorder %v255, %v283
      %vm292 = vcmp.lt.s32.totalorder %v256, %v283
      %vm293 = vcmp.lt.s32.totalorder %v257, %v283
      %vm294 = vcmp.lt.s32.totalorder %v258, %v283
      %vm295 = vcmp.lt.s32.totalorder %v259, %v283
      %vm296 = vcmp.lt.s32.totalorder %v260, %v283
      %vm297 = vcmp.lt.s32.totalorder %v261, %v283
      %vm298 = vcmp.lt.s32.totalorder %v262, %v283
      %vm299 = vcmp.lt.s32.totalorder %v263, %v283
      %vm300 = vmand %vm267, %vm284
      %vm301 = vmand %vm268, %vm285
      %vm302 = vmand %vm269, %vm286
      %vm303 = vmand %vm270, %vm287
      %vm304 = vmand %vm271, %vm288
      %vm305 = vmand %vm272, %vm289
      %vm306 = vmand %vm273, %vm290
      %vm307 = vmand %vm274, %vm291
      %vm308 = vmand %vm275, %vm292
      %vm309 = vmand %vm276, %vm293
      %vm310 = vmand %vm277, %vm294
      %vm311 = vmand %vm278, %vm295
      %vm312 = vmand %vm279, %vm296
      %vm313 = vmand %vm280, %vm297
      %vm314 = vmand %vm281, %vm298
      %vm315 = vmand %vm282, %vm299
      %v316 = vsel %vm300, 1, 0
      %v317 = vsel %vm301, 1, 0
      %v318 = vsel %vm302, 1, 0
      %v319 = vsel %vm303, 1, 0
      %v320 = vsel %vm304, 1, 0
      %v321 = vsel %vm305, 1, 0
      %v322 = vsel %vm306, 1, 0
      %v323 = vsel %vm307, 1, 0
      %v324 = vsel %vm308, 1, 0
      %v325 = vsel %vm309, 1, 0
      %v326 = vsel %vm310, 1, 0
      %v327 = vsel %vm311, 1, 0
      %v328 = vsel %vm312, 1, 0
      %v329 = vsel %vm313, 1, 0
      %v330 = vsel %vm314, 1, 0
      %v331 = vsel %vm315, 1, 0
      %v332 = vcvt.s32.f32 %v316
      %v333 = vcvt.s32.f32 %v317
      %v334 = vcvt.s32.f32 %v318
      %v335 = vcvt.s32.f32 %v319
      %v336 = vcvt.s32.f32 %v320
      %v337 = vcvt.s32.f32 %v321
      %v338 = vcvt.s32.f32 %v322
      %v339 = vcvt.s32.f32 %v323
      %v340 = vcvt.s32.f32 %v324
      %v341 = vcvt.s32.f32 %v325
      %v342 = vcvt.s32.f32 %v326
      %v343 = vcvt.s32.f32 %v327
      %v344 = vcvt.s32.f32 %v328
      %v345 = vcvt.s32.f32 %v329
      %v346 = vcvt.s32.f32 %v330
      %v347 = vcvt.s32.f32 %v331
      %v348 = vld [vmem:[%s1] sm:$0xff]
      %vm349 = vcmask 64512
      %v351 = vsel %vm349, %v332, 0
      %v354 = vsel %vm349, %v333, 0
      %v357 = vsel %vm349, %v334, 0
      %v360 = vsel %vm349, %v335, 0
      %v363 = vsel %vm349, %v336, 0
      %v366 = vsel %vm349, %v337, 0
      %v369 = vsel %vm349, %v338, 0
      %v372 = vsel %vm349, %v339, 0
      %v375 = vsel %vm349, %v340, 0
      %v378 = vsel %vm349, %v341, 0
      %v381 = vsel %vm349, %v342, 0
      %v384 = vsel %vm349, %v343, 0
      %v387 = vsel %vm349, %v344, 0
      %v390 = vsel %vm349, %v345, 0
      %v393 = vsel %vm349, %v346, 0
      %v396 = vsel %vm349, %v347, 0
      %398 = vmatprep.subr.mxu0 0.0
      %399 = vmatpush1.msra.mxu0 %v348
      %400 = vmatprep.subr.mxu0 0.0
      %401 = vmatpush1.msra.mxu0 0.0
      %402 = vmatprep.subr.mxu0 0.0
      %403 = vmatpush1.msra.mxu0 0.0
      %404 = vmatprep.subr.mxu0 0.0
      %405 = vmatpush1.msra.mxu0 0.0
      %406 = vmatprep.subr.mxu0 0.0
      %407 = vmatpush1.msra.mxu0 0.0
      %408 = vmatprep.subr.mxu0 0.0
      %409 = vmatpush1.msra.mxu0 0.0
      %410 = vmatprep.subr.mxu0 0.0
      %411 = vmatpush1.msra.mxu0 0.0
      %412 = vmatprep.subr.mxu0 0.0
      %413 = vmatpush1.msra.mxu0 0.0
      %414 = vmatprep.subr.mxu0 0.0
      %415 = vmatpush1.msra.mxu0 0.0
      %416 = vmatprep.subr.mxu0 0.0
      %417 = vmatpush1.msra.mxu0 0.0
      %418 = vmatprep.subr.mxu0 0.0
      %419 = vmatpush1.msra.mxu0 0.0
      %420 = vmatprep.subr.mxu0 0.0
      %421 = vmatpush1.msra.mxu0 0.0
      %422 = vmatprep.subr.mxu0 0.0
      %423 = vmatpush1.msra.mxu0 0.0
      %424 = vmatprep.subr.mxu0 0.0
      %425 = vmatpush1.msra.mxu0 0.0
      %426 = vmatprep.subr.mxu0 0.0
      %427 = vmatpush1.msra.mxu0 0.0
      %428 = vmatprep.subr.mxu0 0.0
      %429 = vmatpush1.msra.mxu0 0.0
      %430 = vmatprep.subr.mxu0 0.0
      %431 = vmatpush1.msra.mxu0 0.0
      %432 = vmatprep.subr.mxu0 0.0
      %433 = vmatpush1.msra.mxu0 0.0
      %434 = vmatprep.subr.mxu0 0.0
      %435 = vmatpush1.msra.mxu0 0.0
      %436 = vmatprep.subr.mxu0 0.0
      %437 = vmatpush1.msra.mxu0 0.0
      %438 = vmatprep.subr.mxu0 0.0
      %439 = vmatpush1.msra.mxu0 0.0
      %440 = vmatprep.subr.mxu0 0.0
      %441 = vmatpush1.msra.mxu0 0.0
      %442 = vmatprep.subr.mxu0 0.0
      %443 = vmatpush1.msra.mxu0 0.0
      %444 = vmatprep.subr.mxu0 0.0
      %445 = vmatpush1.msra.mxu0 0.0
      %446 = vmatprep.subr.mxu0 0.0
      %447 = vmatpush1.msra.mxu0 0.0
      %448 = vmatprep.subr.mxu0 0.0
      %449 = vmatpush1.msra.mxu0 0.0
      %450 = vmatprep.subr.mxu0 0.0
      %451 = vmatpush1.msra.mxu0 0.0
      %452 = vmatprep.subr.mxu0 0.0
      %453 = vmatpush1.msra.mxu0 0.0
      %454 = vmatprep.subr.mxu0 0.0
      %455 = vmatpush1.msra.mxu0 0.0
      %456 = vmatprep.subr.mxu0 0.0
      %457 = vmatpush1.msra.mxu0 0.0
      %458 = vmatprep.subr.mxu0 0.0
      %459 = vmatpush1.msra.mxu0 0.0
      %460 = vmatprep.subr.mxu0 0.0
      %461 = vmatpush1.msra.mxu0 0.0
      %462 = vmatprep.mubr.f32.mxu0 0.0
      %463 = vmatmul.mubr.f32.gmra.mrb[0].mxu0 %v351
      %v464 = vpop.f32.mrb[0].mxu0
      %v465 = vadd.f32 0.0, %v464
      %v466 = vpop.f32.mrb[0].mxu0
      %467 = vmatprep.mubr.f32.mxu0 0.0
      %468 = vmatmul.mubr.f32.gmra.mrb[0].mxu0 %v354
      %v469 = vpop.f32.mrb[0].mxu0
      %v470 = vadd.f32 0.0, %v469
      %v471 = vpop.f32.mrb[0].mxu0
      %472 = vmatprep.mubr.f32.mxu0 0.0
      %473 = vmatmul.mubr.f32.gmra.mrb[0].mxu0 %v357
      %v474 = vpop.f32.mrb[0].mxu0
      %v475 = vadd.f32 0.0, %v474
      %v476 = vpop.f32.mrb[0].mxu0
      %477 = vmatprep.mubr.f32.mxu0 0.0
      %478 = vmatmul.mubr.f32.gmra.mrb[0].mxu0 %v360
      %v479 = vpop.f32.mrb[0].mxu0
      %v480 = vadd.f32 0.0, %v479
      %v481 = vpop.f32.mrb[0].mxu0
      %482 = vmatprep.mubr.f32.mxu0 0.0
      %483 = vmatmul.mubr.f32.gmra.mrb[0].mxu0 %v363
      %v484 = vpop.f32.mrb[0].mxu0
      %v485 = vadd.f32 0.0, %v484
      %v486 = vpop.f32.mrb[0].mxu0
      %487 = vmatprep.mubr.f32.mxu0 0.0
      %488 = vmatmul.mubr.f32.gmra.mrb[0].mxu0 %v366
      %v489 = vpop.f32.mrb[0].mxu0
      %v490 = vadd.f32 0.0, %v489
      %v491 = vpop.f32.mrb[0].mxu0
      %492 = vmatprep.mubr.f32.mxu0 0.0
      %493 = vmatmul.mubr.f32.gmra.mrb[0].mxu0 %v369
      %v494 = vpop.f32.mrb[0].mxu0
      %v495 = vadd.f32 0.0, %v494
      %v496 = vpop.f32.mrb[0].mxu0
      %497 = vmatprep.mubr.f32.mxu0 0.0
      %498 = vmatmul.mubr.f32.gmra.mrb[0].mxu0 %v372
      %v499 = vpop.f32.mrb[0].mxu0
      %v500 = vadd.f32 0.0, %v499
      %v501 = vpop.f32.mrb[0].mxu0
      %502 = vmatprep.mubr.f32.mxu0 0.0
      %503 = vmatmul.mubr.f32.gmra.mrb[0].mxu0 %v375
      %v504 = vpop.f32.mrb[0].mxu0
      %v505 = vadd.f32 0.0, %v504
      %v506 = vpop.f32.mrb[0].mxu0
      %507 = vmatprep.mubr.f32.mxu0 0.0
      %508 = vmatmul.mubr.f32.gmra.mrb[0].mxu0 %v378
      %v509 = vpop.f32.mrb[0].mxu0
      %v510 = vadd.f32 0.0, %v509
      %v511 = vpop.f32.mrb[0].mxu0
      %512 = vmatprep.mubr.f32.mxu0 0.0
      %513 = vmatmul.mubr.f32.gmra.mrb[0].mxu0 %v381
      %v514 = vpop.f32.mrb[0].mxu0
      %v515 = vadd.f32 0.0, %v514
      %v516 = vpop.f32.mrb[0].mxu0
      %517 = vmatprep.mubr.f32.mxu0 0.0
      %518 = vmatmul.mubr.f32.gmra.mrb[0].mxu0 %v384
      %v519 = vpop.f32.mrb[0].mxu0
      %v520 = vadd.f32 0.0, %v519
      %v521 = vpop.f32.mrb[0].mxu0
      %522 = vmatprep.mubr.f32.mxu0 0.0
      %523 = vmatmul.mubr.f32.gmra.mrb[0].mxu0 %v387
      %v524 = vpop.f32.mrb[0].mxu0
      %v525 = vadd.f32 0.0, %v524
      %v526 = vpop.f32.mrb[0].mxu0
      %527 = vmatprep.mubr.f32.mxu0 0.0
      %528 = vmatmul.mubr.f32.gmra.mrb[0].mxu0 %v390
      %v529 = vpop.f32.mrb[0].mxu0
      %v530 = vadd.f32 0.0, %v529
      %v531 = vpop.f32.mrb[0].mxu0
      %532 = vmatprep.mubr.f32.mxu0 0.0
      %533 = vmatmul.mubr.f32.gmra.mrb[0].mxu0 %v393
      %v534 = vpop.f32.mrb[0].mxu0
      %v535 = vadd.f32 0.0, %v534
      %v536 = vpop.f32.mrb[0].mxu0
      %537 = vmatprep.mubr.f32.mxu0 0.0
      %538 = vmatmul.mubr.f32.gmra.mrb[0].mxu0 %v396
      %v539 = vpop.f32.mrb[0].mxu0
      %v540 = vadd.f32 0.0, %v539
      %v541 = vpop.f32.mrb[0].mxu0
      %542 = vdwg.mxu0
      %v543 = vld [vmem:[%s220] sm:$0xf]
      %v544 = vld [vmem:[%s220 + $0x4] sm:$0xf]
      %v545 = vld [vmem:[%s220 + $0x8] sm:$0xf]
      %v546 = vld [vmem:[%s220 + $0xc] sm:$0xf]
      %v547 = vld [vmem:[%s220 + $0x10] sm:$0xf]
      %v548 = vld [vmem:[%s220 + $0x14] sm:$0xf]
      %v549 = vld [vmem:[%s220 + $0x18] sm:$0xf]
      %v550 = vld [vmem:[%s220 + $0x1c] sm:$0xf]
      %v551 = vld [vmem:[%s220 + $0x20] sm:$0xf]
      %v552 = vld [vmem:[%s220 + $0x24] sm:$0xf]
      %v553 = vld [vmem:[%s220 + $0x28] sm:$0xf]
      %v554 = vld [vmem:[%s220 + $0x2c] sm:$0xf]
      %v555 = vld [vmem:[%s220 + $0x30] sm:$0xf]
      %v556 = vld [vmem:[%s220 + $0x34] sm:$0xf]
      %v557 = vld [vmem:[%s220 + $0x38] sm:$0xf]
      %v558 = vld [vmem:[%s220 + $0x3c] sm:$0xf]
      %v559 = vld [vmem:[%s2] sm:$0xf]
      %v560 = vld [vmem:[%s2 + $0x4] sm:$0xf]
      %v561 = vld [vmem:[%s2 + $0x8] sm:$0xf]
      %v562 = vld [vmem:[%s2 + $0xc] sm:$0xf]
      %v563 = vld [vmem:[%s2 + $0x10] sm:$0xf]
      %v564 = vld [vmem:[%s2 + $0x14] sm:$0xf]
      %v565 = vld [vmem:[%s2 + $0x18] sm:$0xf]
      %v566 = vld [vmem:[%s2 + $0x1c] sm:$0xf]
      %v567 = vld [vmem:[%s2 + $0x20] sm:$0xf]
      %v568 = vld [vmem:[%s2 + $0x24] sm:$0xf]
      %v569 = vld [vmem:[%s2 + $0x28] sm:$0xf]
      %v570 = vld [vmem:[%s2 + $0x2c] sm:$0xf]
      %v571 = vld [vmem:[%s2 + $0x30] sm:$0xf]
      %v572 = vld [vmem:[%s2 + $0x34] sm:$0xf]
      %v573 = vld [vmem:[%s2 + $0x38] sm:$0xf]
      %v574 = vld [vmem:[%s2 + $0x3c] sm:$0xf]
      %v591 = vunpack.c.l.b16 %v543
      %v592 = vunpack.c.l.b16 %v544
      %v593 = vunpack.c.l.b16 %v545
      %v594 = vunpack.c.l.b16 %v546
      %v595 = vunpack.c.l.b16 %v547
      %v596 = vunpack.c.l.b16 %v548
      %v597 = vunpack.c.l.b16 %v549
      %v598 = vunpack.c.l.b16 %v550
      %v599 = vunpack.c.l.b16 %v551
      %v600 = vunpack.c.l.b16 %v552
      %v601 = vunpack.c.l.b16 %v553
      %v602 = vunpack.c.l.b16 %v554
      %v603 = vunpack.c.l.b16 %v555
      %v604 = vunpack.c.l.b16 %v556
      %v605 = vunpack.c.l.b16 %v557
      %v606 = vunpack.c.l.b16 %v558
      %v607 = vpack.c.b16 %v592, %v591
      %v608 = vpack.c.b16 %v594, %v593
      %v609 = vpack.c.b16 %v596, %v595
      %v610 = vpack.c.b16 %v598, %v597
      %v611 = vpack.c.b16 %v600, %v599
      %v612 = vpack.c.b16 %v602, %v601
      %v613 = vpack.c.b16 %v604, %v603
      %v614 = vpack.c.b16 %v606, %v605
      %v639 = vunpack.c.l.b16 %v559
      %v640 = vunpack.c.l.b16 %v560
      %v641 = vunpack.c.l.b16 %v561
      %v642 = vunpack.c.l.b16 %v562
      %v643 = vunpack.c.l.b16 %v563
      %v644 = vunpack.c.l.b16 %v564
      %v645 = vunpack.c.l.b16 %v565
      %v646 = vunpack.c.l.b16 %v566
      %v647 = vunpack.c.l.b16 %v567
      %v648 = vunpack.c.l.b16 %v568
      %v649 = vunpack.c.l.b16 %v569
      %v650 = vunpack.c.l.b16 %v570
      %v651 = vunpack.c.l.b16 %v571
      %v652 = vunpack.c.l.b16 %v572
      %v653 = vunpack.c.l.b16 %v573
      %v654 = vunpack.c.l.b16 %v574
      %v655 = vpack.c.b16 %v640, %v639
      %v656 = vpack.c.b16 %v642, %v641
      %v657 = vpack.c.b16 %v644, %v643
      %v658 = vpack.c.b16 %v646, %v645
      %v659 = vpack.c.b16 %v648, %v647
      %v660 = vpack.c.b16 %v650, %v649
      %v661 = vpack.c.b16 %v652, %v651
      %v662 = vpack.c.b16 %v654, %v653
      %671 = vmatprep.subr.bf16.mxu0 0
      %672 = vmatpush1.bf16.msra.mxu0 %v655
      %673 = vmatprep.subr.bf16.mxu0 0
      %674 = vmatpush1.bf16.msra.mxu0 %v656
      %675 = vmatprep.subr.bf16.mxu0 0
      %676 = vmatpush1.bf16.msra.mxu0 %v657
      %677 = vmatprep.subr.bf16.mxu0 0
      %678 = vmatpush1.bf16.msra.mxu0 %v658
      %679 = vmatprep.subr.bf16.mxu0 0
      %680 = vmatpush1.bf16.msra.mxu0 %v659
      %681 = vmatprep.subr.bf16.mxu0 0
      %682 = vmatpush1.bf16.msra.mxu0 %v660
      %683 = vmatprep.subr.bf16.mxu0 0
      %684 = vmatpush1.bf16.msra.mxu0 %v661
      %685 = vmatprep.subr.bf16.mxu0 0
      %686 = vmatpush1.bf16.msra.mxu0 %v662
      %687 = vmatprep.subr.bf16.mxu0 0
      %688 = vmatpush1.bf16.msra.mxu0 0
      %689 = vmatprep.subr.bf16.mxu0 0
      %690 = vmatpush1.bf16.msra.mxu0 0
      %691 = vmatprep.subr.bf16.mxu0 0
      %692 = vmatpush1.bf16.msra.mxu0 0
      %693 = vmatprep.subr.bf16.mxu0 0
      %694 = vmatpush1.bf16.msra.mxu0 0
      %695 = vmatprep.subr.bf16.mxu0 0
      %696 = vmatpush1.bf16.msra.mxu0 0
      %697 = vmatprep.subr.bf16.mxu0 0
      %698 = vmatpush1.bf16.msra.mxu0 0
      %699 = vmatprep.subr.bf16.mxu0 0
      %700 = vmatpush1.bf16.msra.mxu0 0
      %701 = vmatprep.subr.bf16.mxu0 0
      %702 = vmatpush1.bf16.msra.mxu0 0
      %703 = vmatprep.mubr.bf16.mxu0 0
      %704 = vmatmul.mubr.bf16.gmra.mrb[0].mxu0 %v607
      %v705 = vpop.f32.mrb[0].mxu0
      %v706 = vadd.f32 %v465, %v705
      %v707 = vpop.f32.mrb[0].mxu0
      %v708 = vpop.f32.mrb[0].mxu0
      %v709 = vadd.f32 %v470, %v708
      %v710 = vpop.f32.mrb[0].mxu0
      %711 = vmatprep.mubr.bf16.mxu0 0
      %712 = vmatmul.mubr.bf16.gmra.mrb[0].mxu0 %v608
      %v713 = vpop.f32.mrb[0].mxu0
      %v714 = vadd.f32 %v475, %v713
      %v715 = vpop.f32.mrb[0].mxu0
      %v716 = vpop.f32.mrb[0].mxu0
      %v717 = vadd.f32 %v480, %v716
      %v718 = vpop.f32.mrb[0].mxu0
      %719 = vmatprep.mubr.bf16.mxu0 0
      %720 = vmatmul.mubr.bf16.gmra.mrb[0].mxu0 %v609
      %v721 = vpop.f32.mrb[0].mxu0
      %v722 = vadd.f32 %v485, %v721
      %v723 = vpop.f32.mrb[0].mxu0
      %v724 = vpop.f32.mrb[0].mxu0
      %v725 = vadd.f32 %v490, %v724
      %v726 = vpop.f32.mrb[0].mxu0
      %727 = vmatprep.mubr.bf16.mxu0 0
      %728 = vmatmul.mubr.bf16.gmra.mrb[0].mxu0 %v610
      %v729 = vpop.f32.mrb[0].mxu0
      %v730 = vadd.f32 %v495, %v729
      %v731 = vpop.f32.mrb[0].mxu0
      %v732 = vpop.f32.mrb[0].mxu0
      %v733 = vadd.f32 %v500, %v732
      %v734 = vpop.f32.mrb[0].mxu0
      %735 = vmatprep.mubr.bf16.mxu0 0
      %736 = vmatmul.mubr.bf16.gmra.mrb[0].mxu0 %v611
      %v737 = vpop.f32.mrb[0].mxu0
      %v738 = vadd.f32 %v505, %v737
      %v739 = vpop.f32.mrb[0].mxu0
      %v740 = vpop.f32.mrb[0].mxu0
      %v741 = vadd.f32 %v510, %v740
      %v742 = vpop.f32.mrb[0].mxu0
      %743 = vmatprep.mubr.bf16.mxu0 0
      %744 = vmatmul.mubr.bf16.gmra.mrb[0].mxu0 %v612
      %v745 = vpop.f32.mrb[0].mxu0
      %v746 = vadd.f32 %v515, %v745
      %v747 = vpop.f32.mrb[0].mxu0
      %v748 = vpop.f32.mrb[0].mxu0
      %v749 = vadd.f32 %v520, %v748
      %v750 = vpop.f32.mrb[0].mxu0
      %751 = vmatprep.mubr.bf16.mxu0 0
      %752 = vmatmul.mubr.bf16.gmra.mrb[0].mxu0 %v613
      %v753 = vpop.f32.mrb[0].mxu0
      %v754 = vadd.f32 %v525, %v753
      %v755 = vpop.f32.mrb[0].mxu0
      %v756 = vpop.f32.mrb[0].mxu0
      %v757 = vadd.f32 %v530, %v756
      %v758 = vpop.f32.mrb[0].mxu0
      %759 = vmatprep.mubr.bf16.mxu0 0
      %760 = vmatmul.mubr.bf16.gmra.mrb[0].mxu0 %v614
      %v761 = vpop.f32.mrb[0].mxu0
      %v762 = vadd.f32 %v535, %v761
      %v763 = vpop.f32.mrb[0].mxu0
      %v764 = vpop.f32.mrb[0].mxu0
      %v765 = vadd.f32 %v540, %v764
      %v766 = vpop.f32.mrb[0].mxu0
      %767 = vdwg.mxu0
      %v768 = vmax.f32 %v706, 0.0
      %v769 = vmax.f32 %v709, 0.0
      %v770 = vmax.f32 %v714, 0.0
      %v771 = vmax.f32 %v717, 0.0
      %v772 = vmax.f32 %v722, 0.0
      %v773 = vmax.f32 %v725, 0.0
      %v774 = vmax.f32 %v730, 0.0
      %v775 = vmax.f32 %v733, 0.0
      %v776 = vmax.f32 %v738, 0.0
      %v777 = vmax.f32 %v741, 0.0
      %v778 = vmax.f32 %v746, 0.0
      %v779 = vmax.f32 %v749, 0.0
      %v780 = vmax.f32 %v754, 0.0
      %v781 = vmax.f32 %v757, 0.0
      %v782 = vmax.f32 %v762, 0.0
      %v783 = vmax.f32 %v765, 0.0
      %v784 = vpack.c.bf16 %v769, %v768
      %v785 = vpack.c.bf16 %v771, %v770
      %v786 = vpack.c.bf16 %v773, %v772
      %v787 = vpack.c.bf16 %v775, %v774
      %v788 = vpack.c.bf16 %v777, %v776
      %v789 = vpack.c.bf16 %v779, %v778
      %v790 = vpack.c.bf16 %v781, %v780
      %v791 = vpack.c.bf16 %v783, %v782
      %v792 = vld [vmem:[%s3] sm:$0xf]
      %v793 = vld [vmem:[%s3 + $0x4] sm:$0xf]
      %v794 = vld [vmem:[%s3 + $0x8] sm:$0xf]
      %v795 = vld [vmem:[%s3 + $0xc] sm:$0xf]
      %v796 = vld [vmem:[%s3 + $0x10] sm:$0xf]
      %v797 = vld [vmem:[%s3 + $0x14] sm:$0xf]
      %v798 = vld [vmem:[%s3 + $0x18] sm:$0xf]
      %v799 = vld [vmem:[%s3 + $0x1c] sm:$0xf]
      %v800 = vld [vmem:[%s3 + $0x20] sm:$0xf]
      %v801 = vld [vmem:[%s3 + $0x24] sm:$0xf]
      %v802 = vld [vmem:[%s3 + $0x28] sm:$0xf]
      %v803 = vld [vmem:[%s3 + $0x2c] sm:$0xf]
      %v804 = vld [vmem:[%s3 + $0x30] sm:$0xf]
      %v805 = vld [vmem:[%s3 + $0x34] sm:$0xf]
      %v806 = vld [vmem:[%s3 + $0x38] sm:$0xf]
      %v807 = vld [vmem:[%s3 + $0x3c] sm:$0xf]
      %v808 = vld [vmem:[%s4] sm:$0x1]
      %v810 = vlaneseq
      %v811 = vshrl.u32 %v810, 7
      %v812 = vsub.s32 0, %v811
      %v813 = vrot.slane %v808, %v812
      %v831 = vunpack.c.l.b16 %v792
      %v832 = vunpack.c.l.b16 %v793
      %v833 = vunpack.c.l.b16 %v794
      %v834 = vunpack.c.l.b16 %v795
      %v835 = vunpack.c.l.b16 %v796
      %v836 = vunpack.c.l.b16 %v797
      %v837 = vunpack.c.l.b16 %v798
      %v838 = vunpack.c.l.b16 %v799
      %v839 = vunpack.c.l.b16 %v800
      %v840 = vunpack.c.l.b16 %v801
      %v841 = vunpack.c.l.b16 %v802
      %v842 = vunpack.c.l.b16 %v803
      %v843 = vunpack.c.l.b16 %v804
      %v844 = vunpack.c.l.b16 %v805
      %v845 = vunpack.c.l.b16 %v806
      %v846 = vunpack.c.l.b16 %v807
      %v847 = vpack.c.b16 %v832, %v831
      %v848 = vpack.c.b16 %v834, %v833
      %v849 = vpack.c.b16 %v836, %v835
      %v850 = vpack.c.b16 %v838, %v837
      %v851 = vpack.c.b16 %v840, %v839
      %v852 = vpack.c.b16 %v842, %v841
      %v853 = vpack.c.b16 %v844, %v843
      %v854 = vpack.c.b16 %v846, %v845
      %863 = vmatprep.subr.bf16.mxu0 0
      %864 = vmatpush1.bf16.msra.mxu0 %v847
      %865 = vmatprep.subr.bf16.mxu0 0
      %866 = vmatpush1.bf16.msra.mxu0 %v848
      %867 = vmatprep.subr.bf16.mxu0 0
      %868 = vmatpush1.bf16.msra.mxu0 %v849
      %869 = vmatprep.subr.bf16.mxu0 0
      %870 = vmatpush1.bf16.msra.mxu0 %v850
      %871 = vmatprep.subr.bf16.mxu0 0
      %872 = vmatpush1.bf16.msra.mxu0 %v851
      %873 = vmatprep.subr.bf16.mxu0 0
      %874 = vmatpush1.bf16.msra.mxu0 %v852
      %875 = vmatprep.subr.bf16.mxu0 0
      %876 = vmatpush1.bf16.msra.mxu0 %v853
      %877 = vmatprep.subr.bf16.mxu0 0
      %878 = vmatpush1.bf16.msra.mxu0 %v854
      %879 = vmatprep.subr.bf16.mxu0 0
      %880 = vmatpush1.bf16.msra.mxu0 0
      %881 = vmatprep.subr.bf16.mxu0 0
      %882 = vmatpush1.bf16.msra.mxu0 0
      %883 = vmatprep.subr.bf16.mxu0 0
      %884 = vmatpush1.bf16.msra.mxu0 0
      %885 = vmatprep.subr.bf16.mxu0 0
      %886 = vmatpush1.bf16.msra.mxu0 0
      %887 = vmatprep.subr.bf16.mxu0 0
      %888 = vmatpush1.bf16.msra.mxu0 0
      %889 = vmatprep.subr.bf16.mxu0 0
      %890 = vmatpush1.bf16.msra.mxu0 0
      %891 = vmatprep.subr.bf16.mxu0 0
      %892 = vmatpush1.bf16.msra.mxu0 0
      %893 = vmatprep.subr.bf16.mxu0 0
      %894 = vmatpush1.bf16.msra.mxu0 0
      %895 = vmatprep.mubr.bf16.mxu0 0
      %896 = vmatmul.mubr.bf16.gmra.mrb[0].mxu0 %v784
      %v897 = vpop.f32.mrb[0].mxu0
      %v898 = vadd.f32 %v813, %v897
      %v899 = vpop.f32.mrb[0].mxu0
      %v900 = vpop.f32.mrb[0].mxu0
      %v901 = vadd.f32 %v813, %v900
      %v902 = vpop.f32.mrb[0].mxu0
      %903 = vmatprep.mubr.bf16.mxu0 0
      %904 = vmatmul.mubr.bf16.gmra.mrb[0].mxu0 %v785
      %v905 = vpop.f32.mrb[0].mxu0
      %v906 = vadd.f32 %v813, %v905
      %v907 = vpop.f32.mrb[0].mxu0
      %v908 = vpop.f32.mrb[0].mxu0
      %v909 = vadd.f32 %v813, %v908
      %v910 = vpop.f32.mrb[0].mxu0
      %911 = vmatprep.mubr.bf16.mxu0 0
      %912 = vmatmul.mubr.bf16.gmra.mrb[0].mxu0 %v786
      %v913 = vpop.f32.mrb[0].mxu0
      %v914 = vadd.f32 %v813, %v913
      %v915 = vpop.f32.mrb[0].mxu0
      %v916 = vpop.f32.mrb[0].mxu0
      %v917 = vadd.f32 %v813, %v916
      %v918 = vpop.f32.mrb[0].mxu0
      %919 = vmatprep.mubr.bf16.mxu0 0
      %920 = vmatmul.mubr.bf16.gmra.mrb[0].mxu0 %v787
      %v921 = vpop.f32.mrb[0].mxu0
      %v922 = vadd.f32 %v813, %v921
      %v923 = vpop.f32.mrb[0].mxu0
      %v924 = vpop.f32.mrb[0].mxu0
      %v925 = vadd.f32 %v813, %v924
      %v926 = vpop.f32.mrb[0].mxu0
      %927 = vmatprep.mubr.bf16.mxu0 0
      %928 = vmatmul.mubr.bf16.gmra.mrb[0].mxu0 %v788
      %v929 = vpop.f32.mrb[0].mxu0
      %v930 = vadd.f32 %v813, %v929
      %v931 = vpop.f32.mrb[0].mxu0
      %v932 = vpop.f32.mrb[0].mxu0
      %v933 = vadd.f32 %v813, %v932
      %v934 = vpop.f32.mrb[0].mxu0
      %935 = vmatprep.mubr.bf16.mxu0 0
      %936 = vmatmul.mubr.bf16.gmra.mrb[0].mxu0 %v789
      %v937 = vpop.f32.mrb[0].mxu0
      %v938 = vadd.f32 %v813, %v937
      %v939 = vpop.f32.mrb[0].mxu0
      %v940 = vpop.f32.mrb[0].mxu0
      %v941 = vadd.f32 %v813, %v940
      %v942 = vpop.f32.mrb[0].mxu0
      %943 = vmatprep.mubr.bf16.mxu0 0
      %944 = vmatmul.mubr.bf16.gmra.mrb[0].mxu0 %v790
      %v945 = vpop.f32.mrb[0].mxu0
      %v946 = vadd.f32 %v813, %v945
      %v947 = vpop.f32.mrb[0].mxu0
      %v948 = vpop.f32.mrb[0].mxu0
      %v949 = vadd.f32 %v813, %v948
      %v950 = vpop.f32.mrb[0].mxu0
      %951 = vmatprep.mubr.bf16.mxu0 0
      %952 = vmatmul.mubr.bf16.gmra.mrb[0].mxu0 %v791
      %v953 = vpop.f32.mrb[0].mxu0
      %v954 = vadd.f32 %v813, %v953
      %v955 = vpop.f32.mrb[0].mxu0
      %v956 = vpop.f32.mrb[0].mxu0
      %v957 = vadd.f32 %v813, %v956
      %v958 = vpop.f32.mrb[0].mxu0
      %959 = vdwg.mxu0
      %v960 = vpack.c.bf16 %v901, %v898
      %v961 = vpack.c.bf16 %v909, %v906
      %v962 = vpack.c.bf16 %v917, %v914
      %v963 = vpack.c.bf16 %v925, %v922
      %v964 = vpack.c.bf16 %v933, %v930
      %v965 = vpack.c.bf16 %v941, %v938
      %v966 = vpack.c.bf16 %v949, %v946
      %v967 = vpack.c.bf16 %v957, %v954
      %v976 = vunpack.c.l.b16 %v960
      %v977 = vunpack.c.h.b16 %v960
      %v978 = vunpack.c.l.b16 %v961
      %v979 = vunpack.c.h.b16 %v961
      %v980 = vunpack.c.l.b16 %v962
      %v981 = vunpack.c.h.b16 %v962
      %v982 = vunpack.c.l.b16 %v963
      %v983 = vunpack.c.h.b16 %v963
      %v984 = vunpack.c.l.b16 %v964
      %v985 = vunpack.c.h.b16 %v964
      %v986 = vunpack.c.l.b16 %v965
      %v987 = vunpack.c.h.b16 %v965
      %v988 = vunpack.c.l.b16 %v966
      %v989 = vunpack.c.h.b16 %v966
      %v990 = vunpack.c.l.b16 %v967
      %v991 = vunpack.c.h.b16 %v967
      %v992 = vpack.c.b16 %v976, %v976
      %v993 = vpack.c.b16 %v977, %v977
      %v994 = vpack.c.b16 %v978, %v978
      %v995 = vpack.c.b16 %v979, %v979
      %v996 = vpack.c.b16 %v980, %v980
      %v997 = vpack.c.b16 %v981, %v981
      %v998 = vpack.c.b16 %v982, %v982
      %v999 = vpack.c.b16 %v983, %v983
      %v1000 = vpack.c.b16 %v984, %v984
      %v1001 = vpack.c.b16 %v985, %v985
      %v1002 = vpack.c.b16 %v986, %v986
      %v1003 = vpack.c.b16 %v987, %v987
      %v1004 = vpack.c.b16 %v988, %v988
      %v1005 = vpack.c.b16 %v989, %v989
      %v1006 = vpack.c.b16 %v990, %v990
      %v1007 = vpack.c.b16 %v991, %v991
      %1024 = vst [vmem:[%s226] sm:$0xf] %v992
      %1025 = vst [vmem:[%s226 + $0x4] sm:$0xf] %v993
      %1026 = vst [vmem:[%s226 + $0x8] sm:$0xf] %v994
      %1027 = vst [vmem:[%s226 + $0xc] sm:$0xf] %v995
      %1028 = vst [vmem:[%s226 + $0x10] sm:$0xf] %v996
      %1029 = vst [vmem:[%s226 + $0x14] sm:$0xf] %v997
      %1030 = vst [vmem:[%s226 + $0x18] sm:$0xf] %v998
      %1031 = vst [vmem:[%s226 + $0x1c] sm:$0xf] %v999
      %1032 = vst [vmem:[%s226 + $0x20] sm:$0xf] %v1000
      %1033 = vst [vmem:[%s226 + $0x24] sm:$0xf] %v1001
      %1034 = vst [vmem:[%s226 + $0x28] sm:$0xf] %v1002
      %1035 = vst [vmem:[%s226 + $0x2c] sm:$0xf] %v1003
      %1036 = vst [vmem:[%s226 + $0x30] sm:$0xf] %v1004
      %1037 = vst [vmem:[%s226 + $0x34] sm:$0xf] %v1005
      %1038 = vst [vmem:[%s226 + $0x38] sm:$0xf] %v1006
      %1039 = vst [vmem:[%s226 + $0x3c] sm:$0xf] %v1007
      %s1040 = smul.u32 16, %s16
      %p1041 = scmp.lt.s32.totalorder %s1040, 31
      %s1042 = scalar_select %p1041, %s1040, 31
      %s1043 = smul.addr %s1042, 4
      %s1044 = scalar_lea.vmem %s5, %s1043
      // Predicated region
      $region41: #{rep_synthesizer_forward.3} parent=39 // pred_check
        %p1045 = pneg %p144
      $region42: #{rep_synthesizer_forward.3} parent=39 // pred_check_branch
        %1047 = sbr.rel (%p1045) target = $region44
      $region43: #{rep_synthesizer_forward.3} parent=39 // pred_region
        %s1048 = smul.u32 16, %s16
      $region44: #{rep_synthesizer_forward.3} parent=39 // pred_fallthru
        _
    $region40: #{rep_synthesizer_forward.3} parent=5 // pred_fallthru
      _
    %p1049 = scmp.le.s32.totalorder 2, %s11
    // Predicated region
    $region45: #{rep_synthesizer_forward.3} parent=5 // pred_check
      %p1050 = pneg %p1049
    $region46: #{rep_synthesizer_forward.3} parent=5 // pred_check_branch
      %1052 = sbr.rel (%p1050) target = $region48
    $region47: #{rep_synthesizer_forward.3} parent=5 // pred_region
      %s1053 = ssub.s32 %s11, 2
      // Predicated region
      $region49: #{rep_synthesizer_forward.3} parent=47 // pred_check
        %p1054 = pneg %p150
      $region50: #{rep_synthesizer_forward.3} parent=47 // pred_check_branch
        %1056 = sbr.rel (%p1054) target = $region52
      $region51: #{rep_synthesizer_forward.3} parent=47 // pred_region
        %s1057 = smul.u32 16, %s17
        %p1058 = scmp.lt.s32.totalorder %s1057, 31
        %s1059 = scalar_select %p1058, %s1057, 31
        %s1060 = smul.addr %s1059, 4
        %s1061 = scalar_lea.vmem %s5, %s1060
      $region52: #{rep_synthesizer_forward.3} parent=47 // pred_fallthru
        _
    $region48: #{rep_synthesizer_forward.3} parent=5 // pred_fallthru
      _
  $region6: #{rep_synthesizer_forward.3} parent=0 // loop_footer
    %s15 = sadd.s32 1, %s11
  $region7: #{rep_synthesizer_forward.3} parent=0 // loop_footer_branch
    %10 = sbr.rel target = $region3
  $region8: #{rep_synthesizer_forward.3} parent=0 // loop_exit
    _

</llo_original>
